<compile_context>
chip_gen: v7x
topology: tpu7x:2x2x1
jax: 0.10.0
libtpu: 0.0.40
codegen_flags: <defaults>
</compile_context>

<pallas_src>
import functools

import jax
import jax.numpy as jnp
from jax import lax
from jax.experimental import pallas as pl
from jax.experimental.pallas import tpu as pltpu

LANE = 128


def _round_up(v, m):
    return ((v + m - 1) // m) * m


def _pick_batch_block(batch, seq_len, target_rows=512):
    """Largest divisor of `batch` keeping Bblk*T around target_rows."""
    best = 1
    for cand in range(1, batch + 1):
        if batch % cand == 0 and cand * seq_len <= max(seq_len, target_rows):
            best = cand
    return best


def wavenet_kernel(x_ref, wi_ref, bi_ref, wfa_ref, wfb_ref, bfg_ref,
                   wrs_ref, brs_ref, w1_ref, b1_ref, w2_ref, b2_ref,
                   out_ref, h_ref, skip_ref,
                   *, dilations, seq_len, bblk, rp, op, compute_dtype):
    c = pl.program_id(1)
    last_c = pl.num_programs(1) - 1
    m = bblk * seq_len
    cdt = compute_dtype

    # --- first cycle: input causal conv (k=2, d=1) + zero the skip sum -------
    @pl.when(c == 0)
    def _init():
        xx = x_ref[...].reshape(m, x_ref.shape[-1])          # [shift(x,1) | x]
        h_ref[...] = (
            jnp.dot(xx.astype(cdt), wi_ref[...],
                    preferred_element_type=jnp.float32) + bi_ref[...])
        skip_ref[...] = jnp.zeros_like(skip_ref)

    # time index of every flattened row (hoisted once; reused per layer).
    pos = lax.broadcasted_iota(jnp.int32, (m, rp), 0) % seq_len

    # --- one dilation cycle of residual layers (static unroll over depth) ----
    # h / skip carried in registers; scratch touched once per grid step.
    h = h_ref[...]                                            # (M, Rp)  f32
    skip = skip_ref[...]                                      # (M, Sp)  f32
    for j, d in enumerate(dilations):
        # per-sequence causal shift: rolled[r] = h[r - d]; rows with t < d -> 0
        hs = jnp.where(pos >= d, pltpu.roll(h, d, axis=0), 0.0)
        fg = (jnp.dot(hs.astype(cdt), wfa_ref[0, j],
                      preferred_element_type=jnp.float32)
              + jnp.dot(h.astype(cdt), wfb_ref[0, j],
                        preferred_element_type=jnp.float32)
              + bfg_ref[0, j])                                # (M, 2Rp)
        fx = jnp.tanh(fg[:, :rp]) * jax.nn.sigmoid(fg[:, rp:])  # (M, Rp)
        rs = (jnp.dot(fx.astype(cdt), wrs_ref[0, j],
                      preferred_element_type=jnp.float32) + brs_ref[0, j])
        h = rs[:, :rp] + h                                    # residual
        skip = skip + rs[:, rp:]                              # skip accumulate
    h_ref[...] = h
    skip_ref[...] = skip

    # --- last cycle: output head ---------------------------------------------
    @pl.when(c == last_c)
    def _finalize():
        o = jnp.maximum(skip, 0.0)
        o = jnp.maximum(
            jnp.dot(o.astype(cdt), w1_ref[...],
                    preferred_element_type=jnp.float32) + b1_ref[...], 0.0)
        o = (jnp.dot(o.astype(cdt), w2_ref[...],
                     preferred_element_type=jnp.float32) + b2_ref[...])
        out_ref[...] = o.reshape(bblk, seq_len, op).astype(out_ref.dtype)


def fuse_and_pad_params(params, dilation_cycles, dilation_depth,
                        compute_dtype=jnp.float32):
    """Fuse taps/branches and zero-pad channel dims to lane multiples."""
    wi, bi, wf, bf, wg, bg, wr, br, ws, bs, w1, b1, w2, b2 = params
    in_size, r = wi.shape[1], wi.shape[2]
    s, o = ws.shape[-1], w1.shape[-1]
    n_layers = dilation_cycles * dilation_depth
    rp, sp, op = _round_up(r, LANE), _round_up(s, LANE), _round_up(o, LANE)

    # input conv: [shift(x,1) | x] @ wi_f
    wi_f = jnp.zeros((2 * in_size, rp), jnp.float32)
    wi_f = wi_f.at[:in_size, :r].set(wi[0]).at[in_size:, :r].set(wi[1])
    bi_f = jnp.zeros((1, rp), jnp.float32).at[:, :r].set(bi)

    # filter|gate fused along N; split by conv tap (shifted vs current):
    #   fg = hs @ wfa + h @ wfb + bfg  ->  [f | g]
    wfa = jnp.zeros((n_layers, rp, 2 * rp), jnp.float32)
    wfa = wfa.at[:, :r, :r].set(wf[:, 0]).at[:, :r, rp:rp + r].set(wg[:, 0])
    wfb = jnp.zeros((n_layers, rp, 2 * rp), jnp.float32)
    wfb = wfb.at[:, :r, :r].set(wf[:, 1]).at[:, :r, rp:rp + r].set(wg[:, 1])
    bfg = jnp.zeros((n_layers, 1, 2 * rp), jnp.float32)
    bfg = bfg.at[:, :, :r].set(bf).at[:, :, rp:rp + r].set(bg)

    # residual|skip fused: skip path composed through the residual projection
    w_sc = jnp.einsum('lij,ljk->lik', wr, ws)            # wr @ ws      (L,R,S)
    b_sc = jnp.einsum('lij,ljk->lik', br, ws) + bs       # br @ ws + bs
    wrs = jnp.zeros((n_layers, rp, rp + sp), jnp.float32)
    wrs = wrs.at[:, :r, :r].set(wr).at[:, :r, rp:rp + s].set(w_sc)
    brs = jnp.zeros((n_layers, 1, rp + sp), jnp.float32)
    brs = brs.at[:, :, :r].set(br).at[:, :, rp:rp + s].set(b_sc)

    # output head
    w1_f = jnp.zeros((sp, op), jnp.float32).at[:s, :o].set(w1)
    b1_f = jnp.zeros((1, op), jnp.float32).at[:, :o].set(b1)
    w2_f = jnp.zeros((op, op), jnp.float32).at[:o, :o].set(w2)
    b2_f = jnp.zeros((1, op), jnp.float32).at[:, :o].set(b2)

    # group layer stacks by dilation cycle (streamed per grid step)
    wfa = wfa.reshape(dilation_cycles, dilation_depth, rp, 2 * rp)
    wfb = wfb.reshape(dilation_cycles, dilation_depth, rp, 2 * rp)
    bfg = bfg.reshape(dilation_cycles, dilation_depth, 1, 2 * rp)
    wrs = wrs.reshape(dilation_cycles, dilation_depth, rp, rp + sp)
    brs = brs.reshape(dilation_cycles, dilation_depth, 1, rp + sp)

    # weights in compute dtype (bf16 halves DMA + MXU passes); biases stay f32
    wi_f, wfa, wfb, wrs, w1_f, w2_f = (a.astype(compute_dtype)
                                       for a in (wi_f, wfa, wfb, wrs, w1_f, w2_f))
    return (wi_f, bi_f, wfa, wfb, bfg, wrs, brs,
            w1_f, b1_f, w2_f, b2_f), (rp, sp, op)


def wavenet_forward(x, params, dilation_cycles, dilation_depth,
                    compute_dtype=jnp.float32, vmem_limit_bytes=None):
    """x: (B, T, input_size) f32 -> (B, T, out_size) f32."""
    B, T, _ = x.shape
    out_size = params[-1].shape[-1]
    fused, (rp, sp, op) = fuse_and_pad_params(
        params, dilation_cycles, dilation_depth, compute_dtype)
    (wi_f, bi_f, wfa, wfb, bfg, wrs, brs, w1_f, b1_f, w2_f, b2_f) = fused

    # input-conv operand [shift(x,1) | x] built host-side (x is known here)
    x_shift = jnp.pad(x, ((0, 0), (1, 0), (0, 0)))[:, :T, :]
    xx = jnp.concatenate([x_shift, x], axis=-1)              # (B, T, 2*In)

    bblk = _pick_batch_block(B, T)
    nb = B // bblk
    dil_in_cycle = tuple(2 ** j for j in range(dilation_depth))

    kernel = functools.partial(
        wavenet_kernel, dilations=dil_in_cycle, seq_len=T, bblk=bblk,
        rp=rp, op=op, compute_dtype=compute_dtype)

    cp_kwargs = dict(dimension_semantics=("parallel", "arbitrary"))
    if vmem_limit_bytes is not None:
        cp_kwargs["vmem_limit_bytes"] = vmem_limit_bytes

    out = pl.pallas_call(
        kernel,
        out_shape=jax.ShapeDtypeStruct((B, T, op), jnp.float32),
        grid=(nb, dilation_cycles),
        in_specs=[
            pl.BlockSpec((bblk, T, xx.shape[-1]), lambda b, c: (b, 0, 0)),
            pl.BlockSpec(wi_f.shape, lambda b, c: (0, 0)),
            pl.BlockSpec(bi_f.shape, lambda b, c: (0, 0)),
            pl.BlockSpec((1,) + wfa.shape[1:], lambda b, c: (c, 0, 0, 0)),
            pl.BlockSpec((1,) + wfb.shape[1:], lambda b, c: (c, 0, 0, 0)),
            pl.BlockSpec((1,) + bfg.shape[1:], lambda b, c: (c, 0, 0, 0)),
            pl.BlockSpec((1,) + wrs.shape[1:], lambda b, c: (c, 0, 0, 0)),
            pl.BlockSpec((1,) + brs.shape[1:], lambda b, c: (c, 0, 0, 0)),
            pl.BlockSpec(w1_f.shape, lambda b, c: (0, 0)),
            pl.BlockSpec(b1_f.shape, lambda b, c: (0, 0)),
            pl.BlockSpec(w2_f.shape, lambda b, c: (0, 0)),
            pl.BlockSpec(b2_f.shape, lambda b, c: (0, 0)),
        ],
        out_specs=pl.BlockSpec((bblk, T, op), lambda b, c: (b, 0, 0)),
        scratch_shapes=[
            pltpu.VMEM((bblk * T, rp), jnp.float32),   # residual stream h
            pltpu.VMEM((bblk * T, sp), jnp.float32),   # skip accumulator
        ],
        compiler_params=pltpu.CompilerParams(**cp_kwargs),
    )(xx, *fused)
    return out[:, :, :out_size]


def init_params(key, input_size, out_size, residual_size, skip_size,
                dilation_cycles, dilation_depth):
    L = dilation_cycles * dilation_depth
    ks = jax.random.split(key, 14)

    def rnd(k, shape, scale=0.1):
        return (scale * jax.random.normal(k, shape)).astype(jnp.float32)

    wi = rnd(ks[0], (2, input_size, residual_size))         # input causal conv
    bi = rnd(ks[1], (1, residual_size))
    wf = rnd(ks[2], (L, 2, residual_size, residual_size))   # conv_filter
    bf = rnd(ks[3], (L, 1, residual_size))
    wg = rnd(ks[4], (L, 2, residual_size, residual_size))   # conv_gate
    bg = rnd(ks[5], (L, 1, residual_size))
    wr = rnd(ks[6], (L, residual_size, residual_size))      # resconv1_1
    br = rnd(ks[7], (L, 1, residual_size))
    ws = rnd(ks[8], (L, residual_size, skip_size))          # skipconv1_1
    bs = rnd(ks[9], (L, 1, skip_size))
    w1 = rnd(ks[10], (skip_size, out_size))                 # convout_1
    b1 = rnd(ks[11], (1, out_size))
    w2 = rnd(ks[12], (out_size, out_size))                  # convout_2
    b2 = rnd(ks[13], (1, out_size))
    return (wi, bi, wf, bf, wg, bg, wr, br, ws, bs, w1, b1, w2, b2)


def wavenet_ref(x, params, dilations):
    """Pure-JAX reference mirroring the PyTorch forward (channels-last)."""
    wi, bi, wf, bf, wg, bg, wr, br, ws, bs, w1, b1, w2, b2 = params

    def shift(h, d):
        return jnp.pad(h, ((0, 0), (d, 0), (0, 0)))[:, :h.shape[1], :]

    h = shift(x, 1) @ wi[0] + x @ wi[1] + bi
    skip_sum = 0.0
    for l, d in enumerate(dilations):
        hs = shift(h, d)
        f = jnp.tanh(hs @ wf[l, 0] + h @ wf[l, 1] + bf[l])
        g = jax.nn.sigmoid(hs @ wg[l, 0] + h @ wg[l, 1] + bg[l])
        fx = f * g
        fx = fx @ wr[l] + br[l]
        skip_sum = skip_sum + (fx @ ws[l] + bs[l])
        h = fx + h
    out = jax.nn.relu(skip_sum)
    out = jax.nn.relu(out @ w1 + b1)
    out = out @ w2 + b2
    return out


if __name__ == "__main__":
    # WaveNet(input_size=4, out_size=8, residual_size=32, skip_size=16,
    #         dilation_cycles=2, dilation_depth=3)
    B, T = 2, 16
    input_size, out_size = 4, 8
    residual_size, skip_size = 32, 16
    dilation_cycles, dilation_depth = 2, 3
    dilations = [2 ** l for _ in range(dilation_cycles) for l in range(dilation_depth)]

    key = jax.random.PRNGKey(0)
    kx, kp = jax.random.split(key)
    x = jax.random.normal(kx, (B, T, input_size), dtype=jnp.float32)
    params = init_params(kp, input_size, out_size, residual_size, skip_size,
                         dilation_cycles, dilation_depth)

    ref = wavenet_ref(x, params, dilations)

    # f32 matmul path — must match the module-faithful reference tightly.
    out_f32 = wavenet_forward(x, params, dilation_cycles, dilation_depth,
                              compute_dtype=jnp.float32)
    out_f32 = jax.block_until_ready(out_f32)
    assert out_f32.shape == (B, T, out_size)
    assert jnp.allclose(out_f32, ref, atol=1e-4, rtol=1e-4), (
        f"f32 max abs err {float(jnp.max(jnp.abs(out_f32 - ref)))}")

    # bf16-matmul path (f32 accumulation / element-wise) — looser tolerance.
    out_bf16 = wavenet_forward(x, params, dilation_cycles, dilation_depth,
                               compute_dtype=jnp.bfloat16)
    out_bf16 = jax.block_until_ready(out_bf16)
    assert jnp.allclose(out_bf16, ref, atol=3e-2, rtol=3e-2), (
        f"bf16 max abs err {float(jnp.max(jnp.abs(out_bf16 - ref)))}")

    print("KERNEL_OK")
</pallas_src>

<mosaic_0001>
module attributes {stable_mosaic.version = 11 : i64} {
  func.func @wavenet_kernel(%arg0: i32, %arg1: i32, %arg2: memref<2x16x8xf32, #tpu.memory_space<vmem>>, %arg3: memref<8x128xf32, #tpu.memory_space<vmem>>, %arg4: memref<1x128xf32, #tpu.memory_space<vmem>>, %arg5: memref<1x3x128x256xf32, #tpu.memory_space<vmem>>, %arg6: memref<1x3x128x256xf32, #tpu.memory_space<vmem>>, %arg7: memref<1x3x1x256xf32, #tpu.memory_space<vmem>>, %arg8: memref<1x3x128x256xf32, #tpu.memory_space<vmem>>, %arg9: memref<1x3x1x256xf32, #tpu.memory_space<vmem>>, %arg10: memref<128x128xf32, #tpu.memory_space<vmem>>, %arg11: memref<1x128xf32, #tpu.memory_space<vmem>>, %arg12: memref<128x128xf32, #tpu.memory_space<vmem>>, %arg13: memref<1x128xf32, #tpu.memory_space<vmem>>, %arg14: memref<2x16x128xf32, #tpu.memory_space<vmem>>, %arg15: memref<32x128xf32, #tpu.memory_space<vmem>>, %arg16: memref<32x128xf32, #tpu.memory_space<vmem>>) attributes {dimension_semantics = [#tpu.dimension_semantics<parallel>, #tpu.dimension_semantics<arbitrary>], iteration_bounds = array<i64: 1, 2>, scalar_prefetch = 0 : i64, scratch_operands = 2 : i64, tpu.core_type = #tpu.core_type<tc>, window_params = [{transform_indices = @transform_0, window_bounds = array<i64: 2, 16, 8>}, {pipeline_mode = #tpu.pipeline_mode<synchronous>, transform_indices = @transform_1, window_bounds = array<i64: 8, 128>}, {pipeline_mode = #tpu.pipeline_mode<synchronous>, transform_indices = @transform_2, window_bounds = array<i64: 1, 128>}, {transform_indices = @transform_3, window_bounds = array<i64: 1, 3, 128, 256>}, {transform_indices = @transform_4, window_bounds = array<i64: 1, 3, 128, 256>}, {transform_indices = @transform_5, window_bounds = array<i64: 1, 3, 1, 256>}, {transform_indices = @transform_6, window_bounds = array<i64: 1, 3, 128, 256>}, {transform_indices = @transform_7, window_bounds = array<i64: 1, 3, 1, 256>}, {pipeline_mode = #tpu.pipeline_mode<synchronous>, transform_indices = @transform_8, window_bounds = array<i64: 128, 128>}, {pipeline_mode = #tpu.pipeline_mode<synchronous>, transform_indices = @transform_9, window_bounds = array<i64: 1, 128>}, {pipeline_mode = #tpu.pipeline_mode<synchronous>, transform_indices = @transform_10, window_bounds = array<i64: 128, 128>}, {pipeline_mode = #tpu.pipeline_mode<synchronous>, transform_indices = @transform_11, window_bounds = array<i64: 1, 128>}, {transform_indices = @transform_12, window_bounds = array<i64: 2, 16, 128>}]} {
    %c0_i32 = arith.constant 0 : i32
    %0 = arith.cmpi eq, %arg1, %c0_i32 : i32
    %1 = arith.extui %0 : i1 to i32
    %c0_i32_0 = arith.constant 0 : i32
    %2 = arith.cmpi ne, %1, %c0_i32_0 : i32
    scf.if %2 {
      %c0_90 = arith.constant 0 : index
      %c0_91 = arith.constant 0 : index
      %c0_92 = arith.constant 0 : index
      %135 = vector.load %arg2[%c0_90, %c0_91, %c0_92] : memref<2x16x8xf32, #tpu.memory_space<vmem>>, vector<2x16x8xf32>
      %136 = vector.shape_cast %135 : vector<2x16x8xf32> to vector<32x8xf32>
      %c0_93 = arith.constant 0 : index
      %c0_94 = arith.constant 0 : index
      %137 = vector.load %arg3[%c0_93, %c0_94] : memref<8x128xf32, #tpu.memory_space<vmem>>, vector<8x128xf32>
      %cst_95 = arith.constant dense<0.000000e+00> : vector<32x128xf32>
      %138 = tpu.matmul %136, %137, %cst_95 {dimension_numbers = #tpu.dot_dimension_numbers<[1], [0], [0], [1], [0, 0, 1, 1], [], []>} : vector<32x8xf32>, vector<8x128xf32>, vector<32x128xf32> -> vector<32x128xf32>
      %c0_96 = arith.constant 0 : index
      %c0_97 = arith.constant 0 : index
      %139 = vector.load %arg4[%c0_96, %c0_97] : memref<1x128xf32, #tpu.memory_space<vmem>>, vector<1x128xf32>
      %140 = vector.broadcast %139 : vector<1x128xf32> to vector<32x128xf32>
      %141 = arith.addf %138, %140 : vector<32x128xf32>
      %c0_98 = arith.constant 0 : index
      %c0_99 = arith.constant 0 : index
      %142 = vector.load %arg15[%c0_98, %c0_99] : memref<32x128xf32, #tpu.memory_space<vmem>>, vector<32x128xf32>
      tpu.vector_store %arg15[%c0_98, %c0_99], %141 {strides = array<i32>} : memref<32x128xf32, #tpu.memory_space<vmem>>, vector<32x128xf32>,
      %cst_100 = arith.constant 0.000000e+00 : f32
      %143 = vector.broadcast %cst_100 : f32 to vector<32x128xf32>
      %c0_101 = arith.constant 0 : index
      %c0_102 = arith.constant 0 : index
      %144 = vector.load %arg16[%c0_101, %c0_102] : memref<32x128xf32, #tpu.memory_space<vmem>>, vector<32x128xf32>
      tpu.vector_store %arg16[%c0_101, %c0_102], %143 {strides = array<i32>} : memref<32x128xf32, #tpu.memory_space<vmem>>, vector<32x128xf32>,
    } else {
    }
    %3 = tpu.iota {dimensions = array<i32: 0>} : vector<32x128xi32>
    %c16_i32 = arith.constant 16 : i32
    %c0_i32_1 = arith.constant 0 : i32
    %4 = arith.cmpi eq, %c16_i32, %c0_i32_1 : i32
    %c1_i32 = arith.constant 1 : i32
    %5 = arith.select %4, %c1_i32, %c16_i32 : i32
    %6 = vector.broadcast %5 : i32 to vector<32x128xi32>
    %7 = arith.remsi %3, %6 : vector<32x128xi32>
    %c0_i32_2 = arith.constant 0 : i32
    %8 = vector.broadcast %c0_i32_2 : i32 to vector<32x128xi32>
    %9 = arith.cmpi ne, %7, %8 : vector<32x128xi32>
    %c0_i32_3 = arith.constant 0 : i32
    %10 = vector.broadcast %c0_i32_3 : i32 to vector<32x128xi32>
    %11 = arith.cmpi slt, %7, %10 : vector<32x128xi32>
    %c0_i32_4 = arith.constant 0 : i32
    %12 = arith.cmpi slt, %5, %c0_i32_4 : i32
    %13 = vector.broadcast %12 : i1 to vector<32x128xi1>
    %14 = vector.broadcast %13 : vector<32x128xi1> to vector<32x128xi1>
    %15 = arith.xori %11, %14 : vector<32x128xi1>
    %16 = arith.andi %15, %9 : vector<32x128xi1>
    %17 = vector.broadcast %5 : i32 to vector<32x128xi32>
    %18 = arith.addi %7, %17 : vector<32x128xi32>
    %19 = arith.select %16, %18, %7 : vector<32x128xi1>, vector<32x128xi32>
    %c0 = arith.constant 0 : index
    %c0_5 = arith.constant 0 : index
    %20 = vector.load %arg15[%c0, %c0_5] : memref<32x128xf32, #tpu.memory_space<vmem>>, vector<32x128xf32>
    %c0_6 = arith.constant 0 : index
    %c0_7 = arith.constant 0 : index
    %21 = vector.load %arg16[%c0_6, %c0_7] : memref<32x128xf32, #tpu.memory_space<vmem>>, vector<32x128xf32>
    %c1_i32_8 = arith.constant 1 : i32
    %22 = vector.broadcast %c1_i32_8 : i32 to vector<32x128xi32>
    %23 = arith.cmpi sge, %19, %22 : vector<32x128xi32>
    %c1_i32_9 = arith.constant 1 : i32
    %24 = tpu.dynamic_rotate %20 by %c1_i32_9 dim 0 : vector<32x128xf32>, i32 -> vector<32x128xf32>
    %cst = arith.constant 0.000000e+00 : f32
    %25 = vector.broadcast %cst : f32 to vector<32x128xf32>
    %26 = arith.select %23, %24, %25 : vector<32x128xi1>, vector<32x128xf32>
    %c0_10 = arith.constant 0 : index
    %c0_11 = arith.constant 0 : index
    %c0_12 = arith.constant 0 : index
    %c0_13 = arith.constant 0 : index
    %27 = vector.load %arg5[%c0_10, %c0_11, %c0_12, %c0_13] : memref<1x3x128x256xf32, #tpu.memory_space<vmem>>, vector<1x1x128x256xf32>
    %28 = vector.shape_cast %27 : vector<1x1x128x256xf32> to vector<128x256xf32>
    %cst_14 = arith.constant dense<0.000000e+00> : vector<32x256xf32>
    %29 = tpu.matmul %26, %28, %cst_14 {dimension_numbers = #tpu.dot_dimension_numbers<[1], [0], [0], [1], [0, 0, 1, 1], [], []>} : vector<32x128xf32>, vector<128x256xf32>, vector<32x256xf32> -> vector<32x256xf32>
    %c0_15 = arith.constant 0 : index
    %c0_16 = arith.constant 0 : index
    %c0_17 = arith.constant 0 : index
    %c0_18 = arith.constant 0 : index
    %30 = vector.load %arg6[%c0_15, %c0_16, %c0_17, %c0_18] : memref<1x3x128x256xf32, #tpu.memory_space<vmem>>, vector<1x1x128x256xf32>
    %31 = vector.shape_cast %30 : vector<1x1x128x256xf32> to vector<128x256xf32>
    %cst_19 = arith.constant dense<0.000000e+00> : vector<32x256xf32>
    %32 = tpu.matmul %20, %31, %cst_19 {dimension_numbers = #tpu.dot_dimension_numbers<[1], [0], [0], [1], [0, 0, 1, 1], [], []>} : vector<32x128xf32>, vector<128x256xf32>, vector<32x256xf32> -> vector<32x256xf32>
    %33 = arith.addf %29, %32 : vector<32x256xf32>
    %c0_20 = arith.constant 0 : index
    %c0_21 = arith.constant 0 : index
    %c0_22 = arith.constant 0 : index
    %c0_23 = arith.constant 0 : index
    %34 = vector.load %arg7[%c0_20, %c0_21, %c0_22, %c0_23] : memref<1x3x1x256xf32, #tpu.memory_space<vmem>>, vector<1x1x1x256xf32>
    %35 = vector.shape_cast %34 : vector<1x1x1x256xf32> to vector<1x256xf32>
    %36 = vector.broadcast %35 : vector<1x256xf32> to vector<32x256xf32>
    %37 = arith.addf %33, %36 : vector<32x256xf32>
    %38 = vector.extract_strided_slice %37 {offsets = [0, 0], sizes = [32, 128], strides = [1, 1]} : vector<32x256xf32> to vector<32x128xf32>
    %39 = math.tanh %38 : vector<32x128xf32>
    %40 = vector.extract_strided_slice %37 {offsets = [0, 128], sizes = [32, 128], strides = [1, 1]} : vector<32x256xf32> to vector<32x128xf32>
    %41 = arith.negf %40 : vector<32x128xf32>
    %42 = math.exp %41 : vector<32x128xf32>
    %cst_24 = arith.constant 1.000000e+00 : f32
    %43 = vector.broadcast %cst_24 : f32 to vector<32x128xf32>
    %44 = arith.addf %43, %42 : vector<32x128xf32>
    %45 = arith.divf %43, %44 : vector<32x128xf32>
    %46 = arith.mulf %39, %45 : vector<32x128xf32>
    %c0_25 = arith.constant 0 : index
    %c0_26 = arith.constant 0 : index
    %c0_27 = arith.constant 0 : index
    %c0_28 = arith.constant 0 : index
    %47 = vector.load %arg8[%c0_25, %c0_26, %c0_27, %c0_28] : memref<1x3x128x256xf32, #tpu.memory_space<vmem>>, vector<1x1x128x256xf32>
    %48 = vector.shape_cast %47 : vector<1x1x128x256xf32> to vector<128x256xf32>
    %cst_29 = arith.constant dense<0.000000e+00> : vector<32x256xf32>
    %49 = tpu.matmul %46, %48, %cst_29 {dimension_numbers = #tpu.dot_dimension_numbers<[1], [0], [0], [1], [0, 0, 1, 1], [], []>} : vector<32x128xf32>, vector<128x256xf32>, vector<32x256xf32> -> vector<32x256xf32>
    %c0_30 = arith.constant 0 : index
    %c0_31 = arith.constant 0 : index
    %c0_32 = arith.constant 0 : index
    %c0_33 = arith.constant 0 : index
    %50 = vector.load %arg9[%c0_30, %c0_31, %c0_32, %c0_33] : memref<1x3x1x256xf32, #tpu.memory_space<vmem>>, vector<1x1x1x256xf32>
    %51 = vector.shape_cast %50 : vector<1x1x1x256xf32> to vector<1x256xf32>
    %52 = vector.broadcast %51 : vector<1x256xf32> to vector<32x256xf32>
    %53 = arith.addf %49, %52 : vector<32x256xf32>
    %54 = vector.extract_strided_slice %53 {offsets = [0, 0], sizes = [32, 128], strides = [1, 1]} : vector<32x256xf32> to vector<32x128xf32>
    %55 = arith.addf %54, %20 : vector<32x128xf32>
    %56 = vector.extract_strided_slice %53 {offsets = [0, 128], sizes = [32, 128], strides = [1, 1]} : vector<32x256xf32> to vector<32x128xf32>
    %57 = arith.addf %21, %56 : vector<32x128xf32>
    %c2_i32 = arith.constant 2 : i32
    %58 = vector.broadcast %c2_i32 : i32 to vector<32x128xi32>
    %59 = arith.cmpi sge, %19, %58 : vector<32x128xi32>
    %c2_i32_34 = arith.constant 2 : i32
    %60 = tpu.dynamic_rotate %55 by %c2_i32_34 dim 0 : vector<32x128xf32>, i32 -> vector<32x128xf32>
    %cst_35 = arith.constant 0.000000e+00 : f32
    %61 = vector.broadcast %cst_35 : f32 to vector<32x128xf32>
    %62 = arith.select %59, %60, %61 : vector<32x128xi1>, vector<32x128xf32>
    %c0_36 = arith.constant 0 : index
    %c1 = arith.constant 1 : index
    %c0_37 = arith.constant 0 : index
    %c0_38 = arith.constant 0 : index
    %63 = vector.load %arg5[%c0_36, %c1, %c0_37, %c0_38] : memref<1x3x128x256xf32, #tpu.memory_space<vmem>>, vector<1x1x128x256xf32>
    %64 = vector.shape_cast %63 : vector<1x1x128x256xf32> to vector<128x256xf32>
    %cst_39 = arith.constant dense<0.000000e+00> : vector<32x256xf32>
    %65 = tpu.matmul %62, %64, %cst_39 {dimension_numbers = #tpu.dot_dimension_numbers<[1], [0], [0], [1], [0, 0, 1, 1], [], []>} : vector<32x128xf32>, vector<128x256xf32>, vector<32x256xf32> -> vector<32x256xf32>
    %c0_40 = arith.constant 0 : index
    %c1_41 = arith.constant 1 : index
    %c0_42 = arith.constant 0 : index
    %c0_43 = arith.constant 0 : index
    %66 = vector.load %arg6[%c0_40, %c1_41, %c0_42, %c0_43] : memref<1x3x128x256xf32, #tpu.memory_space<vmem>>, vector<1x1x128x256xf32>
    %67 = vector.shape_cast %66 : vector<1x1x128x256xf32> to vector<128x256xf32>
    %cst_44 = arith.constant dense<0.000000e+00> : vector<32x256xf32>
    %68 = tpu.matmul %55, %67, %cst_44 {dimension_numbers = #tpu.dot_dimension_numbers<[1], [0], [0], [1], [0, 0, 1, 1], [], []>} : vector<32x128xf32>, vector<128x256xf32>, vector<32x256xf32> -> vector<32x256xf32>
    %69 = arith.addf %65, %68 : vector<32x256xf32>
    %c0_45 = arith.constant 0 : index
    %c1_46 = arith.constant 1 : index
    %c0_47 = arith.constant 0 : index
    %c0_48 = arith.constant 0 : index
    %70 = vector.load %arg7[%c0_45, %c1_46, %c0_47, %c0_48] : memref<1x3x1x256xf32, #tpu.memory_space<vmem>>, vector<1x1x1x256xf32>
    %71 = vector.shape_cast %70 : vector<1x1x1x256xf32> to vector<1x256xf32>
    %72 = vector.broadcast %71 : vector<1x256xf32> to vector<32x256xf32>
    %73 = arith.addf %69, %72 : vector<32x256xf32>
    %74 = vector.extract_strided_slice %73 {offsets = [0, 0], sizes = [32, 128], strides = [1, 1]} : vector<32x256xf32> to vector<32x128xf32>
    %75 = math.tanh %74 : vector<32x128xf32>
    %76 = vector.extract_strided_slice %73 {offsets = [0, 128], sizes = [32, 128], strides = [1, 1]} : vector<32x256xf32> to vector<32x128xf32>
    %77 = arith.negf %76 : vector<32x128xf32>
    %78 = math.exp %77 : vector<32x128xf32>
    %cst_49 = arith.constant 1.000000e+00 : f32
    %79 = vector.broadcast %cst_49 : f32 to vector<32x128xf32>
    %80 = arith.addf %79, %78 : vector<32x128xf32>
    %81 = arith.divf %79, %80 : vector<32x128xf32>
    %82 = arith.mulf %75, %81 : vector<32x128xf32>
    %c0_50 = arith.constant 0 : index
    %c1_51 = arith.constant 1 : index
    %c0_52 = arith.constant 0 : index
    %c0_53 = arith.constant 0 : index
    %83 = vector.load %arg8[%c0_50, %c1_51, %c0_52, %c0_53] : memref<1x3x128x256xf32, #tpu.memory_space<vmem>>, vector<1x1x128x256xf32>
    %84 = vector.shape_cast %83 : vector<1x1x128x256xf32> to vector<128x256xf32>
    %cst_54 = arith.constant dense<0.000000e+00> : vector<32x256xf32>
    %85 = tpu.matmul %82, %84, %cst_54 {dimension_numbers = #tpu.dot_dimension_numbers<[1], [0], [0], [1], [0, 0, 1, 1], [], []>} : vector<32x128xf32>, vector<128x256xf32>, vector<32x256xf32> -> vector<32x256xf32>
    %c0_55 = arith.constant 0 : index
    %c1_56 = arith.constant 1 : index
    %c0_57 = arith.constant 0 : index
    %c0_58 = arith.constant 0 : index
    %86 = vector.load %arg9[%c0_55, %c1_56, %c0_57, %c0_58] : memref<1x3x1x256xf32, #tpu.memory_space<vmem>>, vector<1x1x1x256xf32>
    %87 = vector.shape_cast %86 : vector<1x1x1x256xf32> to vector<1x256xf32>
    %88 = vector.broadcast %87 : vector<1x256xf32> to vector<32x256xf32>
    %89 = arith.addf %85, %88 : vector<32x256xf32>
    %90 = vector.extract_strided_slice %89 {offsets = [0, 0], sizes = [32, 128], strides = [1, 1]} : vector<32x256xf32> to vector<32x128xf32>
    %91 = arith.addf %90, %55 : vector<32x128xf32>
    %92 = vector.extract_strided_slice %89 {offsets = [0, 128], sizes = [32, 128], strides = [1, 1]} : vector<32x256xf32> to vector<32x128xf32>
    %93 = arith.addf %57, %92 : vector<32x128xf32>
    %c4_i32 = arith.constant 4 : i32
    %94 = vector.broadcast %c4_i32 : i32 to vector<32x128xi32>
    %95 = arith.cmpi sge, %19, %94 : vector<32x128xi32>
    %c4_i32_59 = arith.constant 4 : i32
    %96 = tpu.dynamic_rotate %91 by %c4_i32_59 dim 0 : vector<32x128xf32>, i32 -> vector<32x128xf32>
    %cst_60 = arith.constant 0.000000e+00 : f32
    %97 = vector.broadcast %cst_60 : f32 to vector<32x128xf32>
    %98 = arith.select %95, %96, %97 : vector<32x128xi1>, vector<32x128xf32>
    %c0_61 = arith.constant 0 : index
    %c2 = arith.constant 2 : index
    %c0_62 = arith.constant 0 : index
    %c0_63 = arith.constant 0 : index
    %99 = vector.load %arg5[%c0_61, %c2, %c0_62, %c0_63] : memref<1x3x128x256xf32, #tpu.memory_space<vmem>>, vector<1x1x128x256xf32>
    %100 = vector.shape_cast %99 : vector<1x1x128x256xf32> to vector<128x256xf32>
    %cst_64 = arith.constant dense<0.000000e+00> : vector<32x256xf32>
    %101 = tpu.matmul %98, %100, %cst_64 {dimension_numbers = #tpu.dot_dimension_numbers<[1], [0], [0], [1], [0, 0, 1, 1], [], []>} : vector<32x128xf32>, vector<128x256xf32>, vector<32x256xf32> -> vector<32x256xf32>
    %c0_65 = arith.constant 0 : index
    %c2_66 = arith.constant 2 : index
    %c0_67 = arith.constant 0 : index
    %c0_68 = arith.constant 0 : index
    %102 = vector.load %arg6[%c0_65, %c2_66, %c0_67, %c0_68] : memref<1x3x128x256xf32, #tpu.memory_space<vmem>>, vector<1x1x128x256xf32>
    %103 = vector.shape_cast %102 : vector<1x1x128x256xf32> to vector<128x256xf32>
    %cst_69 = arith.constant dense<0.000000e+00> : vector<32x256xf32>
    %104 = tpu.matmul %91, %103, %cst_69 {dimension_numbers = #tpu.dot_dimension_numbers<[1], [0], [0], [1], [0, 0, 1, 1], [], []>} : vector<32x128xf32>, vector<128x256xf32>, vector<32x256xf32> -> vector<32x256xf32>
    %105 = arith.addf %101, %104 : vector<32x256xf32>
    %c0_70 = arith.constant 0 : index
    %c2_71 = arith.constant 2 : index
    %c0_72 = arith.constant 0 : index
    %c0_73 = arith.constant 0 : index
    %106 = vector.load %arg7[%c0_70, %c2_71, %c0_72, %c0_73] : memref<1x3x1x256xf32, #tpu.memory_space<vmem>>, vector<1x1x1x256xf32>
    %107 = vector.shape_cast %106 : vector<1x1x1x256xf32> to vector<1x256xf32>
    %108 = vector.broadcast %107 : vector<1x256xf32> to vector<32x256xf32>
    %109 = arith.addf %105, %108 : vector<32x256xf32>
    %110 = vector.extract_strided_slice %109 {offsets = [0, 0], sizes = [32, 128], strides = [1, 1]} : vector<32x256xf32> to vector<32x128xf32>
    %111 = math.tanh %110 : vector<32x128xf32>
    %112 = vector.extract_strided_slice %109 {offsets = [0, 128], sizes = [32, 128], strides = [1, 1]} : vector<32x256xf32> to vector<32x128xf32>
    %113 = arith.negf %112 : vector<32x128xf32>
    %114 = math.exp %113 : vector<32x128xf32>
    %cst_74 = arith.constant 1.000000e+00 : f32
    %115 = vector.broadcast %cst_74 : f32 to vector<32x128xf32>
    %116 = arith.addf %115, %114 : vector<32x128xf32>
    %117 = arith.divf %115, %116 : vector<32x128xf32>
    %118 = arith.mulf %111, %117 : vector<32x128xf32>
    %c0_75 = arith.constant 0 : index
    %c2_76 = arith.constant 2 : index
    %c0_77 = arith.constant 0 : index
    %c0_78 = arith.constant 0 : index
    %119 = vector.load %arg8[%c0_75, %c2_76, %c0_77, %c0_78] : memref<1x3x128x256xf32, #tpu.memory_space<vmem>>, vector<1x1x128x256xf32>
    %120 = vector.shape_cast %119 : vector<1x1x128x256xf32> to vector<128x256xf32>
    %cst_79 = arith.constant dense<0.000000e+00> : vector<32x256xf32>
    %121 = tpu.matmul %118, %120, %cst_79 {dimension_numbers = #tpu.dot_dimension_numbers<[1], [0], [0], [1], [0, 0, 1, 1], [], []>} : vector<32x128xf32>, vector<128x256xf32>, vector<32x256xf32> -> vector<32x256xf32>
    %c0_80 = arith.constant 0 : index
    %c2_81 = arith.constant 2 : index
    %c0_82 = arith.constant 0 : index
    %c0_83 = arith.constant 0 : index
    %122 = vector.load %arg9[%c0_80, %c2_81, %c0_82, %c0_83] : memref<1x3x1x256xf32, #tpu.memory_space<vmem>>, vector<1x1x1x256xf32>
    %123 = vector.shape_cast %122 : vector<1x1x1x256xf32> to vector<1x256xf32>
    %124 = vector.broadcast %123 : vector<1x256xf32> to vector<32x256xf32>
    %125 = arith.addf %121, %124 : vector<32x256xf32>
    %126 = vector.extract_strided_slice %125 {offsets = [0, 0], sizes = [32, 128], strides = [1, 1]} : vector<32x256xf32> to vector<32x128xf32>
    %127 = arith.addf %126, %91 : vector<32x128xf32>
    %128 = vector.extract_strided_slice %125 {offsets = [0, 128], sizes = [32, 128], strides = [1, 1]} : vector<32x256xf32> to vector<32x128xf32>
    %129 = arith.addf %93, %128 : vector<32x128xf32>
    %c0_84 = arith.constant 0 : index
    %c0_85 = arith.constant 0 : index
    %130 = vector.load %arg15[%c0_84, %c0_85] : memref<32x128xf32, #tpu.memory_space<vmem>>, vector<32x128xf32>
    tpu.vector_store %arg15[%c0_84, %c0_85], %127 {strides = array<i32>} : memref<32x128xf32, #tpu.memory_space<vmem>>, vector<32x128xf32>,
    %c0_86 = arith.constant 0 : index
    %c0_87 = arith.constant 0 : index
    %131 = vector.load %arg16[%c0_86, %c0_87] : memref<32x128xf32, #tpu.memory_space<vmem>>, vector<32x128xf32>
    tpu.vector_store %arg16[%c0_86, %c0_87], %129 {strides = array<i32>} : memref<32x128xf32, #tpu.memory_space<vmem>>, vector<32x128xf32>,
    %c1_i32_88 = arith.constant 1 : i32
    %132 = arith.cmpi eq, %arg1, %c1_i32_88 : i32
    %133 = arith.extui %132 : i1 to i32
    %c0_i32_89 = arith.constant 0 : i32
    %134 = arith.cmpi ne, %133, %c0_i32_89 : i32
    scf.if %134 {
      %cst_90 = arith.constant 0.000000e+00 : f32
      %135 = vector.broadcast %cst_90 : f32 to vector<32x128xf32>
      %136 = arith.maximumf %129, %135 : vector<32x128xf32>
      %c0_91 = arith.constant 0 : index
      %c0_92 = arith.constant 0 : index
      %137 = vector.load %arg10[%c0_91, %c0_92] : memref<128x128xf32, #tpu.memory_space<vmem>>, vector<128x128xf32>
      %cst_93 = arith.constant dense<0.000000e+00> : vector<32x128xf32>
      %138 = tpu.matmul %136, %137, %cst_93 {dimension_numbers = #tpu.dot_dimension_numbers<[1], [0], [0], [1], [0, 0, 1, 1], [], []>} : vector<32x128xf32>, vector<128x128xf32>, vector<32x128xf32> -> vector<32x128xf32>
      %c0_94 = arith.constant 0 : index
      %c0_95 = arith.constant 0 : index
      %139 = vector.load %arg11[%c0_94, %c0_95] : memref<1x128xf32, #tpu.memory_space<vmem>>, vector<1x128xf32>
      %140 = vector.broadcast %139 : vector<1x128xf32> to vector<32x128xf32>
      %141 = arith.addf %138, %140 : vector<32x128xf32>
      %cst_96 = arith.constant 0.000000e+00 : f32
      %142 = vector.broadcast %cst_96 : f32 to vector<32x128xf32>
      %143 = arith.maximumf %141, %142 : vector<32x128xf32>
      %c0_97 = arith.constant 0 : index
      %c0_98 = arith.constant 0 : index
      %144 = vector.load %arg12[%c0_97, %c0_98] : memref<128x128xf32, #tpu.memory_space<vmem>>, vector<128x128xf32>
      %cst_99 = arith.constant dense<0.000000e+00> : vector<32x128xf32>
      %145 = tpu.matmul %143, %144, %cst_99 {dimension_numbers = #tpu.dot_dimension_numbers<[1], [0], [0], [1], [0, 0, 1, 1], [], []>} : vector<32x128xf32>, vector<128x128xf32>, vector<32x128xf32> -> vector<32x128xf32>
      %c0_100 = arith.constant 0 : index
      %c0_101 = arith.constant 0 : index
      %146 = vector.load %arg13[%c0_100, %c0_101] : memref<1x128xf32, #tpu.memory_space<vmem>>, vector<1x128xf32>
      %147 = vector.broadcast %146 : vector<1x128xf32> to vector<32x128xf32>
      %148 = arith.addf %145, %147 : vector<32x128xf32>
      %149 = vector.shape_cast %148 : vector<32x128xf32> to vector<2x16x128xf32>
      %c0_102 = arith.constant 0 : index
      %c0_103 = arith.constant 0 : index
      %c0_104 = arith.constant 0 : index
      %150 = vector.load %arg14[%c0_102, %c0_103, %c0_104] : memref<2x16x128xf32, #tpu.memory_space<vmem>>, vector<2x16x128xf32>
      tpu.vector_store %arg14[%c0_102, %c0_103, %c0_104], %149 {strides = array<i32>} : memref<2x16x128xf32, #tpu.memory_space<vmem>>, vector<2x16x128xf32>,
    } else {
    }
    return
  }
  func.func @transform_0(%arg0: i32, %arg1: i32) -> (i32, i32, i32) {
    %c0_i32 = arith.constant 0 : i32
    %c0_i32_0 = arith.constant 0 : i32
    %c0_i32_1 = arith.constant 0 : i32
    return %arg0, %c0_i32, %c0_i32_0 : i32, i32, i32
  }
  func.func @transform_1(%arg0: i32, %arg1: i32) -> (i32, i32) {
    %c0_i32 = arith.constant 0 : i32
    %c0_i32_0 = arith.constant 0 : i32
    %c0_i32_1 = arith.constant 0 : i32
    return %c0_i32, %c0_i32_0 : i32, i32
  }
  func.func @transform_2(%arg0: i32, %arg1: i32) -> (i32, i32) {
    %c0_i32 = arith.constant 0 : i32
    %c0_i32_0 = arith.constant 0 : i32
    %c0_i32_1 = arith.constant 0 : i32
    return %c0_i32, %c0_i32_0 : i32, i32
  }
  func.func @transform_3(%arg0: i32, %arg1: i32) -> (i32, i32, i32, i32) {
    %c0_i32 = arith.constant 0 : i32
    %c0_i32_0 = arith.constant 0 : i32
    %c0_i32_1 = arith.constant 0 : i32
    %c0_i32_2 = arith.constant 0 : i32
    return %arg1, %c0_i32, %c0_i32_0, %c0_i32_1 : i32, i32, i32, i32
  }
  func.func @transform_4(%arg0: i32, %arg1: i32) -> (i32, i32, i32, i32) {
    %c0_i32 = arith.constant 0 : i32
    %c0_i32_0 = arith.constant 0 : i32
    %c0_i32_1 = arith.constant 0 : i32
    %c0_i32_2 = arith.constant 0 : i32
    return %arg1, %c0_i32, %c0_i32_0, %c0_i32_1 : i32, i32, i32, i32
  }
  func.func @transform_5(%arg0: i32, %arg1: i32) -> (i32, i32, i32, i32) {
    %c0_i32 = arith.constant 0 : i32
    %c0_i32_0 = arith.constant 0 : i32
    %c0_i32_1 = arith.constant 0 : i32
    %c0_i32_2 = arith.constant 0 : i32
    return %arg1, %c0_i32, %c0_i32_0, %c0_i32_1 : i32, i32, i32, i32
  }
  func.func @transform_6(%arg0: i32, %arg1: i32) -> (i32, i32, i32, i32) {
    %c0_i32 = arith.constant 0 : i32
    %c0_i32_0 = arith.constant 0 : i32
    %c0_i32_1 = arith.constant 0 : i32
    %c0_i32_2 = arith.constant 0 : i32
    return %arg1, %c0_i32, %c0_i32_0, %c0_i32_1 : i32, i32, i32, i32
  }
  func.func @transform_7(%arg0: i32, %arg1: i32) -> (i32, i32, i32, i32) {
    %c0_i32 = arith.constant 0 : i32
    %c0_i32_0 = arith.constant 0 : i32
    %c0_i32_1 = arith.constant 0 : i32
    %c0_i32_2 = arith.constant 0 : i32
    return %arg1, %c0_i32, %c0_i32_0, %c0_i32_1 : i32, i32, i32, i32
  }
  func.func @transform_8(%arg0: i32, %arg1: i32) -> (i32, i32) {
    %c0_i32 = arith.constant 0 : i32
    %c0_i32_0 = arith.constant 0 : i32
    %c0_i32_1 = arith.constant 0 : i32
    return %c0_i32, %c0_i32_0 : i32, i32
  }
  func.func @transform_9(%arg0: i32, %arg1: i32) -> (i32, i32) {
    %c0_i32 = arith.constant 0 : i32
    %c0_i32_0 = arith.constant 0 : i32
    %c0_i32_1 = arith.constant 0 : i32
    return %c0_i32, %c0_i32_0 : i32, i32
  }
  func.func @transform_10(%arg0: i32, %arg1: i32) -> (i32, i32) {
    %c0_i32 = arith.constant 0 : i32
    %c0_i32_0 = arith.constant 0 : i32
    %c0_i32_1 = arith.constant 0 : i32
    return %c0_i32, %c0_i32_0 : i32, i32
  }
  func.func @transform_11(%arg0: i32, %arg1: i32) -> (i32, i32) {
    %c0_i32 = arith.constant 0 : i32
    %c0_i32_0 = arith.constant 0 : i32
    %c0_i32_1 = arith.constant 0 : i32
    return %c0_i32, %c0_i32_0 : i32, i32
  }
  func.func @transform_12(%arg0: i32, %arg1: i32) -> (i32, i32, i32) {
    %c0_i32 = arith.constant 0 : i32
    %c0_i32_0 = arith.constant 0 : i32
    %c0_i32_1 = arith.constant 0 : i32
    return %arg0, %c0_i32, %c0_i32_0 : i32, i32, i32
  }
}

</mosaic_0001>

<llo_original>
// kernel: tpu_custom_call.1
$region0: #{tpu_custom_call.1}
  #allocation0 [shape = 'u32[]', space=smem, size = 0x4, offset = 0x4, fixed_abs, tag = 'smem constant byte address 0x4 - core index']
  #allocation1 [shape = 'u32[144,128]{1,0:T(1,128)}', space=vmem, size = 0x12000, scoped, tag = 'internal scratch']
  #allocation2 [shape = 'f32[32,128]{1,0:T(8,128)}', space=vmem, size = 0x4000, scoped, tag = 'scratch operand']
  #allocation3 [shape = 'f32[32,128]{1,0:T(8,128)}', space=vmem, size = 0x4000, scoped, tag = 'scratch operand']
  %s0 = inlined_call_operand.vmem [shape: f32[2,16,8], index: 0, kind: input, shape index: {}]
  %s1 = inlined_call_operand.vmem [shape: f32[8,128], index: 1, kind: input, shape index: {}]
  %s2 = inlined_call_operand.vmem [shape: f32[1,128], index: 2, kind: input, shape index: {}]
  %s3 = inlined_call_operand.hbm [shape: f32[2,3,128,256], index: 3, kind: input, shape index: {}]
  %s4 = inlined_call_operand.hbm [shape: f32[2,3,128,256], index: 4, kind: input, shape index: {}]
  %s5 = inlined_call_operand.vmem [shape: f32[2,3,1,256], index: 5, kind: input, shape index: {}]
  %s6 = inlined_call_operand.hbm [shape: f32[2,3,128,256], index: 6, kind: input, shape index: {}]
  %s7 = inlined_call_operand.vmem [shape: f32[2,3,1,256], index: 7, kind: input, shape index: {}]
  %s8 = inlined_call_operand.hbm [shape: f32[128,128], index: 8, kind: input, shape index: {}]
  %s9 = inlined_call_operand.vmem [shape: f32[1,128], index: 9, kind: input, shape index: {}]
  %s10 = inlined_call_operand.hbm [shape: f32[128,128], index: 10, kind: input, shape index: {}]
  %s11 = inlined_call_operand.vmem [shape: f32[1,128], index: 11, kind: input, shape index: {}]
  %s12 = inlined_call_operand.hbm [shape: f32[2,16,128], index: 12, kind: output, shape index: {}]
  %s13 = sld [smem:[#allocation0]]
  $region109: #{tpu_custom_call.1} parent=0
    _
  %s15 = ssub.s32 1, %s13
  %s16 = scalar_select 0, %s15, %s13
  $region1: #{tpu_custom_call.1} parent=0
    #allocation4 [shape = 'u8[786432]{0}', space=vmem, size = 0xc0000, scoped, tag = 'input window, operand 3']
    #allocation5 [shape = 's32[2]{0}', space=sflag, size = 0x8, scoped, tag = 'scoped memory for tpu_custom_call.1']
    #allocation6 [shape = 's32[2]{0}', space=sflag, size = 0x8, scoped, tag = 'scoped memory for tpu_custom_call.1']
    #allocation7 [shape = 'u8[786432]{0}', space=vmem, size = 0xc0000, scoped, tag = 'input window, operand 4']
    #allocation8 [shape = 's32[2]{0}', space=sflag, size = 0x8, scoped, tag = 'scoped memory for tpu_custom_call.1']
    #allocation9 [shape = 'u8[786432]{0}', space=vmem, size = 0xc0000, scoped, tag = 'input window, operand 6']
    #allocation10 [shape = 'u8[65536]{0}', space=vmem, size = 0x10000, scoped, tag = 'input window, operand 8, single buffered']
    #allocation11 [shape = 's32[1]{0}', space=sflag, size = 0x4, scoped, tag = 'scoped memory for tpu_custom_call.1']
    #allocation12 [shape = 'u8[65536]{0}', space=vmem, size = 0x10000, scoped, tag = 'input window, operand 10, single buffered']
    #allocation13 [shape = 'u8[16384]{0}', space=vmem, size = 0x4000, scoped, tag = 'output window, operand 0, single buffered']
    %17 = vsyncpa [#allocation5], 0
    %s18 = scalar_lea.sflag [#allocation5], 1
    %19 = vsyncpa %s18, 0
    %20 = vsyncpa [#allocation8], 0
    %s21 = scalar_lea.sflag [#allocation8], 1
    %22 = vsyncpa %s21, 0
    %23 = vsyncpa [#allocation11], 0
    %24 = vsyncpa [#allocation6], 0
    loop: start=0, step=1, limit=4
    $region2: #{tpu_custom_call.1} parent=1 // loop_pre_header
      _
    $region3: #{tpu_custom_call.1} parent=1 // loop_header
      %s26 = sphi 0, %s30
      %p27 = scmp.ge.s32.totalorder %s26, 4
      %s33 = sphi 0, %s45
      %s34 = sphi 0, %s41
      %s35 = sphi 0, %s33
      %s36 = sphi 0, %s34
      %s37 = sphi 0, %s35
      %s38 = sphi 0, %s36
      %s48 = sphi 0, %s50
      %s51 = sphi 0, %s48
      %s52 = sphi 0, %s51
      %s68 = sphi 0, %s52
      %s72 = sphi 0, %s72
      %s74 = sphi 0, %s72
      %s75 = sphi 0, %s74
      %s89 = sphi 0, %s75
      %s93 = sphi 0, %s93
      %s95 = sphi 0, %s93
      %s96 = sphi 0, %s95
      %s110 = sphi 0, %s96
      %s116 = sphi 0, %s118
      %s119 = sphi 0, %s116
      %s120 = sphi 0, %s119
      %s136 = sphi 0, %s120
      %s142 = sphi 0, %s144
      %s145 = sphi 0, %s142
      %s146 = sphi 0, %s145
      %s162 = sphi 0, %s146
      %s168 = sphi 0, %s170
      %s171 = sphi 0, %s168
      %s172 = sphi 0, %s171
      %s188 = sphi 0, %s172
      %s194 = sphi 0, %s196
      %s197 = sphi 0, %s194
      %s198 = sphi 0, %s197
      %s214 = sphi 0, %s198
      %s220 = sphi 0, %s222
      %s223 = sphi 0, %s220
      %s224 = sphi 0, %s223
      %s240 = sphi 0, %s224
      %s244 = sphi 0, %s244
      %s246 = sphi 0, %s244
      %s247 = sphi 0, %s246
      %s261 = sphi 0, %s247
      %s265 = sphi 0, %s265
      %s267 = sphi 0, %s265
      %s268 = sphi 0, %s267
      %s282 = sphi 0, %s268
      %s286 = sphi 0, %s286
      %s288 = sphi 0, %s286
      %s289 = sphi 0, %s288
      %s303 = sphi 0, %s289
      %s307 = sphi 0, %s307
      %s309 = sphi 0, %s307
      %s310 = sphi 0, %s309
      %s324 = sphi 0, %s310
      %s330 = sphi 0, %s332
      %s333 = sphi 0, %s330
      %s334 = sphi 0, %s333
      %s350 = sphi 0, %s334
    $region4: #{tpu_custom_call.1} parent=1 // loop_header_branch
      %29 = sbr.rel (%p27) target = $region8
    $region5: #{tpu_custom_call.1} parent=1 // loop_body
      %s31 = ssub.s32 %s26, 1
      %s32 = ssub.s32 %s26, 2
      %s39 = sadd.s32 1, %s34
      %p40 = scmp.ge.s32.totalorder %s39, 2
      %s41 = scalar_select %p40, 0, %s39
      %s42 = sadd.s32 1, %s33
      %s43 = scalar_select %p40, %s42, %s33
      %p44 = scmp.ge.s32.totalorder %s43, 1
      %s45 = scalar_select %p44, 0, %s43
      %s46 = ssub.s32 %s33, %s45
      %p47 = scmp.eq.s32.totalorder %s46, 0
      %s49 = sadd.s32 %s48, 1
      %s50 = scalar_select %p47, %s48, %s49
      %p53 = pneg %p47
      %p54 = scmp.eq.s32.totalorder %s26, 1
      %p55 = por %p53, %p54
      %p56 = scmp.ne.s32.totalorder %s48, %s51
      %p57 = scmp.eq.s32.totalorder %s26, 0
      %p58 = por %p56, %p57
      %p59 = scmp.ne.s32.totalorder %s48, %s51
      %p60 = scmp.eq.s32.totalorder %s31, 1
      %p61 = por %p59, %p60
      %p62 = scmp.ne.s32.totalorder %s51, %s52
      %p63 = scmp.eq.s32.totalorder %s31, 0
      %p64 = por %p62, %p63
      %p65 = scmp.ne.s32.totalorder %s51, %s52
      %p66 = scmp.eq.s32.totalorder %s32, 1
      %p67 = por %p65, %p66
      %p69 = scmp.ne.s32.totalorder %s52, %s68
      %p70 = scmp.eq.s32.totalorder %s32, 0
      %p71 = por %p69, %p70
      %s73 = sadd.s32 %s72, 1
      %p76 = scmp.eq.s32.totalorder %s26, 1
      %p77 = scmp.ne.s32.totalorder %s72, %s74
      %p78 = scmp.eq.s32.totalorder %s26, 0
      %p79 = por %p77, %p78
      %p80 = scmp.ne.s32.totalorder %s72, %s74
      %p81 = scmp.eq.s32.totalorder %s31, 1
      %p82 = por %p80, %p81
      %p83 = scmp.ne.s32.totalorder %s74, %s75
      %p84 = scmp.eq.s32.totalorder %s31, 0
      %p85 = por %p83, %p84
      %p86 = scmp.ne.s32.totalorder %s74, %s75
      %p87 = scmp.eq.s32.totalorder %s32, 1
      %p88 = por %p86, %p87
      %p90 = scmp.ne.s32.totalorder %s75, %s89
      %p91 = scmp.eq.s32.totalorder %s32, 0
      %p92 = por %p90, %p91
      %s94 = sadd.s32 %s93, 1
      %p97 = scmp.eq.s32.totalorder %s26, 1
      %p98 = scmp.ne.s32.totalorder %s93, %s95
      %p99 = scmp.eq.s32.totalorder %s26, 0
      %p100 = por %p98, %p99
      %p101 = scmp.ne.s32.totalorder %s93, %s95
      %p102 = scmp.eq.s32.totalorder %s31, 1
      %p103 = por %p101, %p102
      %p104 = scmp.ne.s32.totalorder %s95, %s96
      %p105 = scmp.eq.s32.totalorder %s31, 0
      %p106 = por %p104, %p105
      %p107 = scmp.ne.s32.totalorder %s95, %s96
      %p108 = scmp.eq.s32.totalorder %s32, 1
      %p109 = por %p107, %p108
      %p111 = scmp.ne.s32.totalorder %s96, %s110
      %p112 = scmp.eq.s32.totalorder %s32, 0
      %p113 = por %p111, %p112
      %s114 = ssub.s32 %s34, %s41
      %p115 = scmp.eq.s32.totalorder %s114, 0
      %s117 = sadd.s32 %s116, 1
      %s118 = scalar_select %p115, %s116, %s117
      %p121 = pneg %p115
      %p122 = scmp.eq.s32.totalorder %s26, 1
      %p123 = por %p121, %p122
      %p124 = scmp.ne.s32.totalorder %s116, %s119
      %p125 = scmp.eq.s32.totalorder %s26, 0
      %p126 = por %p124, %p125
      %p127 = scmp.ne.s32.totalorder %s116, %s119
      %p128 = scmp.eq.s32.totalorder %s31, 1
      %p129 = por %p127, %p128
      %p130 = scmp.ne.s32.totalorder %s119, %s120
      %p131 = scmp.eq.s32.totalorder %s31, 0
      %p132 = por %p130, %p131
      %p133 = scmp.ne.s32.totalorder %s119, %s120
      %p134 = scmp.eq.s32.totalorder %s32, 1
      %p135 = por %p133, %p134
      %p137 = scmp.ne.s32.totalorder %s120, %s136
      %p138 = scmp.eq.s32.totalorder %s32, 0
      %p139 = por %p137, %p138
      %s140 = ssub.s32 %s34, %s41
      %p141 = scmp.eq.s32.totalorder %s140, 0
      %s143 = sadd.s32 %s142, 1
      %s144 = scalar_select %p141, %s142, %s143
      %p147 = pneg %p141
      %p148 = scmp.eq.s32.totalorder %s26, 1
      %p149 = por %p147, %p148
      %p150 = scmp.ne.s32.totalorder %s142, %s145
      %p151 = scmp.eq.s32.totalorder %s26, 0
      %p152 = por %p150, %p151
      %p153 = scmp.ne.s32.totalorder %s142, %s145
      %p154 = scmp.eq.s32.totalorder %s31, 1
      %p155 = por %p153, %p154
      %p156 = scmp.ne.s32.totalorder %s145, %s146
      %p157 = scmp.eq.s32.totalorder %s31, 0
      %p158 = por %p156, %p157
      %p159 = scmp.ne.s32.totalorder %s145, %s146
      %p160 = scmp.eq.s32.totalorder %s32, 1
      %p161 = por %p159, %p160
      %p163 = scmp.ne.s32.totalorder %s146, %s162
      %p164 = scmp.eq.s32.totalorder %s32, 0
      %p165 = por %p163, %p164
      %s166 = ssub.s32 %s34, %s41
      %p167 = scmp.eq.s32.totalorder %s166, 0
      %s169 = sadd.s32 %s168, 1
      %s170 = scalar_select %p167, %s168, %s169
      %p173 = pneg %p167
      %p174 = scmp.eq.s32.totalorder %s26, 1
      %p175 = por %p173, %p174
      %p176 = scmp.ne.s32.totalorder %s168, %s171
      %p177 = scmp.eq.s32.totalorder %s26, 0
      %p178 = por %p176, %p177
      %p179 = scmp.ne.s32.totalorder %s168, %s171
      %p180 = scmp.eq.s32.totalorder %s31, 1
      %p181 = por %p179, %p180
      %p182 = scmp.ne.s32.totalorder %s171, %s172
      %p183 = scmp.eq.s32.totalorder %s31, 0
      %p184 = por %p182, %p183
      %p185 = scmp.ne.s32.totalorder %s171, %s172
      %p186 = scmp.eq.s32.totalorder %s32, 1
      %p187 = por %p185, %p186
      %p189 = scmp.ne.s32.totalorder %s172, %s188
      %p190 = scmp.eq.s32.totalorder %s32, 0
      %p191 = por %p189, %p190
      %s192 = ssub.s32 %s34, %s41
      %p193 = scmp.eq.s32.totalorder %s192, 0
      %s195 = sadd.s32 %s194, 1
      %s196 = scalar_select %p193, %s194, %s195
      %p199 = pneg %p193
      %p200 = scmp.eq.s32.totalorder %s26, 1
      %p201 = por %p199, %p200
      %p202 = scmp.ne.s32.totalorder %s194, %s197
      %p203 = scmp.eq.s32.totalorder %s26, 0
      %p204 = por %p202, %p203
      %p205 = scmp.ne.s32.totalorder %s194, %s197
      %p206 = scmp.eq.s32.totalorder %s31, 1
      %p207 = por %p205, %p206
      %p208 = scmp.ne.s32.totalorder %s197, %s198
      %p209 = scmp.eq.s32.totalorder %s31, 0
      %p210 = por %p208, %p209
      %p211 = scmp.ne.s32.totalorder %s197, %s198
      %p212 = scmp.eq.s32.totalorder %s32, 1
      %p213 = por %p211, %p212
      %p215 = scmp.ne.s32.totalorder %s198, %s214
      %p216 = scmp.eq.s32.totalorder %s32, 0
      %p217 = por %p215, %p216
      %s218 = ssub.s32 %s34, %s41
      %p219 = scmp.eq.s32.totalorder %s218, 0
      %s221 = sadd.s32 %s220, 1
      %s222 = scalar_select %p219, %s220, %s221
      %p225 = pneg %p219
      %p226 = scmp.eq.s32.totalorder %s26, 1
      %p227 = por %p225, %p226
      %p228 = scmp.ne.s32.totalorder %s220, %s223
      %p229 = scmp.eq.s32.totalorder %s26, 0
      %p230 = por %p228, %p229
      %p231 = scmp.ne.s32.totalorder %s220, %s223
      %p232 = scmp.eq.s32.totalorder %s31, 1
      %p233 = por %p231, %p232
      %p234 = scmp.ne.s32.totalorder %s223, %s224
      %p235 = scmp.eq.s32.totalorder %s31, 0
      %p236 = por %p234, %p235
      %p237 = scmp.ne.s32.totalorder %s223, %s224
      %p238 = scmp.eq.s32.totalorder %s32, 1
      %p239 = por %p237, %p238
      %p241 = scmp.ne.s32.totalorder %s224, %s240
      %p242 = scmp.eq.s32.totalorder %s32, 0
      %p243 = por %p241, %p242
      %s245 = sadd.s32 %s244, 1
      %p248 = scmp.eq.s32.totalorder %s26, 1
      %p249 = scmp.ne.s32.totalorder %s244, %s246
      %p250 = scmp.eq.s32.totalorder %s26, 0
      %p251 = por %p249, %p250
      %p252 = scmp.ne.s32.totalorder %s244, %s246
      %p253 = scmp.eq.s32.totalorder %s31, 1
      %p254 = por %p252, %p253
      %p255 = scmp.ne.s32.totalorder %s246, %s247
      %p256 = scmp.eq.s32.totalorder %s31, 0
      %p257 = por %p255, %p256
      %p258 = scmp.ne.s32.totalorder %s246, %s247
      %p259 = scmp.eq.s32.totalorder %s32, 1
      %p260 = por %p258, %p259
      %p262 = scmp.ne.s32.totalorder %s247, %s261
      %p263 = scmp.eq.s32.totalorder %s32, 0
      %p264 = por %p262, %p263
      %s266 = sadd.s32 %s265, 1
      %p269 = scmp.eq.s32.totalorder %s26, 1
      %p270 = scmp.ne.s32.totalorder %s265, %s267
      %p271 = scmp.eq.s32.totalorder %s26, 0
      %p272 = por %p270, %p271
      %p273 = scmp.ne.s32.totalorder %s265, %s267
      %p274 = scmp.eq.s32.totalorder %s31, 1
      %p275 = por %p273, %p274
      %p276 = scmp.ne.s32.totalorder %s267, %s268
      %p277 = scmp.eq.s32.totalorder %s31, 0
      %p278 = por %p276, %p277
      %p279 = scmp.ne.s32.totalorder %s267, %s268
      %p280 = scmp.eq.s32.totalorder %s32, 1
      %p281 = por %p279, %p280
      %p283 = scmp.ne.s32.totalorder %s268, %s282
      %p284 = scmp.eq.s32.totalorder %s32, 0
      %p285 = por %p283, %p284
      %s287 = sadd.s32 %s286, 1
      %p290 = scmp.eq.s32.totalorder %s26, 1
      %p291 = scmp.ne.s32.totalorder %s286, %s288
      %p292 = scmp.eq.s32.totalorder %s26, 0
      %p293 = por %p291, %p292
      %p294 = scmp.ne.s32.totalorder %s286, %s288
      %p295 = scmp.eq.s32.totalorder %s31, 1
      %p296 = por %p294, %p295
      %p297 = scmp.ne.s32.totalorder %s288, %s289
      %p298 = scmp.eq.s32.totalorder %s31, 0
      %p299 = por %p297, %p298
      %p300 = scmp.ne.s32.totalorder %s288, %s289
      %p301 = scmp.eq.s32.totalorder %s32, 1
      %p302 = por %p300, %p301
      %p304 = scmp.ne.s32.totalorder %s289, %s303
      %p305 = scmp.eq.s32.totalorder %s32, 0
      %p306 = por %p304, %p305
      %s308 = sadd.s32 %s307, 1
      %p311 = scmp.eq.s32.totalorder %s26, 1
      %p312 = scmp.ne.s32.totalorder %s307, %s309
      %p313 = scmp.eq.s32.totalorder %s26, 0
      %p314 = por %p312, %p313
      %p315 = scmp.ne.s32.totalorder %s307, %s309
      %p316 = scmp.eq.s32.totalorder %s31, 1
      %p317 = por %p315, %p316
      %p318 = scmp.ne.s32.totalorder %s309, %s310
      %p319 = scmp.eq.s32.totalorder %s31, 0
      %p320 = por %p318, %p319
      %p321 = scmp.ne.s32.totalorder %s309, %s310
      %p322 = scmp.eq.s32.totalorder %s32, 1
      %p323 = por %p321, %p322
      %p325 = scmp.ne.s32.totalorder %s310, %s324
      %p326 = scmp.eq.s32.totalorder %s32, 0
      %p327 = por %p325, %p326
      %s328 = ssub.s32 %s33, %s45
      %p329 = scmp.eq.s32.totalorder %s328, 0
      %s331 = sadd.s32 %s330, 1
      %s332 = scalar_select %p329, %s330, %s331
      %p335 = pneg %p329
      %p336 = scmp.eq.s32.totalorder %s26, 1
      %p337 = por %p335, %p336
      %p338 = scmp.ne.s32.totalorder %s330, %s333
      %p339 = scmp.eq.s32.totalorder %s26, 0
      %p340 = por %p338, %p339
      %p341 = scmp.ne.s32.totalorder %s330, %s333
      %p342 = scmp.eq.s32.totalorder %s31, 1
      %p343 = por %p341, %p342
      %p344 = scmp.ne.s32.totalorder %s333, %s334
      %p345 = scmp.eq.s32.totalorder %s31, 0
      %p346 = por %p344, %p345
      %p347 = scmp.ne.s32.totalorder %s333, %s334
      %p348 = scmp.eq.s32.totalorder %s32, 1
      %p349 = por %p347, %p348
      %p351 = scmp.ne.s32.totalorder %s334, %s350
      %p352 = scmp.eq.s32.totalorder %s32, 0
      %p353 = por %p351, %p352
      %p354 = scmp.le.s32.totalorder 1, %s26
      %p355 = scmp.lt.s32.totalorder %s26, 3
      %p356 = pnand %p354, %p355
      %p357 = pneg %p356
      // Predicated region
      $region9: #{tpu_custom_call.1} parent=5 // pred_check
        _
      $region10: #{tpu_custom_call.1} parent=5 // pred_check_branch
        %359 = sbr.rel (%p356) target = $region12
      $region11: #{tpu_custom_call.1} parent=5 // pred_region
        %s360 = ssub.s32 %s26, 1
        // Predicated region
        $region13: #{tpu_custom_call.1} parent=11 // pred_check
          %p361 = pneg %p64
        $region14: #{tpu_custom_call.1} parent=11 // pred_check_branch
          %363 = sbr.rel (%p361) target = $region16
        $region15: #{tpu_custom_call.1} parent=11 // pred_region
          %s364 = smul.u32 2, %s35
          %p365 = scmp.lt.s32.totalorder %s364, 1
          %s366 = scalar_select %p365, %s364, 1
          %s367 = smul.addr %s366, 2
          %s368 = smul.addr %s367, 8
          %s369 = scalar_lea.vmem %s0, %s368
          %s370 = smul.u32 2, %s35
        $region16: #{tpu_custom_call.1} parent=11 // pred_fallthru
          _
        // Predicated region
        $region17: #{tpu_custom_call.1} parent=11 // pred_check
          %p371 = pneg %p85
        $region18: #{tpu_custom_call.1} parent=11 // pred_check_branch
          %373 = sbr.rel (%p371) target = $region20
        $region19: #{tpu_custom_call.1} parent=11 // pred_region
          _
        $region20: #{tpu_custom_call.1} parent=11 // pred_fallthru
          _
        // Predicated region
        $region21: #{tpu_custom_call.1} parent=11 // pred_check
          %p374 = pneg %p106
        $region22: #{tpu_custom_call.1} parent=11 // pred_check_branch
          %376 = sbr.rel (%p374) target = $region24
        $region23: #{tpu_custom_call.1} parent=11 // pred_region
          _
        $region24: #{tpu_custom_call.1} parent=11 // pred_fallthru
          _
        // Predicated region
        $region25: #{tpu_custom_call.1} parent=11 // pred_check
          %p377 = pneg %p257
        $region26: #{tpu_custom_call.1} parent=11 // pred_check_branch
          %379 = sbr.rel (%p377) target = $region28
        $region27: #{tpu_custom_call.1} parent=11 // pred_region
          %s381 = ssub.s32 2048, 2048
          %382 = vsyncadd [#allocation11], %s381
          %s383 = sshll.u32 [#allocation10], 4
          %s384 = int_to_ptr.vmem [resolvable:$true] %s383
          %389 = dma.hbm_to_vmem [thread:$0]  %s8, 2048, %s384, [#allocation11], 128, 128, 8
        $region28: #{tpu_custom_call.1} parent=11 // pred_fallthru
          _
        // Predicated region
        $region29: #{tpu_custom_call.1} parent=11 // pred_check
          %p390 = pneg %p278
        $region30: #{tpu_custom_call.1} parent=11 // pred_check_branch
          %392 = sbr.rel (%p390) target = $region32
        $region31: #{tpu_custom_call.1} parent=11 // pred_region
          _
        $region32: #{tpu_custom_call.1} parent=11 // pred_fallthru
          _
        // Predicated region
        $region33: #{tpu_custom_call.1} parent=11 // pred_check
          %p393 = pneg %p299
        $region34: #{tpu_custom_call.1} parent=11 // pred_check_branch
          %395 = sbr.rel (%p393) target = $region36
        $region35: #{tpu_custom_call.1} parent=11 // pred_region
          %s397 = ssub.s32 2048, 2048
          %398 = vsyncadd [#allocation11], %s397
          %s399 = sshll.u32 [#allocation12], 4
          %s400 = int_to_ptr.vmem [resolvable:$true] %s399
          %405 = dma.hbm_to_vmem [thread:$0]  %s10, 2048, %s400, [#allocation11], 128, 128, 8
        $region36: #{tpu_custom_call.1} parent=11 // pred_fallthru
          _
        // Predicated region
        $region37: #{tpu_custom_call.1} parent=11 // pred_check
          %p406 = pneg %p320
        $region38: #{tpu_custom_call.1} parent=11 // pred_check_branch
          %408 = sbr.rel (%p406) target = $region40
        $region39: #{tpu_custom_call.1} parent=11 // pred_region
          _
        $region40: #{tpu_custom_call.1} parent=11 // pred_fallthru
          _
      $region12: #{tpu_custom_call.1} parent=5 // pred_fallthru
        _
      %p409 = scmp.lt.s32.totalorder %s26, 2
      // Predicated region
      $region41: #{tpu_custom_call.1} parent=5 // pred_check
        %p410 = pneg %p409
      $region42: #{tpu_custom_call.1} parent=5 // pred_check_branch
        %412 = sbr.rel (%p410) target = $region44
      $region43: #{tpu_custom_call.1} parent=5 // pred_region
        // Predicated region
        $region45: #{tpu_custom_call.1} parent=43 // pred_check
          %p413 = pneg %p126
        $region46: #{tpu_custom_call.1} parent=43 // pred_check_branch
          %415 = sbr.rel (%p413) target = $region48
        $region47: #{tpu_custom_call.1} parent=43 // pred_region
          %s416 = sand.u32 %s116, 1
          %s417 = scalar_lea.sflag [#allocation5], %s416
          %s418 = sand.u32 %s116, 1
          %s419 = smul.addr %s418, 768
          %s420 = scalar_lea.vmem [#allocation4], %s419
          %s422 = ssub.s32 12288, 12288
          %423 = vsyncadd %s417, %s422
          %s424 = smul.addr %s34, 96
          %s425 = smul.addr %s424, 128
          %s426 = scalar_lea.hbm %s3, %s425
          %s427 = sshll.u32 %s420, 4
          %s428 = int_to_ptr.vmem [resolvable:$true] %s427
          %433 = dma.hbm_to_vmem [thread:$0]  %s426, 12288, %s428, %s417, 256, 256, 16
        $region48: #{tpu_custom_call.1} parent=43 // pred_fallthru
          _
        // Predicated region
        $region49: #{tpu_custom_call.1} parent=43 // pred_check
          %p434 = pneg %p152
        $region50: #{tpu_custom_call.1} parent=43 // pred_check_branch
          %436 = sbr.rel (%p434) target = $region52
        $region51: #{tpu_custom_call.1} parent=43 // pred_region
          %s437 = sand.u32 %s26, 1
          %s438 = scalar_lea.sflag [#allocation8], %s437
          %s439 = sand.u32 %s142, 1
          %s440 = smul.addr %s439, 768
          %s441 = scalar_lea.vmem [#allocation7], %s440
          %s443 = ssub.s32 12288, 12288
          %444 = vsyncadd %s438, %s443
          %s445 = smul.addr %s34, 96
          %s446 = smul.addr %s445, 128
          %s447 = scalar_lea.hbm %s4, %s446
          %s448 = sshll.u32 %s441, 4
          %s449 = int_to_ptr.vmem [resolvable:$true] %s448
          %454 = dma.hbm_to_vmem [thread:$0]  %s447, 12288, %s449, %s438, 256, 256, 16
        $region52: #{tpu_custom_call.1} parent=43 // pred_fallthru
          _
        // Predicated region
        $region53: #{tpu_custom_call.1} parent=43 // pred_check
          %p455 = pneg %p178
        $region54: #{tpu_custom_call.1} parent=43 // pred_check_branch
          %457 = sbr.rel (%p455) target = $region56
        $region55: #{tpu_custom_call.1} parent=43 // pred_region
          %p458 = scmp.lt.s32.totalorder %s34, 1
          %s459 = scalar_select %p458, %s34, 1
          %s460 = smul.addr %s459, 6
          %s461 = scalar_lea.vmem %s5, %s460
        $region56: #{tpu_custom_call.1} parent=43 // pred_fallthru
          _
        // Predicated region
        $region57: #{tpu_custom_call.1} parent=43 // pred_check
          %p462 = pneg %p204
        $region58: #{tpu_custom_call.1} parent=43 // pred_check_branch
          %464 = sbr.rel (%p462) target = $region60
        $region59: #{tpu_custom_call.1} parent=43 // pred_region
          %s465 = sand.u32 %s26, 1
          %s466 = scalar_lea.sflag [#allocation8], %s465
          %s467 = sand.u32 %s194, 1
          %s468 = smul.addr %s467, 768
          %s469 = scalar_lea.vmem [#allocation9], %s468
          %s471 = ssub.s32 12288, 12288
          %472 = vsyncadd %s466, %s471
          %s473 = smul.addr %s34, 96
          %s474 = smul.addr %s473, 128
          %s475 = scalar_lea.hbm %s6, %s474
          %s476 = sshll.u32 %s469, 4
          %s477 = int_to_ptr.vmem [resolvable:$true] %s476
          %482 = dma.hbm_to_vmem [thread:$0]  %s475, 12288, %s477, %s466, 256, 256, 16
        $region60: #{tpu_custom_call.1} parent=43 // pred_fallthru
          _
        // Predicated region
        $region61: #{tpu_custom_call.1} parent=43 // pred_check
          %p483 = pneg %p230
        $region62: #{tpu_custom_call.1} parent=43 // pred_check_branch
          %485 = sbr.rel (%p483) target = $region64
        $region63: #{tpu_custom_call.1} parent=43 // pred_region
          %p486 = scmp.lt.s32.totalorder %s34, 1
          %s487 = scalar_select %p486, %s34, 1
          %s488 = smul.addr %s487, 6
          %s489 = scalar_lea.vmem %s7, %s488
        $region64: #{tpu_custom_call.1} parent=43 // pred_fallthru
          _
      $region44: #{tpu_custom_call.1} parent=5 // pred_fallthru
        _
      %p490 = scmp.le.s32.totalorder 1, %s26
      %p491 = scmp.lt.s32.totalorder %s26, 3
      %p492 = pnand %p490, %p491
      %p493 = pneg %p492
      // Predicated region
      $region65: #{tpu_custom_call.1} parent=5 // pred_check
        _
      $region66: #{tpu_custom_call.1} parent=5 // pred_check_branch
        %495 = sbr.rel (%p492) target = $region68
      $region67: #{tpu_custom_call.1} parent=5 // pred_region
        %s496 = ssub.s32 %s26, 1
        %s497 = sand.u32 %s119, 1
        %s498 = scalar_lea.sflag [#allocation5], %s497
        %s499 = sand.u32 %s119, 1
        %s500 = smul.addr %s499, 768
        %s501 = scalar_lea.vmem [#allocation4], %s500
        // Predicated region
        $region69: #{tpu_custom_call.1} parent=67 // pred_check
          %p502 = pneg %p132
        $region70: #{tpu_custom_call.1} parent=67 // pred_check_branch
          %504 = sbr.rel (%p502) target = $region72
        $region71: #{tpu_custom_call.1} parent=67 // pred_region
          %505 = dma.done %s498, 12288
        $region72: #{tpu_custom_call.1} parent=67 // pred_fallthru
          _
        %s506 = sand.u32 %s31, 1
        %s507 = scalar_lea.sflag [#allocation8], %s506
        %s508 = sand.u32 %s145, 1
        %s509 = smul.addr %s508, 768
        %s510 = scalar_lea.vmem [#allocation7], %s509
        // Predicated region
        $region73: #{tpu_custom_call.1} parent=67 // pred_check
          %p511 = pneg %p158
        $region74: #{tpu_custom_call.1} parent=67 // pred_check_branch
          %513 = sbr.rel (%p511) target = $region76
        $region75: #{tpu_custom_call.1} parent=67 // pred_region
          %514 = dma.done %s507, 12288
        $region76: #{tpu_custom_call.1} parent=67 // pred_fallthru
          _
        %s515 = sand.u32 %s31, 1
        %s516 = scalar_lea.sflag [#allocation8], %s515
        %s517 = sand.u32 %s197, 1
        %s518 = smul.addr %s517, 768
        %s519 = scalar_lea.vmem [#allocation9], %s518
        // Predicated region
        $region77: #{tpu_custom_call.1} parent=67 // pred_check
          %p520 = pneg %p210
        $region78: #{tpu_custom_call.1} parent=67 // pred_check_branch
          %522 = sbr.rel (%p520) target = $region80
        $region79: #{tpu_custom_call.1} parent=67 // pred_region
          %523 = dma.done %s516, 12288
        $region80: #{tpu_custom_call.1} parent=67 // pred_fallthru
          _
        // Predicated region
        $region81: #{tpu_custom_call.1} parent=67 // pred_check
          %p524 = pneg %p257
        $region82: #{tpu_custom_call.1} parent=67 // pred_check_branch
          %526 = sbr.rel (%p524) target = $region84
        $region83: #{tpu_custom_call.1} parent=67 // pred_region
          %527 = dma.done [#allocation11], 2048
        $region84: #{tpu_custom_call.1} parent=67 // pred_fallthru
          _
        // Predicated region
        $region85: #{tpu_custom_call.1} parent=67 // pred_check
          %p528 = pneg %p299
        $region86: #{tpu_custom_call.1} parent=67 // pred_check_branch
          %530 = sbr.rel (%p528) target = $region88
        $region87: #{tpu_custom_call.1} parent=67 // pred_region
          %531 = dma.done [#allocation11], 2048
        $region88: #{tpu_custom_call.1} parent=67 // pred_fallthru
          _
        %s532 = smul.u32 2, %s35
        %p533 = scmp.lt.s32.totalorder %s532, 1
        %s534 = scalar_select %p533, %s532, 1
        %s535 = smul.addr %s534, 2
        %s536 = smul.addr %s535, 8
        %s537 = scalar_lea.vmem %s0, %s536
        %p538 = pneg %p64
        %p539 = pneg %p61
        %p540 = pneg %p85
        %p541 = pneg %p82
        %p542 = pneg %p106
        %p543 = pneg %p103
        %s544 = sand.u32 %s119, 1
        %s545 = scalar_lea.sflag [#allocation5], %s544
        %s546 = sand.u32 %s119, 1
        %s547 = smul.addr %s546, 768
        %s548 = scalar_lea.vmem [#allocation4], %s547
        %p549 = pneg %p132
        %p550 = pneg %p129
        %s551 = sand.u32 %s31, 1
        %s552 = scalar_lea.sflag [#allocation8], %s551
        %s553 = sand.u32 %s145, 1
        %s554 = smul.addr %s553, 768
        %s555 = scalar_lea.vmem [#allocation7], %s554
        %p556 = pneg %p158
        %p557 = pneg %p155
        %p558 = scmp.lt.s32.totalorder %s36, 1
        %s559 = scalar_select %p558, %s36, 1
        %s560 = smul.addr %s559, 6
        %s561 = scalar_lea.vmem %s5, %s560
        %p562 = pneg %p184
        %p563 = pneg %p181
        %s564 = sand.u32 %s31, 1
        %s565 = scalar_lea.sflag [#allocation8], %s564
        %s566 = sand.u32 %s197, 1
        %s567 = smul.addr %s566, 768
        %s568 = scalar_lea.vmem [#allocation9], %s567
        %p569 = pneg %p210
        %p570 = pneg %p207
        %p571 = scmp.lt.s32.totalorder %s36, 1
        %s572 = scalar_select %p571, %s36, 1
        %s573 = smul.addr %s572, 6
        %s574 = scalar_lea.vmem %s7, %s573
        %p575 = pneg %p236
        %p576 = pneg %p233
        %p577 = pneg %p257
        %p578 = pneg %p254
        %p579 = pneg %p278
        %p580 = pneg %p275
        %p581 = pneg %p299
        %p582 = pneg %p296
        %p583 = pneg %p320
        %p584 = pneg %p317
        %p585 = pneg %p346
        %p586 = pneg %p343
        %s587 = smul.u32 2, %s35
        %p588 = scmp.lt.s32.totalorder %s587, 1
        %s589 = scalar_select %p588, %s587, 1
        %s590 = smul.addr %s589, 2
        %s591 = smul.addr %s590, 8
        %s592 = scalar_lea.vmem %s0, %s591
        %s593 = smul.u32 2, %s35
        %p594 = scmp.lt.s32.totalorder %s36, 1
        %s595 = scalar_select %p594, %s36, 1
        %s596 = smul.addr %s595, 6
        %s597 = scalar_lea.vmem %s5, %s596
        %p598 = scmp.lt.s32.totalorder %s36, 1
        %s599 = scalar_select %p598, %s36, 1
        %s600 = smul.addr %s599, 6
        %s601 = scalar_lea.vmem %s7, %s600
        %s602 = smul.u32 2, %s35
        %p603 = scmp.eq.s32.totalorder %s36, 0
        // Predicated region
        $region89: #{tpu_custom_call.1} parent=67 // pred_check
          %p604 = pneg %p603
        $region90: #{tpu_custom_call.1} parent=67 // pred_check_branch
          %606 = sbr.rel (%p604) target = $region92
        $region91: #{tpu_custom_call.1} parent=67 // pred_region
          %v607 = vld [vmem:[%s592] sm:$0xff]
          %v608 = vld [vmem:[%s592 + $0x8] sm:$0xff]
          %v609 = vld [vmem:[%s592 + $0x10] sm:$0xff]
          %v610 = vld [vmem:[%s592 + $0x18] sm:$0xff]
          %v611 = vld [vmem:[%s1] sm:$0xff]
          %v612 = vld [vmem:[%s2] sm:$0x1]
          %v614 = vlaneseq
          %v615 = vshrl.u32 %v614, 7
          %v616 = vsub.s32 0, %v615
          %v617 = vrot.slane %v612, %v616
          %vm619 = vcmask 64512
          %v621 = vsel %vm619, %v607, 0
          %v624 = vsel %vm619, %v608, 0
          %v627 = vsel %vm619, %v609, 0
          %v630 = vsel %vm619, %v610, 0
          %632 = vmatprep.subr.mxu0 0.0
          %633 = vmatpush1.msra.mxu0 %v611
          %634 = vmatprep.subr.mxu0 0.0
          %635 = vmatpush1.msra.mxu0 0.0
          %636 = vmatprep.subr.mxu0 0.0
          %637 = vmatpush1.msra.mxu0 0.0
          %638 = vmatprep.subr.mxu0 0.0
          %639 = vmatpush1.msra.mxu0 0.0
          %640 = vmatprep.subr.mxu0 0.0
          %641 = vmatpush1.msra.mxu0 0.0
          %642 = vmatprep.subr.mxu0 0.0
          %643 = vmatpush1.msra.mxu0 0.0
          %644 = vmatprep.subr.mxu0 0.0
          %645 = vmatpush1.msra.mxu0 0.0
          %646 = vmatprep.subr.mxu0 0.0
          %647 = vmatpush1.msra.mxu0 0.0
          %648 = vmatprep.subr.mxu0 0.0
          %649 = vmatpush1.msra.mxu0 0.0
          %650 = vmatprep.subr.mxu0 0.0
          %651 = vmatpush1.msra.mxu0 0.0
          %652 = vmatprep.subr.mxu0 0.0
          %653 = vmatpush1.msra.mxu0 0.0
          %654 = vmatprep.subr.mxu0 0.0
          %655 = vmatpush1.msra.mxu0 0.0
          %656 = vmatprep.subr.mxu0 0.0
          %657 = vmatpush1.msra.mxu0 0.0
          %658 = vmatprep.subr.mxu0 0.0
          %659 = vmatpush1.msra.mxu0 0.0
          %660 = vmatprep.subr.mxu0 0.0
          %661 = vmatpush1.msra.mxu0 0.0
          %662 = vmatprep.subr.mxu0 0.0
          %663 = vmatpush1.msra.mxu0 0.0
          %664 = vmatprep.subr.mxu0 0.0
          %665 = vmatpush1.msra.mxu0 0.0
          %666 = vmatprep.subr.mxu0 0.0
          %667 = vmatpush1.msra.mxu0 0.0
          %668 = vmatprep.subr.mxu0 0.0
          %669 = vmatpush1.msra.mxu0 0.0
          %670 = vmatprep.subr.mxu0 0.0
          %671 = vmatpush1.msra.mxu0 0.0
          %672 = vmatprep.subr.mxu0 0.0
          %673 = vmatpush1.msra.mxu0 0.0
          %674 = vmatprep.subr.mxu0 0.0
          %675 = vmatpush1.msra.mxu0 0.0
          %676 = vmatprep.subr.mxu0 0.0
          %677 = vmatpush1.msra.mxu0 0.0
          %678 = vmatprep.subr.mxu0 0.0
          %679 = vmatpush1.msra.mxu0 0.0
          %680 = vmatprep.subr.mxu0 0.0
          %681 = vmatpush1.msra.mxu0 0.0
          %682 = vmatprep.subr.mxu0 0.0
          %683 = vmatpush1.msra.mxu0 0.0
          %684 = vmatprep.subr.mxu0 0.0
          %685 = vmatpush1.msra.mxu0 0.0
          %686 = vmatprep.subr.mxu0 0.0
          %687 = vmatpush1.msra.mxu0 0.0
          %688 = vmatprep.subr.mxu0 0.0
          %689 = vmatpush1.msra.mxu0 0.0
          %690 = vmatprep.subr.mxu0 0.0
          %691 = vmatpush1.msra.mxu0 0.0
          %692 = vmatprep.subr.mxu0 0.0
          %693 = vmatpush1.msra.mxu0 0.0
          %694 = vmatprep.subr.mxu0 0.0
          %695 = vmatpush1.msra.mxu0 0.0
          %696 = vmatprep.mubr.f32.mxu0 0.0
          %697 = vmatmul.mubr.f32.gmra.mrb[0].mxu0 %v621
          %v698 = vpop.f32.mrb[0].mxu0
          %v699 = vadd.f32 %v617, %v698
          %v700 = vpop.f32.mrb[0].mxu0
          %701 = vmatprep.mubr.f32.mxu0 0.0
          %702 = vmatmul.mubr.f32.gmra.mrb[0].mxu0 %v624
          %v703 = vpop.f32.mrb[0].mxu0
          %v704 = vadd.f32 %v617, %v703
          %v705 = vpop.f32.mrb[0].mxu0
          %706 = vmatprep.mubr.f32.mxu0 0.0
          %707 = vmatmul.mubr.f32.gmra.mrb[0].mxu0 %v627
          %v708 = vpop.f32.mrb[0].mxu0
          %v709 = vadd.f32 %v617, %v708
          %v710 = vpop.f32.mrb[0].mxu0
          %711 = vmatprep.mubr.f32.mxu0 0.0
          %712 = vmatmul.mubr.f32.gmra.mrb[0].mxu0 %v630
          %v713 = vpop.f32.mrb[0].mxu0
          %v714 = vadd.f32 %v617, %v713
          %v715 = vpop.f32.mrb[0].mxu0
          %716 = vdwg.mxu0
          %717 = vst [vmem:[#allocation2] sm:$0xff] %v699
          %718 = vst [vmem:[#allocation2 + $0x8] sm:$0xff] %v704
          %719 = vst [vmem:[#allocation2 + $0x10] sm:$0xff] %v709
          %720 = vst [vmem:[#allocation2 + $0x18] sm:$0xff] %v714
          %721 = vst [vmem:[#allocation3] sm:$0xff] 0.0
          %722 = vst [vmem:[#allocation3 + $0x8] sm:$0xff] 0.0
          %723 = vst [vmem:[#allocation3 + $0x10] sm:$0xff] 0.0
          %724 = vst [vmem:[#allocation3 + $0x18] sm:$0xff] 0.0
        $region92: #{tpu_custom_call.1} parent=67 // pred_fallthru
          _
        %v725 = vlaneseq
        %v726 = vshrl.u32 %v725, 7
        %v727 = vadd.s32 %v726, 8
        %v728 = vadd.s32 %v726, 16
        %v729 = vadd.s32 %v726, 24
        %vm730 = vcmp.lt.s32.totalorder %v726, 0
        %v731 = vsub.s32 0, %v726
        %v732 = vsel %vm730, %v731, %v726
        %v733 = vshrl.u32 %v732, 4
        %v734 = vand.u32 %v732, 15
        %v735 = vsub.s32 0, %v734
        %v736 = vsel %vm730, %v735, %v734
        %vm737 = vcmp.lt.s32.totalorder %v727, 0
        %v738 = vsub.s32 0, %v727
        %v739 = vsel %vm737, %v738, %v727
        %v740 = vshrl.u32 %v739, 4
        %v741 = vand.u32 %v739, 15
        %v742 = vsub.s32 0, %v741
        %v743 = vsel %vm737, %v742, %v741
        %vm744 = vcmp.lt.s32.totalorder %v728, 0
        %v745 = vsub.s32 0, %v728
        %v746 = vsel %vm744, %v745, %v728
        %v747 = vshrl.u32 %v746, 4
        %v748 = vand.u32 %v746, 15
        %v749 = vsub.s32 0, %v748
        %v750 = vsel %vm744, %v749, %v748
        %vm751 = vcmp.lt.s32.totalorder %v729, 0
        %v752 = vsub.s32 0, %v729
        %v753 = vsel %vm751, %v752, %v729
        %v754 = vshrl.u32 %v753, 4
        %v755 = vand.u32 %v753, 15
        %v756 = vsub.s32 0, %v755
        %v757 = vsel %vm751, %v756, %v755
        %vm758 = vcmp.ne.s32.totalorder %v736, 0
        %vm759 = vcmp.ne.s32.totalorder %v743, 0
        %vm760 = vcmp.ne.s32.totalorder %v750, 0
        %vm761 = vcmp.ne.s32.totalorder %v757, 0
        %vm762 = vcmp.lt.s32.totalorder %v736, 0
        %vm763 = vcmp.lt.s32.totalorder %v743, 0
        %vm764 = vcmp.lt.s32.totalorder %v750, 0
        %vm765 = vcmp.lt.s32.totalorder %v757, 0
        %vm766 = vmand %vm762, %vm758
        %vm767 = vmand %vm763, %vm759
        %vm768 = vmand %vm764, %vm760
        %vm769 = vmand %vm765, %vm761
        %v770 = vadd.s32 %v736, 16
        %v771 = vadd.s32 %v743, 16
        %v772 = vadd.s32 %v750, 16
        %v773 = vadd.s32 %v757, 16
        %v774 = vsel %vm766, %v770, %v736
        %v775 = vsel %vm767, %v771, %v743
        %v776 = vsel %vm768, %v772, %v750
        %v777 = vsel %vm769, %v773, %v757
        %v778 = vld [vmem:[#allocation2] sm:$0xff]
        %v779 = vld [vmem:[#allocation2 + $0x8] sm:$0xff]
        %v780 = vld [vmem:[#allocation2 + $0x10] sm:$0xff]
        %v781 = vld [vmem:[#allocation2 + $0x18] sm:$0xff]
        %v782 = vld [vmem:[#allocation3] sm:$0xff]
        %v783 = vld [vmem:[#allocation3 + $0x8] sm:$0xff]
        %v784 = vld [vmem:[#allocation3 + $0x10] sm:$0xff]
        %v785 = vld [vmem:[#allocation3 + $0x18] sm:$0xff]
        %vm786 = vcmp.ge.s32.totalorder %v774, 1
        %vm787 = vcmp.ge.s32.totalorder %v775, 1
        %vm788 = vcmp.ge.s32.totalorder %v776, 1
        %vm789 = vcmp.ge.s32.totalorder %v777, 1
        %v790 = vrot.slane %v778, 7
        %v791 = vrot.slane %v779, 7
        %v792 = vrot.slane %v780, 7
        %v793 = vrot.slane %v781, 7
        %vm794 = vcmp.lt.s32.totalorder %v726, 1
        %v795 = vsel %vm794, %v792, %v793
        %v796 = vsel %vm794, %v791, %v792
        %v797 = vsel %vm794, %v790, %v791
        %v798 = vsel %vm794, %v793, %v790
        %v799 = vsel %vm786, %v798, 0.0
        %v800 = vsel %vm787, %v797, 0.0
        %v801 = vsel %vm788, %v796, 0.0
        %v802 = vsel %vm789, %v795, 0.0
        %v803 = vld [vmem:[%s501] sm:$0xff]
        %v804 = vld [vmem:[%s501 + $0x8] sm:$0xff]
        %v805 = vld [vmem:[%s501 + $0x10] sm:$0xff]
        %v806 = vld [vmem:[%s501 + $0x18] sm:$0xff]
        %v807 = vld [vmem:[%s501 + $0x20] sm:$0xff]
        %v808 = vld [vmem:[%s501 + $0x28] sm:$0xff]
        %v809 = vld [vmem:[%s501 + $0x30] sm:$0xff]
        %v810 = vld [vmem:[%s501 + $0x38] sm:$0xff]
        %v811 = vld [vmem:[%s501 + $0x40] sm:$0xff]
        %v812 = vld [vmem:[%s501 + $0x48] sm:$0xff]
        %v813 = vld [vmem:[%s501 + $0x50] sm:$0xff]
        %v814 = vld [vmem:[%s501 + $0x58] sm:$0xff]
        %v815 = vld [vmem:[%s501 + $0x60] sm:$0xff]
        %v816 = vld [vmem:[%s501 + $0x68] sm:$0xff]
        %v817 = vld [vmem:[%s501 + $0x70] sm:$0xff]
        %v818 = vld [vmem:[%s501 + $0x78] sm:$0xff]
        %v819 = vld [vmem:[%s501 + $0x80] sm:$0xff]
        %v820 = vld [vmem:[%s501 + $0x88] sm:$0xff]
        %v821 = vld [vmem:[%s501 + $0x90] sm:$0xff]
        %v822 = vld [vmem:[%s501 + $0x98] sm:$0xff]
        %v823 = vld [vmem:[%s501 + $0xa0] sm:$0xff]
        %v824 = vld [vmem:[%s501 + $0xa8] sm:$0xff]
        %v825 = vld [vmem:[%s501 + $0xb0] sm:$0xff]
        %v826 = vld [vmem:[%s501 + $0xb8] sm:$0xff]
        %v827 = vld [vmem:[%s501 + $0xc0] sm:$0xff]
        %v828 = vld [vmem:[%s501 + $0xc8] sm:$0xff]
        %v829 = vld [vmem:[%s501 + $0xd0] sm:$0xff]
        %v830 = vld [vmem:[%s501 + $0xd8] sm:$0xff]
        %v831 = vld [vmem:[%s501 + $0xe0] sm:$0xff]
        %v832 = vld [vmem:[%s501 + $0xe8] sm:$0xff]
        %v833 = vld [vmem:[%s501 + $0xf0] sm:$0xff]
        %v834 = vld [vmem:[%s501 + $0xf8] sm:$0xff]
        %v835 = vld [vmem:[%s510] sm:$0xff]
        %v836 = vld [vmem:[%s510 + $0x8] sm:$0xff]
        %v837 = vld [vmem:[%s510 + $0x10] sm:$0xff]
        %v838 = vld [vmem:[%s510 + $0x18] sm:$0xff]
        %v839 = vld [vmem:[%s510 + $0x20] sm:$0xff]
        %v840 = vld [vmem:[%s510 + $0x28] sm:$0xff]
        %v841 = vld [vmem:[%s510 + $0x30] sm:$0xff]
        %v842 = vld [vmem:[%s510 + $0x38] sm:$0xff]
        %v843 = vld [vmem:[%s510 + $0x40] sm:$0xff]
        %v844 = vld [vmem:[%s510 + $0x48] sm:$0xff]
        %v845 = vld [vmem:[%s510 + $0x50] sm:$0xff]
        %v846 = vld [vmem:[%s510 + $0x58] sm:$0xff]
        %v847 = vld [vmem:[%s510 + $0x60] sm:$0xff]
        %v848 = vld [vmem:[%s510 + $0x68] sm:$0xff]
        %v849 = vld [vmem:[%s510 + $0x70] sm:$0xff]
        %v850 = vld [vmem:[%s510 + $0x78] sm:$0xff]
        %v851 = vld [vmem:[%s510 + $0x80] sm:$0xff]
        %v852 = vld [vmem:[%s510 + $0x88] sm:$0xff]
        %v853 = vld [vmem:[%s510 + $0x90] sm:$0xff]
        %v854 = vld [vmem:[%s510 + $0x98] sm:$0xff]
        %v855 = vld [vmem:[%s510 + $0xa0] sm:$0xff]
        %v856 = vld [vmem:[%s510 + $0xa8] sm:$0xff]
        %v857 = vld [vmem:[%s510 + $0xb0] sm:$0xff]
        %v858 = vld [vmem:[%s510 + $0xb8] sm:$0xff]
        %v859 = vld [vmem:[%s510 + $0xc0] sm:$0xff]
        %v860 = vld [vmem:[%s510 + $0xc8] sm:$0xff]
        %v861 = vld [vmem:[%s510 + $0xd0] sm:$0xff]
        %v862 = vld [vmem:[%s510 + $0xd8] sm:$0xff]
        %v863 = vld [vmem:[%s510 + $0xe0] sm:$0xff]
        %v864 = vld [vmem:[%s510 + $0xe8] sm:$0xff]
        %v865 = vld [vmem:[%s510 + $0xf0] sm:$0xff]
        %v866 = vld [vmem:[%s510 + $0xf8] sm:$0xff]
        %867 = vmatprep.subr.mxu0 %v836
        %868 = vmatpush1.msra.mxu0 %v835
        %869 = vmatprep.subr.mxu0 %v838
        %870 = vmatpush1.msra.mxu0 %v837
        %871 = vmatprep.subr.mxu0 %v840
        %872 = vmatpush1.msra.mxu0 %v839
        %873 = vmatprep.subr.mxu0 %v842
        %874 = vmatpush1.msra.mxu0 %v841
        %875 = vmatprep.subr.mxu0 %v844
        %876 = vmatpush1.msra.mxu0 %v843
        %877 = vmatprep.subr.mxu0 %v846
        %878 = vmatpush1.msra.mxu0 %v845
        %879 = vmatprep.subr.mxu0 %v848
        %880 = vmatpush1.msra.mxu0 %v847
        %881 = vmatprep.subr.mxu0 %v850
        %882 = vmatpush1.msra.mxu0 %v849
        %883 = vmatprep.subr.mxu0 %v852
        %884 = vmatpush1.msra.mxu0 %v851
        %885 = vmatprep.subr.mxu0 %v854
        %886 = vmatpush1.msra.mxu0 %v853
        %887 = vmatprep.subr.mxu0 %v856
        %888 = vmatpush1.msra.mxu0 %v855
        %889 = vmatprep.subr.mxu0 %v858
        %890 = vmatpush1.msra.mxu0 %v857
        %891 = vmatprep.subr.mxu0 %v860
        %892 = vmatpush1.msra.mxu0 %v859
        %893 = vmatprep.subr.mxu0 %v862
        %894 = vmatpush1.msra.mxu0 %v861
        %895 = vmatprep.subr.mxu0 %v864
        %896 = vmatpush1.msra.mxu0 %v863
        %897 = vmatprep.subr.mxu0 %v866
        %898 = vmatpush1.msra.mxu0 %v865
        %899 = vmatprep.subr.mxu0 0.0
        %900 = vmatpush1.msra.mxu0 0.0
        %901 = vmatprep.subr.mxu0 0.0
        %902 = vmatpush1.msra.mxu0 0.0
        %903 = vmatprep.subr.mxu0 0.0
        %904 = vmatpush1.msra.mxu0 0.0
        %905 = vmatprep.subr.mxu0 0.0
        %906 = vmatpush1.msra.mxu0 0.0
        %907 = vmatprep.subr.mxu0 0.0
        %908 = vmatpush1.msra.mxu0 0.0
        %909 = vmatprep.subr.mxu0 0.0
        %910 = vmatpush1.msra.mxu0 0.0
        %911 = vmatprep.subr.mxu0 0.0
        %912 = vmatpush1.msra.mxu0 0.0
        %913 = vmatprep.subr.mxu0 0.0
        %914 = vmatpush1.msra.mxu0 0.0
        %915 = vmatprep.subr.mxu0 0.0
        %916 = vmatpush1.msra.mxu0 0.0
        %917 = vmatprep.subr.mxu0 0.0
        %918 = vmatpush1.msra.mxu0 0.0
        %919 = vmatprep.subr.mxu0 0.0
        %920 = vmatpush1.msra.mxu0 0.0
        %921 = vmatprep.subr.mxu0 0.0
        %922 = vmatpush1.msra.mxu0 0.0
        %923 = vmatprep.subr.mxu0 0.0
        %924 = vmatpush1.msra.mxu0 0.0
        %925 = vmatprep.subr.mxu0 0.0
        %926 = vmatpush1.msra.mxu0 0.0
        %927 = vmatprep.subr.mxu0 0.0
        %928 = vmatpush1.msra.mxu0 0.0
        %929 = vmatprep.subr.mxu0 0.0
        %930 = vmatpush1.msra.mxu0 0.0
        %931 = vmatprep.mubr.f32.mxu0 0.0
        %932 = vmatmul.mubr.f32.gmra.mrb[0].mxu0 %v778
        %v933 = vpop.f32.mrb[0].mxu0
        %v934 = vadd.f32 0.0, %v933
        %v935 = vpop.f32.mrb[0].mxu0
        %v936 = vadd.f32 0.0, %v935
        %937 = vmatprep.mubr.f32.mxu0 0.0
        %938 = vmatmul.mubr.f32.gmra.mrb[0].mxu0 %v779
        %v939 = vpop.f32.mrb[0].mxu0
        %v940 = vadd.f32 0.0, %v939
        %v941 = vpop.f32.mrb[0].mxu0
        %v942 = vadd.f32 0.0, %v941
        %943 = vmatprep.mubr.f32.mxu0 0.0
        %944 = vmatmul.mubr.f32.gmra.mrb[0].mxu0 %v780
        %v945 = vpop.f32.mrb[0].mxu0
        %v946 = vadd.f32 0.0, %v945
        %v947 = vpop.f32.mrb[0].mxu0
        %v948 = vadd.f32 0.0, %v947
        %949 = vmatprep.mubr.f32.mxu0 0.0
        %950 = vmatmul.mubr.f32.gmra.mrb[0].mxu0 %v781
        %v951 = vpop.f32.mrb[0].mxu0
        %v952 = vadd.f32 0.0, %v951
        %v953 = vpop.f32.mrb[0].mxu0
        %v954 = vadd.f32 0.0, %v953
        %955 = vdwg.mxu0
        %956 = vmatprep.subr.mxu0 %v804
        %957 = vmatpush1.msra.mxu0 %v803
        %958 = vmatprep.subr.mxu0 %v806
        %959 = vmatpush1.msra.mxu0 %v805
        %960 = vmatprep.subr.mxu0 %v808
        %961 = vmatpush1.msra.mxu0 %v807
        %962 = vmatprep.subr.mxu0 %v810
        %963 = vmatpush1.msra.mxu0 %v809
        %964 = vmatprep.subr.mxu0 %v812
        %965 = vmatpush1.msra.mxu0 %v811
        %966 = vmatprep.subr.mxu0 %v814
        %967 = vmatpush1.msra.mxu0 %v813
        %968 = vmatprep.subr.mxu0 %v816
        %969 = vmatpush1.msra.mxu0 %v815
        %970 = vmatprep.subr.mxu0 %v818
        %971 = vmatpush1.msra.mxu0 %v817
        %972 = vmatprep.subr.mxu0 %v820
        %973 = vmatpush1.msra.mxu0 %v819
        %974 = vmatprep.subr.mxu0 %v822
        %975 = vmatpush1.msra.mxu0 %v821
        %976 = vmatprep.subr.mxu0 %v824
        %977 = vmatpush1.msra.mxu0 %v823
        %978 = vmatprep.subr.mxu0 %v826
        %979 = vmatpush1.msra.mxu0 %v825
        %980 = vmatprep.subr.mxu0 %v828
        %981 = vmatpush1.msra.mxu0 %v827
        %982 = vmatprep.subr.mxu0 %v830
        %983 = vmatpush1.msra.mxu0 %v829
        %984 = vmatprep.subr.mxu0 %v832
        %985 = vmatpush1.msra.mxu0 %v831
        %986 = vmatprep.subr.mxu0 %v834
        %987 = vmatpush1.msra.mxu0 %v833
        %988 = vmatprep.subr.mxu0 0.0
        %989 = vmatpush1.msra.mxu0 0.0
        %990 = vmatprep.subr.mxu0 0.0
        %991 = vmatpush1.msra.mxu0 0.0
        %992 = vmatprep.subr.mxu0 0.0
        %993 = vmatpush1.msra.mxu0 0.0
        %994 = vmatprep.subr.mxu0 0.0
        %995 = vmatpush1.msra.mxu0 0.0
        %996 = vmatprep.subr.mxu0 0.0
        %997 = vmatpush1.msra.mxu0 0.0
        %998 = vmatprep.subr.mxu0 0.0
        %999 = vmatpush1.msra.mxu0 0.0
        %1000 = vmatprep.subr.mxu0 0.0
        %1001 = vmatpush1.msra.mxu0 0.0
        %1002 = vmatprep.subr.mxu0 0.0
        %1003 = vmatpush1.msra.mxu0 0.0
        %1004 = vmatprep.subr.mxu0 0.0
        %1005 = vmatpush1.msra.mxu0 0.0
        %1006 = vmatprep.subr.mxu0 0.0
        %1007 = vmatpush1.msra.mxu0 0.0
        %1008 = vmatprep.subr.mxu0 0.0
        %1009 = vmatpush1.msra.mxu0 0.0
        %1010 = vmatprep.subr.mxu0 0.0
        %1011 = vmatpush1.msra.mxu0 0.0
        %1012 = vmatprep.subr.mxu0 0.0
        %1013 = vmatpush1.msra.mxu0 0.0
        %1014 = vmatprep.subr.mxu0 0.0
        %1015 = vmatpush1.msra.mxu0 0.0
        %1016 = vmatprep.subr.mxu0 0.0
        %1017 = vmatpush1.msra.mxu0 0.0
        %1018 = vmatprep.subr.mxu0 0.0
        %1019 = vmatpush1.msra.mxu0 0.0
        %1020 = vmatprep.mubr.f32.mxu0 0.0
        %1021 = vmatmul.mubr.f32.gmra.mrb[0].mxu0 %v799
        %v1022 = vpop.f32.mrb[0].mxu0
        %v1023 = vadd.f32 %v934, %v1022
        %v1024 = vpop.f32.mrb[0].mxu0
        %v1025 = vadd.f32 %v936, %v1024
        %1026 = vmatprep.mubr.f32.mxu0 0.0
        %1027 = vmatmul.mubr.f32.gmra.mrb[0].mxu0 %v800
        %v1028 = vpop.f32.mrb[0].mxu0
        %v1029 = vadd.f32 %v940, %v1028
        %v1030 = vpop.f32.mrb[0].mxu0
        %v1031 = vadd.f32 %v942, %v1030
        %1032 = vmatprep.mubr.f32.mxu0 0.0
        %1033 = vmatmul.mubr.f32.gmra.mrb[0].mxu0 %v801
        %v1034 = vpop.f32.mrb[0].mxu0
        %v1035 = vadd.f32 %v946, %v1034
        %v1036 = vpop.f32.mrb[0].mxu0
        %v1037 = vadd.f32 %v948, %v1036
        %1038 = vmatprep.mubr.f32.mxu0 0.0
        %1039 = vmatmul.mubr.f32.gmra.mrb[0].mxu0 %v802
        %v1040 = vpop.f32.mrb[0].mxu0
        %v1041 = vadd.f32 %v952, %v1040
        %v1042 = vpop.f32.mrb[0].mxu0
        %v1043 = vadd.f32 %v954, %v1042
        %1044 = vdwg.mxu0
        %v1045 = vld [vmem:[%s597] sm:$0x3]
        %v1047 = vlaneseq
        %v1048 = vshrl.u32 %v1047, 7
        %v1049 = vsub.s32 0, %v1048
        %v1050 = vrot.slane %v1045, %v1049
        %v1051 = vlaneseq
        %v1052 = vshrl.u32 %v1051, 7
        %v1053 = vsub.s32 1, %v1052
        %v1054 = vrot.slane %v1045, %v1053
        %v1057 = vadd.f32 %v1023, %v1050
        %v1058 = vadd.f32 %v1025, %v1054
        %v1059 = vadd.f32 %v1029, %v1050
        %v1060 = vadd.f32 %v1031, %v1054
        %v1061 = vadd.f32 %v1035, %v1050
        %v1062 = vadd.f32 %v1037, %v1054
        %v1063 = vadd.f32 %v1041, %v1050
        %v1064 = vadd.f32 %v1043, %v1054
        %v1065 = vtanh.pop %v1057
        %v1066 = vtanh.pop %v1059
        %v1067 = vtanh.pop %v1061
        %v1068 = vtanh.pop %v1063
        %v1069 = vxor.u32 %v1058, 2147483648
        %v1070 = vxor.u32 %v1060, 2147483648
        %v1071 = vxor.u32 %v1062, 2147483648
        %v1072 = vxor.u32 %v1064, 2147483648
        %v1073 = vmul.f32 %v1069, 1.442695
        %v1074 = vpow.pop %v1073
        %v1075 = vmul.f32 %v1070, 1.442695
        %v1076 = vpow.pop %v1075
        %v1077 = vmul.f32 %v1071, 1.442695
        %v1078 = vpow.pop %v1077
        %v1079 = vmul.f32 %v1072, 1.442695
        %v1080 = vpow.pop %v1079
        %v1081 = vadd.f32 %v1074, 1.0
        %v1082 = vadd.f32 %v1076, 1.0
        %v1083 = vadd.f32 %v1078, 1.0
        %v1084 = vadd.f32 %v1080, 1.0
        %v1085 = vrcp.pop %v1081
        %v1086 = vmul.f32 1.0, %v1085
        %v1087 = vrcp.pop %v1082
        %v1088 = vmul.f32 1.0, %v1087
        %v1089 = vrcp.pop %v1083
        %v1090 = vmul.f32 1.0, %v1089
        %v1091 = vrcp.pop %v1084
        %v1092 = vmul.f32 1.0, %v1091
        %v1093 = vmul.f32 %v1065, %v1086
        %v1094 = vmul.f32 %v1066, %v1088
        %v1095 = vmul.f32 %v1067, %v1090
        %v1096 = vmul.f32 %v1068, %v1092
        %v1097 = vld [vmem:[%s519] sm:$0xff]
        %v1098 = vld [vmem:[%s519 + $0x8] sm:$0xff]
        %v1099 = vld [vmem:[%s519 + $0x10] sm:$0xff]
        %v1100 = vld [vmem:[%s519 + $0x18] sm:$0xff]
        %v1101 = vld [vmem:[%s519 + $0x20] sm:$0xff]
        %v1102 = vld [vmem:[%s519 + $0x28] sm:$0xff]
        %v1103 = vld [vmem:[%s519 + $0x30] sm:$0xff]
        %v1104 = vld [vmem:[%s519 + $0x38] sm:$0xff]
        %v1105 = vld [vmem:[%s519 + $0x40] sm:$0xff]
        %v1106 = vld [vmem:[%s519 + $0x48] sm:$0xff]
        %v1107 = vld [vmem:[%s519 + $0x50] sm:$0xff]
        %v1108 = vld [vmem:[%s519 + $0x58] sm:$0xff]
        %v1109 = vld [vmem:[%s519 + $0x60] sm:$0xff]
        %v1110 = vld [vmem:[%s519 + $0x68] sm:$0xff]
        %v1111 = vld [vmem:[%s519 + $0x70] sm:$0xff]
        %v1112 = vld [vmem:[%s519 + $0x78] sm:$0xff]
        %v1113 = vld [vmem:[%s519 + $0x80] sm:$0xff]
        %v1114 = vld [vmem:[%s519 + $0x88] sm:$0xff]
        %v1115 = vld [vmem:[%s519 + $0x90] sm:$0xff]
        %v1116 = vld [vmem:[%s519 + $0x98] sm:$0xff]
        %v1117 = vld [vmem:[%s519 + $0xa0] sm:$0xff]
        %v1118 = vld [vmem:[%s519 + $0xa8] sm:$0xff]
        %v1119 = vld [vmem:[%s519 + $0xb0] sm:$0xff]
        %v1120 = vld [vmem:[%s519 + $0xb8] sm:$0xff]
        %v1121 = vld [vmem:[%s519 + $0xc0] sm:$0xff]
        %v1122 = vld [vmem:[%s519 + $0xc8] sm:$0xff]
        %v1123 = vld [vmem:[%s519 + $0xd0] sm:$0xff]
        %v1124 = vld [vmem:[%s519 + $0xd8] sm:$0xff]
        %v1125 = vld [vmem:[%s519 + $0xe0] sm:$0xff]
        %v1126 = vld [vmem:[%s519 + $0xe8] sm:$0xff]
        %v1127 = vld [vmem:[%s519 + $0xf0] sm:$0xff]
        %v1128 = vld [vmem:[%s519 + $0xf8] sm:$0xff]
        %v1129 = vld [vmem:[%s601] sm:$0x3]
        %v1131 = vlaneseq
        %v1132 = vshrl.u32 %v1131, 7
        %v1133 = vsub.s32 0, %v1132
        %v1134 = vrot.slane %v1129, %v1133
        %v1135 = vlaneseq
        %v1136 = vshrl.u32 %v1135, 7
        %v1137 = vsub.s32 1, %v1136
        %v1138 = vrot.slane %v1129, %v1137
        %1141 = vmatprep.subr.mxu0 %v1098
        %1142 = vmatpush1.msra.mxu0 %v1097
        %1143 = vmatprep.subr.mxu0 %v1100
        %1144 = vmatpush1.msra.mxu0 %v1099
        %1145 = vmatprep.subr.mxu0 %v1102
        %1146 = vmatpush1.msra.mxu0 %v1101
        %1147 = vmatprep.subr.mxu0 %v1104
        %1148 = vmatpush1.msra.mxu0 %v1103
        %1149 = vmatprep.subr.mxu0 %v1106
        %1150 = vmatpush1.msra.mxu0 %v1105
        %1151 = vmatprep.subr.mxu0 %v1108
        %1152 = vmatpush1.msra.mxu0 %v1107
        %1153 = vmatprep.subr.mxu0 %v1110
        %1154 = vmatpush1.msra.mxu0 %v1109
        %1155 = vmatprep.subr.mxu0 %v1112
        %1156 = vmatpush1.msra.mxu0 %v1111
        %1157 = vmatprep.subr.mxu0 %v1114
        %1158 = vmatpush1.msra.mxu0 %v1113
        %1159 = vmatprep.subr.mxu0 %v1116
        %1160 = vmatpush1.msra.mxu0 %v1115
        %1161 = vmatprep.subr.mxu0 %v1118
        %1162 = vmatpush1.msra.mxu0 %v1117
        %1163 = vmatprep.subr.mxu0 %v1120
        %1164 = vmatpush1.msra.mxu0 %v1119
        %1165 = vmatprep.subr.mxu0 %v1122
        %1166 = vmatpush1.msra.mxu0 %v1121
        %1167 = vmatprep.subr.mxu0 %v1124
        %1168 = vmatpush1.msra.mxu0 %v1123
        %1169 = vmatprep.subr.mxu0 %v1126
        %1170 = vmatpush1.msra.mxu0 %v1125
        %1171 = vmatprep.subr.mxu0 %v1128
        %1172 = vmatpush1.msra.mxu0 %v1127
        %1173 = vmatprep.subr.mxu0 0.0
        %1174 = vmatpush1.msra.mxu0 0.0
        %1175 = vmatprep.subr.mxu0 0.0
        %1176 = vmatpush1.msra.mxu0 0.0
        %1177 = vmatprep.subr.mxu0 0.0
        %1178 = vmatpush1.msra.mxu0 0.0
        %1179 = vmatprep.subr.mxu0 0.0
        %1180 = vmatpush1.msra.mxu0 0.0
        %1181 = vmatprep.subr.mxu0 0.0
        %1182 = vmatpush1.msra.mxu0 0.0
        %1183 = vmatprep.subr.mxu0 0.0
        %1184 = vmatpush1.msra.mxu0 0.0
        %1185 = vmatprep.subr.mxu0 0.0
        %1186 = vmatpush1.msra.mxu0 0.0
        %1187 = vmatprep.subr.mxu0 0.0
        %1188 = vmatpush1.msra.mxu0 0.0
        %1189 = vmatprep.subr.mxu0 0.0
        %1190 = vmatpush1.msra.mxu0 0.0
        %1191 = vmatprep.subr.mxu0 0.0
        %1192 = vmatpush1.msra.mxu0 0.0
        %1193 = vmatprep.subr.mxu0 0.0
        %1194 = vmatpush1.msra.mxu0 0.0
        %1195 = vmatprep.subr.mxu0 0.0
        %1196 = vmatpush1.msra.mxu0 0.0
        %1197 = vmatprep.subr.mxu0 0.0
        %1198 = vmatpush1.msra.mxu0 0.0
        %1199 = vmatprep.subr.mxu0 0.0
        %1200 = vmatpush1.msra.mxu0 0.0
        %1201 = vmatprep.subr.mxu0 0.0
        %1202 = vmatpush1.msra.mxu0 0.0
        %1203 = vmatprep.subr.mxu0 0.0
        %1204 = vmatpush1.msra.mxu0 0.0
        %1205 = vmatprep.mubr.f32.mxu0 0.0
        %1206 = vmatmul.mubr.f32.gmra.mrb[0].mxu0 %v1093
        %v1207 = vpop.f32.mrb[0].mxu0
        %v1208 = vadd.f32 %v1134, %v1207
        %v1209 = vpop.f32.mrb[0].mxu0
        %v1210 = vadd.f32 %v1138, %v1209
        %1211 = vmatprep.mubr.f32.mxu0 0.0
        %1212 = vmatmul.mubr.f32.gmra.mrb[0].mxu0 %v1094
        %v1213 = vpop.f32.mrb[0].mxu0
        %v1214 = vadd.f32 %v1134, %v1213
        %v1215 = vpop.f32.mrb[0].mxu0
        %v1216 = vadd.f32 %v1138, %v1215
        %1217 = vmatprep.mubr.f32.mxu0 0.0
        %1218 = vmatmul.mubr.f32.gmra.mrb[0].mxu0 %v1095
        %v1219 = vpop.f32.mrb[0].mxu0
        %v1220 = vadd.f32 %v1134, %v1219
        %v1221 = vpop.f32.mrb[0].mxu0
        %v1222 = vadd.f32 %v1138, %v1221
        %1223 = vmatprep.mubr.f32.mxu0 0.0
        %1224 = vmatmul.mubr.f32.gmra.mrb[0].mxu0 %v1096
        %v1225 = vpop.f32.mrb[0].mxu0
        %v1226 = vadd.f32 %v1134, %v1225
        %v1227 = vpop.f32.mrb[0].mxu0
        %v1228 = vadd.f32 %v1138, %v1227
        %1229 = vdwg.mxu0
        %v1230 = vadd.f32 %v1208, %v778
        %v1231 = vadd.f32 %v1214, %v779
        %v1232 = vadd.f32 %v1220, %v780
        %v1233 = vadd.f32 %v1226, %v781
        %v1234 = vadd.f32 %v782, %v1210
        %v1235 = vadd.f32 %v783, %v1216
        %v1236 = vadd.f32 %v784, %v1222
        %v1237 = vadd.f32 %v785, %v1228
        %vm1238 = vcmp.ge.s32.totalorder %v774, 2
        %vm1239 = vcmp.ge.s32.totalorder %v775, 2
        %vm1240 = vcmp.ge.s32.totalorder %v776, 2
        %vm1241 = vcmp.ge.s32.totalorder %v777, 2
        %v1242 = vrot.slane %v1230, 6
        %v1243 = vrot.slane %v1231, 6
        %v1244 = vrot.slane %v1232, 6
        %v1245 = vrot.slane %v1233, 6
        %vm1246 = vcmp.lt.s32.totalorder %v726, 2
        %v1247 = vsel %vm1246, %v1244, %v1245
        %v1248 = vsel %vm1246, %v1243, %v1244
        %v1249 = vsel %vm1246, %v1242, %v1243
        %v1250 = vsel %vm1246, %v1245, %v1242
        %v1251 = vsel %vm1238, %v1250, 0.0
        %v1252 = vsel %vm1239, %v1249, 0.0
        %v1253 = vsel %vm1240, %v1248, 0.0
        %v1254 = vsel %vm1241, %v1247, 0.0
        %s1255 = scalar_lea.vmem %s501, 256 [#allocation4]
        %v1256 = vld [vmem:[%s1255] sm:$0xff]
        %v1257 = vld [vmem:[%s1255 + $0x8] sm:$0xff]
        %v1258 = vld [vmem:[%s1255 + $0x10] sm:$0xff]
        %v1259 = vld [vmem:[%s1255 + $0x18] sm:$0xff]
        %v1260 = vld [vmem:[%s1255 + $0x20] sm:$0xff]
        %v1261 = vld [vmem:[%s1255 + $0x28] sm:$0xff]
        %v1262 = vld [vmem:[%s1255 + $0x30] sm:$0xff]
        %v1263 = vld [vmem:[%s1255 + $0x38] sm:$0xff]
        %v1264 = vld [vmem:[%s1255 + $0x40] sm:$0xff]
        %v1265 = vld [vmem:[%s1255 + $0x48] sm:$0xff]
        %v1266 = vld [vmem:[%s1255 + $0x50] sm:$0xff]
        %v1267 = vld [vmem:[%s1255 + $0x58] sm:$0xff]
        %v1268 = vld [vmem:[%s1255 + $0x60] sm:$0xff]
        %v1269 = vld [vmem:[%s1255 + $0x68] sm:$0xff]
        %v1270 = vld [vmem:[%s1255 + $0x70] sm:$0xff]
        %v1271 = vld [vmem:[%s1255 + $0x78] sm:$0xff]
        %v1272 = vld [vmem:[%s1255 + $0x80] sm:$0xff]
        %v1273 = vld [vmem:[%s1255 + $0x88] sm:$0xff]
        %v1274 = vld [vmem:[%s1255 + $0x90] sm:$0xff]
        %v1275 = vld [vmem:[%s1255 + $0x98] sm:$0xff]
        %v1276 = vld [vmem:[%s1255 + $0xa0] sm:$0xff]
        %v1277 = vld [vmem:[%s1255 + $0xa8] sm:$0xff]
        %v1278 = vld [vmem:[%s1255 + $0xb0] sm:$0xff]
        %v1279 = vld [vmem:[%s1255 + $0xb8] sm:$0xff]
        %v1280 = vld [vmem:[%s1255 + $0xc0] sm:$0xff]
        %v1281 = vld [vmem:[%s1255 + $0xc8] sm:$0xff]
        %v1282 = vld [vmem:[%s1255 + $0xd0] sm:$0xff]
        %v1283 = vld [vmem:[%s1255 + $0xd8] sm:$0xff]
        %v1284 = vld [vmem:[%s1255 + $0xe0] sm:$0xff]
        %v1285 = vld [vmem:[%s1255 + $0xe8] sm:$0xff]
        %v1286 = vld [vmem:[%s1255 + $0xf0] sm:$0xff]
        %v1287 = vld [vmem:[%s1255 + $0xf8] sm:$0xff]
        %s1288 = scalar_lea.vmem %s510, 256 [#allocation7]
        %v1289 = vld [vmem:[%s1288] sm:$0xff]
        %v1290 = vld [vmem:[%s1288 + $0x8] sm:$0xff]
        %v1291 = vld [vmem:[%s1288 + $0x10] sm:$0xff]
        %v1292 = vld [vmem:[%s1288 + $0x18] sm:$0xff]
        %v1293 = vld [vmem:[%s1288 + $0x20] sm:$0xff]
        %v1294 = vld [vmem:[%s1288 + $0x28] sm:$0xff]
        %v1295 = vld [vmem:[%s1288 + $0x30] sm:$0xff]
        %v1296 = vld [vmem:[%s1288 + $0x38] sm:$0xff]
        %v1297 = vld [vmem:[%s1288 + $0x40] sm:$0xff]
        %v1298 = vld [vmem:[%s1288 + $0x48] sm:$0xff]
        %v1299 = vld [vmem:[%s1288 + $0x50] sm:$0xff]
        %v1300 = vld [vmem:[%s1288 + $0x58] sm:$0xff]
        %v1301 = vld [vmem:[%s1288 + $0x60] sm:$0xff]
        %v1302 = vld [vmem:[%s1288 + $0x68] sm:$0xff]
        %v1303 = vld [vmem:[%s1288 + $0x70] sm:$0xff]
        %v1304 = vld [vmem:[%s1288 + $0x78] sm:$0xff]
        %v1305 = vld [vmem:[%s1288 + $0x80] sm:$0xff]
        %v1306 = vld [vmem:[%s1288 + $0x88] sm:$0xff]
        %v1307 = vld [vmem:[%s1288 + $0x90] sm:$0xff]
        %v1308 = vld [vmem:[%s1288 + $0x98] sm:$0xff]
        %v1309 = vld [vmem:[%s1288 + $0xa0] sm:$0xff]
        %v1310 = vld [vmem:[%s1288 + $0xa8] sm:$0xff]
        %v1311 = vld [vmem:[%s1288 + $0xb0] sm:$0xff]
        %v1312 = vld [vmem:[%s1288 + $0xb8] sm:$0xff]
        %v1313 = vld [vmem:[%s1288 + $0xc0] sm:$0xff]
        %v1314 = vld [vmem:[%s1288 + $0xc8] sm:$0xff]
        %v1315 = vld [vmem:[%s1288 + $0xd0] sm:$0xff]
        %v1316 = vld [vmem:[%s1288 + $0xd8] sm:$0xff]
        %v1317 = vld [vmem:[%s1288 + $0xe0] sm:$0xff]
        %v1318 = vld [vmem:[%s1288 + $0xe8] sm:$0xff]
        %v1319 = vld [vmem:[%s1288 + $0xf0] sm:$0xff]
        %v1320 = vld [vmem:[%s1288 + $0xf8] sm:$0xff]
        %1321 = vmatprep.subr.mxu0 %v1290
        %1322 = vmatpush1.msra.mxu0 %v1289
        %1323 = vmatprep.subr.mxu0 %v1292
        %1324 = vmatpush1.msra.mxu0 %v1291
        %1325 = vmatprep.subr.mxu0 %v1294
        %1326 = vmatpush1.msra.mxu0 %v1293
        %1327 = vmatprep.subr.mxu0 %v1296
        %1328 = vmatpush1.msra.mxu0 %v1295
        %1329 = vmatprep.subr.mxu0 %v1298
        %1330 = vmatpush1.msra.mxu0 %v1297
        %1331 = vmatprep.subr.mxu0 %v1300
        %1332 = vmatpush1.msra.mxu0 %v1299
        %1333 = vmatprep.subr.mxu0 %v1302
        %1334 = vmatpush1.msra.mxu0 %v1301
        %1335 = vmatprep.subr.mxu0 %v1304
        %1336 = vmatpush1.msra.mxu0 %v1303
        %1337 = vmatprep.subr.mxu0 %v1306
        %1338 = vmatpush1.msra.mxu0 %v1305
        %1339 = vmatprep.subr.mxu0 %v1308
        %1340 = vmatpush1.msra.mxu0 %v1307
        %1341 = vmatprep.subr.mxu0 %v1310
        %1342 = vmatpush1.msra.mxu0 %v1309
        %1343 = vmatprep.subr.mxu0 %v1312
        %1344 = vmatpush1.msra.mxu0 %v1311
        %1345 = vmatprep.subr.mxu0 %v1314
        %1346 = vmatpush1.msra.mxu0 %v1313
        %1347 = vmatprep.subr.mxu0 %v1316
        %1348 = vmatpush1.msra.mxu0 %v1315
        %1349 = vmatprep.subr.mxu0 %v1318
        %1350 = vmatpush1.msra.mxu0 %v1317
        %1351 = vmatprep.subr.mxu0 %v1320
        %1352 = vmatpush1.msra.mxu0 %v1319
        %1353 = vmatprep.subr.mxu0 0.0
        %1354 = vmatpush1.msra.mxu0 0.0
        %1355 = vmatprep.subr.mxu0 0.0
        %1356 = vmatpush1.msra.mxu0 0.0
        %1357 = vmatprep.subr.mxu0 0.0
        %1358 = vmatpush1.msra.mxu0 0.0
        %1359 = vmatprep.subr.mxu0 0.0
        %1360 = vmatpush1.msra.mxu0 0.0
        %1361 = vmatprep.subr.mxu0 0.0
        %1362 = vmatpush1.msra.mxu0 0.0
        %1363 = vmatprep.subr.mxu0 0.0
        %1364 = vmatpush1.msra.mxu0 0.0
        %1365 = vmatprep.subr.mxu0 0.0
        %1366 = vmatpush1.msra.mxu0 0.0
        %1367 = vmatprep.subr.mxu0 0.0
        %1368 = vmatpush1.msra.mxu0 0.0
        %1369 = vmatprep.subr.mxu0 0.0
        %1370 = vmatpush1.msra.mxu0 0.0
        %1371 = vmatprep.subr.mxu0 0.0
        %1372 = vmatpush1.msra.mxu0 0.0
        %1373 = vmatprep.subr.mxu0 0.0
        %1374 = vmatpush1.msra.mxu0 0.0
        %1375 = vmatprep.subr.mxu0 0.0
        %1376 = vmatpush1.msra.mxu0 0.0
        %1377 = vmatprep.subr.mxu0 0.0
        %1378 = vmatpush1.msra.mxu0 0.0
        %1379 = vmatprep.subr.mxu0 0.0
        %1380 = vmatpush1.msra.mxu0 0.0
        %1381 = vmatprep.subr.mxu0 0.0
        %1382 = vmatpush1.msra.mxu0 0.0
        %1383 = vmatprep.subr.mxu0 0.0
        %1384 = vmatpush1.msra.mxu0 0.0
        %1385 = vmatprep.mubr.f32.mxu0 0.0
        %1386 = vmatmul.mubr.f32.gmra.mrb[0].mxu0 %v1230
        %v1387 = vpop.f32.mrb[0].mxu0
        %v1388 = vadd.f32 0.0, %v1387
        %v1389 = vpop.f32.mrb[0].mxu0
        %v1390 = vadd.f32 0.0, %v1389
        %1391 = vmatprep.mubr.f32.mxu0 0.0
        %1392 = vmatmul.mubr.f32.gmra.mrb[0].mxu0 %v1231
        %v1393 = vpop.f32.mrb[0].mxu0
        %v1394 = vadd.f32 0.0, %v1393
        %v1395 = vpop.f32.mrb[0].mxu0
        %v1396 = vadd.f32 0.0, %v1395
        %1397 = vmatprep.mubr.f32.mxu0 0.0
        %1398 = vmatmul.mubr.f32.gmra.mrb[0].mxu0 %v1232
        %v1399 = vpop.f32.mrb[0].mxu0
        %v1400 = vadd.f32 0.0, %v1399
        %v1401 = vpop.f32.mrb[0].mxu0
        %v1402 = vadd.f32 0.0, %v1401
        %1403 = vmatprep.mubr.f32.mxu0 0.0
        %1404 = vmatmul.mubr.f32.gmra.mrb[0].mxu0 %v1233
        %v1405 = vpop.f32.mrb[0].mxu0
        %v1406 = vadd.f32 0.0, %v1405
        %v1407 = vpop.f32.mrb[0].mxu0
        %v1408 = vadd.f32 0.0, %v1407
        %1409 = vdwg.mxu0
        %1410 = vmatprep.subr.mxu0 %v1257
        %1411 = vmatpush1.msra.mxu0 %v1256
        %1412 = vmatprep.subr.mxu0 %v1259
        %1413 = vmatpush1.msra.mxu0 %v1258
        %1414 = vmatprep.subr.mxu0 %v1261
        %1415 = vmatpush1.msra.mxu0 %v1260
        %1416 = vmatprep.subr.mxu0 %v1263
        %1417 = vmatpush1.msra.mxu0 %v1262
        %1418 = vmatprep.subr.mxu0 %v1265
        %1419 = vmatpush1.msra.mxu0 %v1264
        %1420 = vmatprep.subr.mxu0 %v1267
        %1421 = vmatpush1.msra.mxu0 %v1266
        %1422 = vmatprep.subr.mxu0 %v1269
        %1423 = vmatpush1.msra.mxu0 %v1268
        %1424 = vmatprep.subr.mxu0 %v1271
        %1425 = vmatpush1.msra.mxu0 %v1270
        %1426 = vmatprep.subr.mxu0 %v1273
        %1427 = vmatpush1.msra.mxu0 %v1272
        %1428 = vmatprep.subr.mxu0 %v1275
        %1429 = vmatpush1.msra.mxu0 %v1274
        %1430 = vmatprep.subr.mxu0 %v1277
        %1431 = vmatpush1.msra.mxu0 %v1276
        %1432 = vmatprep.subr.mxu0 %v1279
        %1433 = vmatpush1.msra.mxu0 %v1278
        %1434 = vmatprep.subr.mxu0 %v1281
        %1435 = vmatpush1.msra.mxu0 %v1280
        %1436 = vmatprep.subr.mxu0 %v1283
        %1437 = vmatpush1.msra.mxu0 %v1282
        %1438 = vmatprep.subr.mxu0 %v1285
        %1439 = vmatpush1.msra.mxu0 %v1284
        %1440 = vmatprep.subr.mxu0 %v1287
        %1441 = vmatpush1.msra.mxu0 %v1286
        %1442 = vmatprep.subr.mxu0 0.0
        %1443 = vmatpush1.msra.mxu0 0.0
        %1444 = vmatprep.subr.mxu0 0.0
        %1445 = vmatpush1.msra.mxu0 0.0
        %1446 = vmatprep.subr.mxu0 0.0
        %1447 = vmatpush1.msra.mxu0 0.0
        %1448 = vmatprep.subr.mxu0 0.0
        %1449 = vmatpush1.msra.mxu0 0.0
        %1450 = vmatprep.subr.mxu0 0.0
        %1451 = vmatpush1.msra.mxu0 0.0
        %1452 = vmatprep.subr.mxu0 0.0
        %1453 = vmatpush1.msra.mxu0 0.0
        %1454 = vmatprep.subr.mxu0 0.0
        %1455 = vmatpush1.msra.mxu0 0.0
        %1456 = vmatprep.subr.mxu0 0.0
        %1457 = vmatpush1.msra.mxu0 0.0
        %1458 = vmatprep.subr.mxu0 0.0
        %1459 = vmatpush1.msra.mxu0 0.0
        %1460 = vmatprep.subr.mxu0 0.0
        %1461 = vmatpush1.msra.mxu0 0.0
        %1462 = vmatprep.subr.mxu0 0.0
        %1463 = vmatpush1.msra.mxu0 0.0
        %1464 = vmatprep.subr.mxu0 0.0
        %1465 = vmatpush1.msra.mxu0 0.0
        %1466 = vmatprep.subr.mxu0 0.0
        %1467 = vmatpush1.msra.mxu0 0.0
        %1468 = vmatprep.subr.mxu0 0.0
        %1469 = vmatpush1.msra.mxu0 0.0
        %1470 = vmatprep.subr.mxu0 0.0
        %1471 = vmatpush1.msra.mxu0 0.0
        %1472 = vmatprep.subr.mxu0 0.0
        %1473 = vmatpush1.msra.mxu0 0.0
        %1474 = vmatprep.mubr.f32.mxu0 0.0
        %1475 = vmatmul.mubr.f32.gmra.mrb[0].mxu0 %v1251
        %v1476 = vpop.f32.mrb[0].mxu0
        %v1477 = vadd.f32 %v1388, %v1476
        %v1478 = vpop.f32.mrb[0].mxu0
        %v1479 = vadd.f32 %v1390, %v1478
        %1480 = vmatprep.mubr.f32.mxu0 0.0
        %1481 = vmatmul.mubr.f32.gmra.mrb[0].mxu0 %v1252
        %v1482 = vpop.f32.mrb[0].mxu0
        %v1483 = vadd.f32 %v1394, %v1482
        %v1484 = vpop.f32.mrb[0].mxu0
        %v1485 = vadd.f32 %v1396, %v1484
        %1486 = vmatprep.mubr.f32.mxu0 0.0
        %1487 = vmatmul.mubr.f32.gmra.mrb[0].mxu0 %v1253
        %v1488 = vpop.f32.mrb[0].mxu0
        %v1489 = vadd.f32 %v1400, %v1488
        %v1490 = vpop.f32.mrb[0].mxu0
        %v1491 = vadd.f32 %v1402, %v1490
        %1492 = vmatprep.mubr.f32.mxu0 0.0
        %1493 = vmatmul.mubr.f32.gmra.mrb[0].mxu0 %v1254
        %v1494 = vpop.f32.mrb[0].mxu0
        %v1495 = vadd.f32 %v1406, %v1494
        %v1496 = vpop.f32.mrb[0].mxu0
        %v1497 = vadd.f32 %v1408, %v1496
        %1498 = vdwg.mxu0
        %s1499 = scalar_lea.vmem %s597, 2
        %v1500 = vld [vmem:[%s1499] sm:$0x3]
        %v1502 = vlaneseq
        %v1503 = vshrl.u32 %v1502, 7
        %v1504 = vsub.s32 0, %v1503
        %v1505 = vrot.slane %v1500, %v1504
        %v1506 = vlaneseq
        %v1507 = vshrl.u32 %v1506, 7
        %v1508 = vsub.s32 1, %v1507
        %v1509 = vrot.slane %v1500, %v1508
        %v1512 = vadd.f32 %v1477, %v1505
        %v1513 = vadd.f32 %v1479, %v1509
        %v1514 = vadd.f32 %v1483, %v1505
        %v1515 = vadd.f32 %v1485, %v1509
        %v1516 = vadd.f32 %v1489, %v1505
        %v1517 = vadd.f32 %v1491, %v1509
        %v1518 = vadd.f32 %v1495, %v1505
        %v1519 = vadd.f32 %v1497, %v1509
        %v1520 = vtanh.pop %v1512
        %v1521 = vtanh.pop %v1514
        %v1522 = vtanh.pop %v1516
        %v1523 = vtanh.pop %v1518
        %v1524 = vxor.u32 %v1513, 2147483648
        %v1525 = vxor.u32 %v1515, 2147483648
        %v1526 = vxor.u32 %v1517, 2147483648
        %v1527 = vxor.u32 %v1519, 2147483648
        %v1528 = vmul.f32 %v1524, 1.442695
        %v1529 = vpow.pop %v1528
        %v1530 = vmul.f32 %v1525, 1.442695
        %v1531 = vpow.pop %v1530
        %v1532 = vmul.f32 %v1526, 1.442695
        %v1533 = vpow.pop %v1532
        %v1534 = vmul.f32 %v1527, 1.442695
        %v1535 = vpow.pop %v1534
        %v1536 = vadd.f32 %v1529, 1.0
        %v1537 = vadd.f32 %v1531, 1.0
        %v1538 = vadd.f32 %v1533, 1.0
        %v1539 = vadd.f32 %v1535, 1.0
        %v1540 = vrcp.pop %v1536
        %v1541 = vmul.f32 1.0, %v1540
        %v1542 = vrcp.pop %v1537
        %v1543 = vmul.f32 1.0, %v1542
        %v1544 = vrcp.pop %v1538
        %v1545 = vmul.f32 1.0, %v1544
        %v1546 = vrcp.pop %v1539
        %v1547 = vmul.f32 1.0, %v1546
        %v1548 = vmul.f32 %v1520, %v1541
        %v1549 = vmul.f32 %v1521, %v1543
        %v1550 = vmul.f32 %v1522, %v1545
        %v1551 = vmul.f32 %v1523, %v1547
        %s1552 = scalar_lea.vmem %s519, 256 [#allocation9]
        %v1553 = vld [vmem:[%s1552] sm:$0xff]
        %v1554 = vld [vmem:[%s1552 + $0x8] sm:$0xff]
        %v1555 = vld [vmem:[%s1552 + $0x10] sm:$0xff]
        %v1556 = vld [vmem:[%s1552 + $0x18] sm:$0xff]
        %v1557 = vld [vmem:[%s1552 + $0x20] sm:$0xff]
        %v1558 = vld [vmem:[%s1552 + $0x28] sm:$0xff]
        %v1559 = vld [vmem:[%s1552 + $0x30] sm:$0xff]
        %v1560 = vld [vmem:[%s1552 + $0x38] sm:$0xff]
        %v1561 = vld [vmem:[%s1552 + $0x40] sm:$0xff]
        %v1562 = vld [vmem:[%s1552 + $0x48] sm:$0xff]
        %v1563 = vld [vmem:[%s1552 + $0x50] sm:$0xff]
        %v1564 = vld [vmem:[%s1552 + $0x58] sm:$0xff]
        %v1565 = vld [vmem:[%s1552 + $0x60] sm:$0xff]
        %v1566 = vld [vmem:[%s1552 + $0x68] sm:$0xff]
        %v1567 = vld [vmem:[%s1552 + $0x70] sm:$0xff]
        %v1568 = vld [vmem:[%s1552 + $0x78] sm:$0xff]
        %v1569 = vld [vmem:[%s1552 + $0x80] sm:$0xff]
        %v1570 = vld [vmem:[%s1552 + $0x88] sm:$0xff]
        %v1571 = vld [vmem:[%s1552 + $0x90] sm:$0xff]
        %v1572 = vld [vmem:[%s1552 + $0x98] sm:$0xff]
        %v1573 = vld [vmem:[%s1552 + $0xa0] sm:$0xff]
        %v1574 = vld [vmem:[%s1552 + $0xa8] sm:$0xff]
        %v1575 = vld [vmem:[%s1552 + $0xb0] sm:$0xff]
        %v1576 = vld [vmem:[%s1552 + $0xb8] sm:$0xff]
        %v1577 = vld [vmem:[%s1552 + $0xc0] sm:$0xff]
        %v1578 = vld [vmem:[%s1552 + $0xc8] sm:$0xff]
        %v1579 = vld [vmem:[%s1552 + $0xd0] sm:$0xff]
        %v1580 = vld [vmem:[%s1552 + $0xd8] sm:$0xff]
        %v1581 = vld [vmem:[%s1552 + $0xe0] sm:$0xff]
        %v1582 = vld [vmem:[%s1552 + $0xe8] sm:$0xff]
        %v1583 = vld [vmem:[%s1552 + $0xf0] sm:$0xff]
        %v1584 = vld [vmem:[%s1552 + $0xf8] sm:$0xff]
        %s1585 = scalar_lea.vmem %s601, 2
        %v1586 = vld [vmem:[%s1585] sm:$0x3]
        %v1588 = vlaneseq
        %v1589 = vshrl.u32 %v1588, 7
        %v1590 = vsub.s32 0, %v1589
        %v1591 = vrot.slane %v1586, %v1590
        %v1592 = vlaneseq
        %v1593 = vshrl.u32 %v1592, 7
        %v1594 = vsub.s32 1, %v1593
        %v1595 = vrot.slane %v1586, %v1594
        %1598 = vmatprep.subr.mxu0 %v1554
        %1599 = vmatpush1.msra.mxu0 %v1553
        %1600 = vmatprep.subr.mxu0 %v1556
        %1601 = vmatpush1.msra.mxu0 %v1555
        %1602 = vmatprep.subr.mxu0 %v1558
        %1603 = vmatpush1.msra.mxu0 %v1557
        %1604 = vmatprep.subr.mxu0 %v1560
        %1605 = vmatpush1.msra.mxu0 %v1559
        %1606 = vmatprep.subr.mxu0 %v1562
        %1607 = vmatpush1.msra.mxu0 %v1561
        %1608 = vmatprep.subr.mxu0 %v1564
        %1609 = vmatpush1.msra.mxu0 %v1563
        %1610 = vmatprep.subr.mxu0 %v1566
        %1611 = vmatpush1.msra.mxu0 %v1565
        %1612 = vmatprep.subr.mxu0 %v1568
        %1613 = vmatpush1.msra.mxu0 %v1567
        %1614 = vmatprep.subr.mxu0 %v1570
        %1615 = vmatpush1.msra.mxu0 %v1569
        %1616 = vmatprep.subr.mxu0 %v1572
        %1617 = vmatpush1.msra.mxu0 %v1571
        %1618 = vmatprep.subr.mxu0 %v1574
        %1619 = vmatpush1.msra.mxu0 %v1573
        %1620 = vmatprep.subr.mxu0 %v1576
        %1621 = vmatpush1.msra.mxu0 %v1575
        %1622 = vmatprep.subr.mxu0 %v1578
        %1623 = vmatpush1.msra.mxu0 %v1577
        %1624 = vmatprep.subr.mxu0 %v1580
        %1625 = vmatpush1.msra.mxu0 %v1579
        %1626 = vmatprep.subr.mxu0 %v1582
        %1627 = vmatpush1.msra.mxu0 %v1581
        %1628 = vmatprep.subr.mxu0 %v1584
        %1629 = vmatpush1.msra.mxu0 %v1583
        %1630 = vmatprep.subr.mxu0 0.0
        %1631 = vmatpush1.msra.mxu0 0.0
        %1632 = vmatprep.subr.mxu0 0.0
        %1633 = vmatpush1.msra.mxu0 0.0
        %1634 = vmatprep.subr.mxu0 0.0
        %1635 = vmatpush1.msra.mxu0 0.0
        %1636 = vmatprep.subr.mxu0 0.0
        %1637 = vmatpush1.msra.mxu0 0.0
        %1638 = vmatprep.subr.mxu0 0.0
        %1639 = vmatpush1.msra.mxu0 0.0
        %1640 = vmatprep.subr.mxu0 0.0
        %1641 = vmatpush1.msra.mxu0 0.0
        %1642 = vmatprep.subr.mxu0 0.0
        %1643 = vmatpush1.msra.mxu0 0.0
        %1644 = vmatprep.subr.mxu0 0.0
        %1645 = vmatpush1.msra.mxu0 0.0
        %1646 = vmatprep.subr.mxu0 0.0
        %1647 = vmatpush1.msra.mxu0 0.0
        %1648 = vmatprep.subr.mxu0 0.0
        %1649 = vmatpush1.msra.mxu0 0.0
        %1650 = vmatprep.subr.mxu0 0.0
        %1651 = vmatpush1.msra.mxu0 0.0
        %1652 = vmatprep.subr.mxu0 0.0
        %1653 = vmatpush1.msra.mxu0 0.0
        %1654 = vmatprep.subr.mxu0 0.0
        %1655 = vmatpush1.msra.mxu0 0.0
        %1656 = vmatprep.subr.mxu0 0.0
        %1657 = vmatpush1.msra.mxu0 0.0
        %1658 = vmatprep.subr.mxu0 0.0
        %1659 = vmatpush1.msra.mxu0 0.0
        %1660 = vmatprep.subr.mxu0 0.0
        %1661 = vmatpush1.msra.mxu0 0.0
        %1662 = vmatprep.mubr.f32.mxu0 0.0
        %1663 = vmatmul.mubr.f32.gmra.mrb[0].mxu0 %v1548
        %v1664 = vpop.f32.mrb[0].mxu0
        %v1665 = vadd.f32 %v1591, %v1664
        %v1666 = vpop.f32.mrb[0].mxu0
        %v1667 = vadd.f32 %v1595, %v1666
        %1668 = vmatprep.mubr.f32.mxu0 0.0
        %1669 = vmatmul.mubr.f32.gmra.mrb[0].mxu0 %v1549
        %v1670 = vpop.f32.mrb[0].mxu0
        %v1671 = vadd.f32 %v1591, %v1670
        %v1672 = vpop.f32.mrb[0].mxu0
        %v1673 = vadd.f32 %v1595, %v1672
        %1674 = vmatprep.mubr.f32.mxu0 0.0
        %1675 = vmatmul.mubr.f32.gmra.mrb[0].mxu0 %v1550
        %v1676 = vpop.f32.mrb[0].mxu0
        %v1677 = vadd.f32 %v1591, %v1676
        %v1678 = vpop.f32.mrb[0].mxu0
        %v1679 = vadd.f32 %v1595, %v1678
        %1680 = vmatprep.mubr.f32.mxu0 0.0
        %1681 = vmatmul.mubr.f32.gmra.mrb[0].mxu0 %v1551
        %v1682 = vpop.f32.mrb[0].mxu0
        %v1683 = vadd.f32 %v1591, %v1682
        %v1684 = vpop.f32.mrb[0].mxu0
        %v1685 = vadd.f32 %v1595, %v1684
        %1686 = vdwg.mxu0
        %v1687 = vadd.f32 %v1665, %v1230
        %v1688 = vadd.f32 %v1671, %v1231
        %v1689 = vadd.f32 %v1677, %v1232
        %v1690 = vadd.f32 %v1683, %v1233
        %v1691 = vadd.f32 %v1234, %v1667
        %v1692 = vadd.f32 %v1235, %v1673
        %v1693 = vadd.f32 %v1236, %v1679
        %v1694 = vadd.f32 %v1237, %v1685
        %vm1695 = vcmp.ge.s32.totalorder %v774, 4
        %vm1696 = vcmp.ge.s32.totalorder %v775, 4
        %vm1697 = vcmp.ge.s32.totalorder %v776, 4
        %vm1698 = vcmp.ge.s32.totalorder %v777, 4
        %v1699 = vrot.slane %v1687, 4
        %v1700 = vrot.slane %v1688, 4
        %v1701 = vrot.slane %v1689, 4
        %v1702 = vrot.slane %v1690, 4
        %vm1703 = vcmp.lt.s32.totalorder %v726, 4
        %v1704 = vsel %vm1703, %v1701, %v1702
        %v1705 = vsel %vm1703, %v1700, %v1701
        %v1706 = vsel %vm1703, %v1699, %v1700
        %v1707 = vsel %vm1703, %v1702, %v1699
        %v1708 = vsel %vm1695, %v1707, 0.0
        %v1709 = vsel %vm1696, %v1706, 0.0
        %v1710 = vsel %vm1697, %v1705, 0.0
        %v1711 = vsel %vm1698, %v1704, 0.0
        %s1712 = scalar_lea.vmem %s501, 512 [#allocation4]
        %v1713 = vld [vmem:[%s1712] sm:$0xff]
        %v1714 = vld [vmem:[%s1712 + $0x8] sm:$0xff]
        %v1715 = vld [vmem:[%s1712 + $0x10] sm:$0xff]
        %v1716 = vld [vmem:[%s1712 + $0x18] sm:$0xff]
        %v1717 = vld [vmem:[%s1712 + $0x20] sm:$0xff]
        %v1718 = vld [vmem:[%s1712 + $0x28] sm:$0xff]
        %v1719 = vld [vmem:[%s1712 + $0x30] sm:$0xff]
        %v1720 = vld [vmem:[%s1712 + $0x38] sm:$0xff]
        %v1721 = vld [vmem:[%s1712 + $0x40] sm:$0xff]
        %v1722 = vld [vmem:[%s1712 + $0x48] sm:$0xff]
        %v1723 = vld [vmem:[%s1712 + $0x50] sm:$0xff]
        %v1724 = vld [vmem:[%s1712 + $0x58] sm:$0xff]
        %v1725 = vld [vmem:[%s1712 + $0x60] sm:$0xff]
        %v1726 = vld [vmem:[%s1712 + $0x68] sm:$0xff]
        %v1727 = vld [vmem:[%s1712 + $0x70] sm:$0xff]
        %v1728 = vld [vmem:[%s1712 + $0x78] sm:$0xff]
        %v1729 = vld [vmem:[%s1712 + $0x80] sm:$0xff]
        %v1730 = vld [vmem:[%s1712 + $0x88] sm:$0xff]
        %v1731 = vld [vmem:[%s1712 + $0x90] sm:$0xff]
        %v1732 = vld [vmem:[%s1712 + $0x98] sm:$0xff]
        %v1733 = vld [vmem:[%s1712 + $0xa0] sm:$0xff]
        %v1734 = vld [vmem:[%s1712 + $0xa8] sm:$0xff]
        %v1735 = vld [vmem:[%s1712 + $0xb0] sm:$0xff]
        %v1736 = vld [vmem:[%s1712 + $0xb8] sm:$0xff]
        %v1737 = vld [vmem:[%s1712 + $0xc0] sm:$0xff]
        %v1738 = vld [vmem:[%s1712 + $0xc8] sm:$0xff]
        %v1739 = vld [vmem:[%s1712 + $0xd0] sm:$0xff]
        %v1740 = vld [vmem:[%s1712 + $0xd8] sm:$0xff]
        %v1741 = vld [vmem:[%s1712 + $0xe0] sm:$0xff]
        %v1742 = vld [vmem:[%s1712 + $0xe8] sm:$0xff]
        %v1743 = vld [vmem:[%s1712 + $0xf0] sm:$0xff]
        %v1744 = vld [vmem:[%s1712 + $0xf8] sm:$0xff]
        %s1745 = scalar_lea.vmem %s510, 512 [#allocation7]
        %v1746 = vld [vmem:[%s1745] sm:$0xff]
        %v1747 = vld [vmem:[%s1745 + $0x8] sm:$0xff]
        %v1748 = vld [vmem:[%s1745 + $0x10] sm:$0xff]
        %v1749 = vld [vmem:[%s1745 + $0x18] sm:$0xff]
        %v1750 = vld [vmem:[%s1745 + $0x20] sm:$0xff]
        %v1751 = vld [vmem:[%s1745 + $0x28] sm:$0xff]
        %v1752 = vld [vmem:[%s1745 + $0x30] sm:$0xff]
        %v1753 = vld [vmem:[%s1745 + $0x38] sm:$0xff]
        %v1754 = vld [vmem:[%s1745 + $0x40] sm:$0xff]
        %v1755 = vld [vmem:[%s1745 + $0x48] sm:$0xff]
        %v1756 = vld [vmem:[%s1745 + $0x50] sm:$0xff]
        %v1757 = vld [vmem:[%s1745 + $0x58] sm:$0xff]
        %v1758 = vld [vmem:[%s1745 + $0x60] sm:$0xff]
        %v1759 = vld [vmem:[%s1745 + $0x68] sm:$0xff]
        %v1760 = vld [vmem:[%s1745 + $0x70] sm:$0xff]
        %v1761 = vld [vmem:[%s1745 + $0x78] sm:$0xff]
        %v1762 = vld [vmem:[%s1745 + $0x80] sm:$0xff]
        %v1763 = vld [vmem:[%s1745 + $0x88] sm:$0xff]
        %v1764 = vld [vmem:[%s1745 + $0x90] sm:$0xff]
        %v1765 = vld [vmem:[%s1745 + $0x98] sm:$0xff]
        %v1766 = vld [vmem:[%s1745 + $0xa0] sm:$0xff]
        %v1767 = vld [vmem:[%s1745 + $0xa8] sm:$0xff]
        %v1768 = vld [vmem:[%s1745 + $0xb0] sm:$0xff]
        %v1769 = vld [vmem:[%s1745 + $0xb8] sm:$0xff]
        %v1770 = vld [vmem:[%s1745 + $0xc0] sm:$0xff]
        %v1771 = vld [vmem:[%s1745 + $0xc8] sm:$0xff]
        %v1772 = vld [vmem:[%s1745 + $0xd0] sm:$0xff]
        %v1773 = vld [vmem:[%s1745 + $0xd8] sm:$0xff]
        %v1774 = vld [vmem:[%s1745 + $0xe0] sm:$0xff]
        %v1775 = vld [vmem:[%s1745 + $0xe8] sm:$0xff]
        %v1776 = vld [vmem:[%s1745 + $0xf0] sm:$0xff]
        %v1777 = vld [vmem:[%s1745 + $0xf8] sm:$0xff]
        %1778 = vmatprep.subr.mxu0 %v1747
        %1779 = vmatpush1.msra.mxu0 %v1746
        %1780 = vmatprep.subr.mxu0 %v1749
        %1781 = vmatpush1.msra.mxu0 %v1748
        %1782 = vmatprep.subr.mxu0 %v1751
        %1783 = vmatpush1.msra.mxu0 %v1750
        %1784 = vmatprep.subr.mxu0 %v1753
        %1785 = vmatpush1.msra.mxu0 %v1752
        %1786 = vmatprep.subr.mxu0 %v1755
        %1787 = vmatpush1.msra.mxu0 %v1754
        %1788 = vmatprep.subr.mxu0 %v1757
        %1789 = vmatpush1.msra.mxu0 %v1756
        %1790 = vmatprep.subr.mxu0 %v1759
        %1791 = vmatpush1.msra.mxu0 %v1758
        %1792 = vmatprep.subr.mxu0 %v1761
        %1793 = vmatpush1.msra.mxu0 %v1760
        %1794 = vmatprep.subr.mxu0 %v1763
        %1795 = vmatpush1.msra.mxu0 %v1762
        %1796 = vmatprep.subr.mxu0 %v1765
        %1797 = vmatpush1.msra.mxu0 %v1764
        %1798 = vmatprep.subr.mxu0 %v1767
        %1799 = vmatpush1.msra.mxu0 %v1766
        %1800 = vmatprep.subr.mxu0 %v1769
        %1801 = vmatpush1.msra.mxu0 %v1768
        %1802 = vmatprep.subr.mxu0 %v1771
        %1803 = vmatpush1.msra.mxu0 %v1770
        %1804 = vmatprep.subr.mxu0 %v1773
        %1805 = vmatpush1.msra.mxu0 %v1772
        %1806 = vmatprep.subr.mxu0 %v1775
        %1807 = vmatpush1.msra.mxu0 %v1774
        %1808 = vmatprep.subr.mxu0 %v1777
        %1809 = vmatpush1.msra.mxu0 %v1776
        %1810 = vmatprep.subr.mxu0 0.0
        %1811 = vmatpush1.msra.mxu0 0.0
        %1812 = vmatprep.subr.mxu0 0.0
        %1813 = vmatpush1.msra.mxu0 0.0
        %1814 = vmatprep.subr.mxu0 0.0
        %1815 = vmatpush1.msra.mxu0 0.0
        %1816 = vmatprep.subr.mxu0 0.0
        %1817 = vmatpush1.msra.mxu0 0.0
        %1818 = vmatprep.subr.mxu0 0.0
        %1819 = vmatpush1.msra.mxu0 0.0
        %1820 = vmatprep.subr.mxu0 0.0
        %1821 = vmatpush1.msra.mxu0 0.0
        %1822 = vmatprep.subr.mxu0 0.0
        %1823 = vmatpush1.msra.mxu0 0.0
        %1824 = vmatprep.subr.mxu0 0.0
        %1825 = vmatpush1.msra.mxu0 0.0
        %1826 = vmatprep.subr.mxu0 0.0
        %1827 = vmatpush1.msra.mxu0 0.0
        %1828 = vmatprep.subr.mxu0 0.0
        %1829 = vmatpush1.msra.mxu0 0.0
        %1830 = vmatprep.subr.mxu0 0.0
        %1831 = vmatpush1.msra.mxu0 0.0
        %1832 = vmatprep.subr.mxu0 0.0
        %1833 = vmatpush1.msra.mxu0 0.0
        %1834 = vmatprep.subr.mxu0 0.0
        %1835 = vmatpush1.msra.mxu0 0.0
        %1836 = vmatprep.subr.mxu0 0.0
        %1837 = vmatpush1.msra.mxu0 0.0
        %1838 = vmatprep.subr.mxu0 0.0
        %1839 = vmatpush1.msra.mxu0 0.0
        %1840 = vmatprep.subr.mxu0 0.0
        %1841 = vmatpush1.msra.mxu0 0.0
        %1842 = vmatprep.mubr.f32.mxu0 0.0
        %1843 = vmatmul.mubr.f32.gmra.mrb[0].mxu0 %v1687
        %v1844 = vpop.f32.mrb[0].mxu0
        %v1845 = vadd.f32 0.0, %v1844
        %v1846 = vpop.f32.mrb[0].mxu0
        %v1847 = vadd.f32 0.0, %v1846
        %1848 = vmatprep.mubr.f32.mxu0 0.0
        %1849 = vmatmul.mubr.f32.gmra.mrb[0].mxu0 %v1688
        %v1850 = vpop.f32.mrb[0].mxu0
        %v1851 = vadd.f32 0.0, %v1850
        %v1852 = vpop.f32.mrb[0].mxu0
        %v1853 = vadd.f32 0.0, %v1852
        %1854 = vmatprep.mubr.f32.mxu0 0.0
        %1855 = vmatmul.mubr.f32.gmra.mrb[0].mxu0 %v1689
        %v1856 = vpop.f32.mrb[0].mxu0
        %v1857 = vadd.f32 0.0, %v1856
        %v1858 = vpop.f32.mrb[0].mxu0
        %v1859 = vadd.f32 0.0, %v1858
        %1860 = vmatprep.mubr.f32.mxu0 0.0
        %1861 = vmatmul.mubr.f32.gmra.mrb[0].mxu0 %v1690
        %v1862 = vpop.f32.mrb[0].mxu0
        %v1863 = vadd.f32 0.0, %v1862
        %v1864 = vpop.f32.mrb[0].mxu0
        %v1865 = vadd.f32 0.0, %v1864
        %1866 = vdwg.mxu0
        %1867 = vmatprep.subr.mxu0 %v1714
        %1868 = vmatpush1.msra.mxu0 %v1713
        %1869 = vmatprep.subr.mxu0 %v1716
        %1870 = vmatpush1.msra.mxu0 %v1715
        %1871 = vmatprep.subr.mxu0 %v1718
        %1872 = vmatpush1.msra.mxu0 %v1717
        %1873 = vmatprep.subr.mxu0 %v1720
        %1874 = vmatpush1.msra.mxu0 %v1719
        %1875 = vmatprep.subr.mxu0 %v1722
        %1876 = vmatpush1.msra.mxu0 %v1721
        %1877 = vmatprep.subr.mxu0 %v1724
        %1878 = vmatpush1.msra.mxu0 %v1723
        %1879 = vmatprep.subr.mxu0 %v1726
        %1880 = vmatpush1.msra.mxu0 %v1725
        %1881 = vmatprep.subr.mxu0 %v1728
        %1882 = vmatpush1.msra.mxu0 %v1727
        %1883 = vmatprep.subr.mxu0 %v1730
        %1884 = vmatpush1.msra.mxu0 %v1729
        %1885 = vmatprep.subr.mxu0 %v1732
        %1886 = vmatpush1.msra.mxu0 %v1731
        %1887 = vmatprep.subr.mxu0 %v1734
        %1888 = vmatpush1.msra.mxu0 %v1733
        %1889 = vmatprep.subr.mxu0 %v1736
        %1890 = vmatpush1.msra.mxu0 %v1735
        %1891 = vmatprep.subr.mxu0 %v1738
        %1892 = vmatpush1.msra.mxu0 %v1737
        %1893 = vmatprep.subr.mxu0 %v1740
        %1894 = vmatpush1.msra.mxu0 %v1739
        %1895 = vmatprep.subr.mxu0 %v1742
        %1896 = vmatpush1.msra.mxu0 %v1741
        %1897 = vmatprep.subr.mxu0 %v1744
        %1898 = vmatpush1.msra.mxu0 %v1743
        %1899 = vmatprep.subr.mxu0 0.0
        %1900 = vmatpush1.msra.mxu0 0.0
        %1901 = vmatprep.subr.mxu0 0.0
        %1902 = vmatpush1.msra.mxu0 0.0
        %1903 = vmatprep.subr.mxu0 0.0
        %1904 = vmatpush1.msra.mxu0 0.0
        %1905 = vmatprep.subr.mxu0 0.0
        %1906 = vmatpush1.msra.mxu0 0.0
        %1907 = vmatprep.subr.mxu0 0.0
        %1908 = vmatpush1.msra.mxu0 0.0
        %1909 = vmatprep.subr.mxu0 0.0
        %1910 = vmatpush1.msra.mxu0 0.0
        %1911 = vmatprep.subr.mxu0 0.0
        %1912 = vmatpush1.msra.mxu0 0.0
        %1913 = vmatprep.subr.mxu0 0.0
        %1914 = vmatpush1.msra.mxu0 0.0
        %1915 = vmatprep.subr.mxu0 0.0
        %1916 = vmatpush1.msra.mxu0 0.0
        %1917 = vmatprep.subr.mxu0 0.0
        %1918 = vmatpush1.msra.mxu0 0.0
        %1919 = vmatprep.subr.mxu0 0.0
        %1920 = vmatpush1.msra.mxu0 0.0
        %1921 = vmatprep.subr.mxu0 0.0
        %1922 = vmatpush1.msra.mxu0 0.0
        %1923 = vmatprep.subr.mxu0 0.0
        %1924 = vmatpush1.msra.mxu0 0.0
        %1925 = vmatprep.subr.mxu0 0.0
        %1926 = vmatpush1.msra.mxu0 0.0
        %1927 = vmatprep.subr.mxu0 0.0
        %1928 = vmatpush1.msra.mxu0 0.0
        %1929 = vmatprep.subr.mxu0 0.0
        %1930 = vmatpush1.msra.mxu0 0.0
        %1931 = vmatprep.mubr.f32.mxu0 0.0
        %1932 = vmatmul.mubr.f32.gmra.mrb[0].mxu0 %v1708
        %v1933 = vpop.f32.mrb[0].mxu0
        %v1934 = vadd.f32 %v1845, %v1933
        %v1935 = vpop.f32.mrb[0].mxu0
        %v1936 = vadd.f32 %v1847, %v1935
        %1937 = vmatprep.mubr.f32.mxu0 0.0
        %1938 = vmatmul.mubr.f32.gmra.mrb[0].mxu0 %v1709
        %v1939 = vpop.f32.mrb[0].mxu0
        %v1940 = vadd.f32 %v1851, %v1939
        %v1941 = vpop.f32.mrb[0].mxu0
        %v1942 = vadd.f32 %v1853, %v1941
        %1943 = vmatprep.mubr.f32.mxu0 0.0
        %1944 = vmatmul.mubr.f32.gmra.mrb[0].mxu0 %v1710
        %v1945 = vpop.f32.mrb[0].mxu0
        %v1946 = vadd.f32 %v1857, %v1945
        %v1947 = vpop.f32.mrb[0].mxu0
        %v1948 = vadd.f32 %v1859, %v1947
        %1949 = vmatprep.mubr.f32.mxu0 0.0
        %1950 = vmatmul.mubr.f32.gmra.mrb[0].mxu0 %v1711
        %v1951 = vpop.f32.mrb[0].mxu0
        %v1952 = vadd.f32 %v1863, %v1951
        %v1953 = vpop.f32.mrb[0].mxu0
        %v1954 = vadd.f32 %v1865, %v1953
        %1955 = vdwg.mxu0
        %s1956 = scalar_lea.vmem %s597, 4
        %v1957 = vld [vmem:[%s1956] sm:$0x3]
        %v1959 = vlaneseq
        %v1960 = vshrl.u32 %v1959, 7
        %v1961 = vsub.s32 0, %v1960
        %v1962 = vrot.slane %v1957, %v1961
        %v1963 = vlaneseq
        %v1964 = vshrl.u32 %v1963, 7
        %v1965 = vsub.s32 1, %v1964
        %v1966 = vrot.slane %v1957, %v1965
        %v1969 = vadd.f32 %v1934, %v1962
        %v1970 = vadd.f32 %v1936, %v1966
        %v1971 = vadd.f32 %v1940, %v1962
        %v1972 = vadd.f32 %v1942, %v1966
        %v1973 = vadd.f32 %v1946, %v1962
        %v1974 = vadd.f32 %v1948, %v1966
        %v1975 = vadd.f32 %v1952, %v1962
        %v1976 = vadd.f32 %v1954, %v1966
        %v1977 = vtanh.pop %v1969
        %v1978 = vtanh.pop %v1971
        %v1979 = vtanh.pop %v1973
        %v1980 = vtanh.pop %v1975
        %v1981 = vxor.u32 %v1970, 2147483648
        %v1982 = vxor.u32 %v1972, 2147483648
        %v1983 = vxor.u32 %v1974, 2147483648
        %v1984 = vxor.u32 %v1976, 2147483648
        %v1985 = vmul.f32 %v1981, 1.442695
        %v1986 = vpow.pop %v1985
        %v1987 = vmul.f32 %v1982, 1.442695
        %v1988 = vpow.pop %v1987
        %v1989 = vmul.f32 %v1983, 1.442695
        %v1990 = vpow.pop %v1989
        %v1991 = vmul.f32 %v1984, 1.442695
        %v1992 = vpow.pop %v1991
        %v1993 = vadd.f32 %v1986, 1.0
        %v1994 = vadd.f32 %v1988, 1.0
        %v1995 = vadd.f32 %v1990, 1.0
        %v1996 = vadd.f32 %v1992, 1.0
        %v1997 = vrcp.pop %v1993
        %v1998 = vmul.f32 1.0, %v1997
        %v1999 = vrcp.pop %v1994
        %v2000 = vmul.f32 1.0, %v1999
        %v2001 = vrcp.pop %v1995
        %v2002 = vmul.f32 1.0, %v2001
        %v2003 = vrcp.pop %v1996
        %v2004 = vmul.f32 1.0, %v2003
        %v2005 = vmul.f32 %v1977, %v1998
        %v2006 = vmul.f32 %v1978, %v2000
        %v2007 = vmul.f32 %v1979, %v2002
        %v2008 = vmul.f32 %v1980, %v2004
        %s2009 = scalar_lea.vmem %s519, 512 [#allocation9]
        %v2010 = vld [vmem:[%s2009] sm:$0xff]
        %v2011 = vld [vmem:[%s2009 + $0x8] sm:$0xff]
        %v2012 = vld [vmem:[%s2009 + $0x10] sm:$0xff]
        %v2013 = vld [vmem:[%s2009 + $0x18] sm:$0xff]
        %v2014 = vld [vmem:[%s2009 + $0x20] sm:$0xff]
        %v2015 = vld [vmem:[%s2009 + $0x28] sm:$0xff]
        %v2016 = vld [vmem:[%s2009 + $0x30] sm:$0xff]
        %v2017 = vld [vmem:[%s2009 + $0x38] sm:$0xff]
        %v2018 = vld [vmem:[%s2009 + $0x40] sm:$0xff]
        %v2019 = vld [vmem:[%s2009 + $0x48] sm:$0xff]
        %v2020 = vld [vmem:[%s2009 + $0x50] sm:$0xff]
        %v2021 = vld [vmem:[%s2009 + $0x58] sm:$0xff]
        %v2022 = vld [vmem:[%s2009 + $0x60] sm:$0xff]
        %v2023 = vld [vmem:[%s2009 + $0x68] sm:$0xff]
        %v2024 = vld [vmem:[%s2009 + $0x70] sm:$0xff]
        %v2025 = vld [vmem:[%s2009 + $0x78] sm:$0xff]
        %v2026 = vld [vmem:[%s2009 + $0x80] sm:$0xff]
        %v2027 = vld [vmem:[%s2009 + $0x88] sm:$0xff]
        %v2028 = vld [vmem:[%s2009 + $0x90] sm:$0xff]
        %v2029 = vld [vmem:[%s2009 + $0x98] sm:$0xff]
        %v2030 = vld [vmem:[%s2009 + $0xa0] sm:$0xff]
        %v2031 = vld [vmem:[%s2009 + $0xa8] sm:$0xff]
        %v2032 = vld [vmem:[%s2009 + $0xb0] sm:$0xff]
        %v2033 = vld [vmem:[%s2009 + $0xb8] sm:$0xff]
        %v2034 = vld [vmem:[%s2009 + $0xc0] sm:$0xff]
        %v2035 = vld [vmem:[%s2009 + $0xc8] sm:$0xff]
        %v2036 = vld [vmem:[%s2009 + $0xd0] sm:$0xff]
        %v2037 = vld [vmem:[%s2009 + $0xd8] sm:$0xff]
        %v2038 = vld [vmem:[%s2009 + $0xe0] sm:$0xff]
        %v2039 = vld [vmem:[%s2009 + $0xe8] sm:$0xff]
        %v2040 = vld [vmem:[%s2009 + $0xf0] sm:$0xff]
        %v2041 = vld [vmem:[%s2009 + $0xf8] sm:$0xff]
        %s2042 = scalar_lea.vmem %s601, 4
        %v2043 = vld [vmem:[%s2042] sm:$0x3]
        %v2045 = vlaneseq
        %v2046 = vshrl.u32 %v2045, 7
        %v2047 = vsub.s32 0, %v2046
        %v2048 = vrot.slane %v2043, %v2047
        %v2049 = vlaneseq
        %v2050 = vshrl.u32 %v2049, 7
        %v2051 = vsub.s32 1, %v2050
        %v2052 = vrot.slane %v2043, %v2051
        %2055 = vmatprep.subr.mxu0 %v2011
        %2056 = vmatpush1.msra.mxu0 %v2010
        %2057 = vmatprep.subr.mxu0 %v2013
        %2058 = vmatpush1.msra.mxu0 %v2012
        %2059 = vmatprep.subr.mxu0 %v2015
        %2060 = vmatpush1.msra.mxu0 %v2014
        %2061 = vmatprep.subr.mxu0 %v2017
        %2062 = vmatpush1.msra.mxu0 %v2016
        %2063 = vmatprep.subr.mxu0 %v2019
        %2064 = vmatpush1.msra.mxu0 %v2018
        %2065 = vmatprep.subr.mxu0 %v2021
        %2066 = vmatpush1.msra.mxu0 %v2020
        %2067 = vmatprep.subr.mxu0 %v2023
        %2068 = vmatpush1.msra.mxu0 %v2022
        %2069 = vmatprep.subr.mxu0 %v2025
        %2070 = vmatpush1.msra.mxu0 %v2024
        %2071 = vmatprep.subr.mxu0 %v2027
        %2072 = vmatpush1.msra.mxu0 %v2026
        %2073 = vmatprep.subr.mxu0 %v2029
        %2074 = vmatpush1.msra.mxu0 %v2028
        %2075 = vmatprep.subr.mxu0 %v2031
        %2076 = vmatpush1.msra.mxu0 %v2030
        %2077 = vmatprep.subr.mxu0 %v2033
        %2078 = vmatpush1.msra.mxu0 %v2032
        %2079 = vmatprep.subr.mxu0 %v2035
        %2080 = vmatpush1.msra.mxu0 %v2034
        %2081 = vmatprep.subr.mxu0 %v2037
        %2082 = vmatpush1.msra.mxu0 %v2036
        %2083 = vmatprep.subr.mxu0 %v2039
        %2084 = vmatpush1.msra.mxu0 %v2038
        %2085 = vmatprep.subr.mxu0 %v2041
        %2086 = vmatpush1.msra.mxu0 %v2040
        %2087 = vmatprep.subr.mxu0 0.0
        %2088 = vmatpush1.msra.mxu0 0.0
        %2089 = vmatprep.subr.mxu0 0.0
        %2090 = vmatpush1.msra.mxu0 0.0
        %2091 = vmatprep.subr.mxu0 0.0
        %2092 = vmatpush1.msra.mxu0 0.0
        %2093 = vmatprep.subr.mxu0 0.0
        %2094 = vmatpush1.msra.mxu0 0.0
        %2095 = vmatprep.subr.mxu0 0.0
        %2096 = vmatpush1.msra.mxu0 0.0
        %2097 = vmatprep.subr.mxu0 0.0
        %2098 = vmatpush1.msra.mxu0 0.0
        %2099 = vmatprep.subr.mxu0 0.0
        %2100 = vmatpush1.msra.mxu0 0.0
        %2101 = vmatprep.subr.mxu0 0.0
        %2102 = vmatpush1.msra.mxu0 0.0
        %2103 = vmatprep.subr.mxu0 0.0
        %2104 = vmatpush1.msra.mxu0 0.0
        %2105 = vmatprep.subr.mxu0 0.0
        %2106 = vmatpush1.msra.mxu0 0.0
        %2107 = vmatprep.subr.mxu0 0.0
        %2108 = vmatpush1.msra.mxu0 0.0
        %2109 = vmatprep.subr.mxu0 0.0
        %2110 = vmatpush1.msra.mxu0 0.0
        %2111 = vmatprep.subr.mxu0 0.0
        %2112 = vmatpush1.msra.mxu0 0.0
        %2113 = vmatprep.subr.mxu0 0.0
        %2114 = vmatpush1.msra.mxu0 0.0
        %2115 = vmatprep.subr.mxu0 0.0
        %2116 = vmatpush1.msra.mxu0 0.0
        %2117 = vmatprep.subr.mxu0 0.0
        %2118 = vmatpush1.msra.mxu0 0.0
        %2119 = vmatprep.mubr.f32.mxu0 0.0
        %2120 = vmatmul.mubr.f32.gmra.mrb[0].mxu0 %v2005
        %v2121 = vpop.f32.mrb[0].mxu0
        %v2122 = vadd.f32 %v2048, %v2121
        %v2123 = vpop.f32.mrb[0].mxu0
        %v2124 = vadd.f32 %v2052, %v2123
        %2125 = vmatprep.mubr.f32.mxu0 0.0
        %2126 = vmatmul.mubr.f32.gmra.mrb[0].mxu0 %v2006
        %v2127 = vpop.f32.mrb[0].mxu0
        %v2128 = vadd.f32 %v2048, %v2127
        %v2129 = vpop.f32.mrb[0].mxu0
        %v2130 = vadd.f32 %v2052, %v2129
        %2131 = vmatprep.mubr.f32.mxu0 0.0
        %2132 = vmatmul.mubr.f32.gmra.mrb[0].mxu0 %v2007
        %v2133 = vpop.f32.mrb[0].mxu0
        %v2134 = vadd.f32 %v2048, %v2133
        %v2135 = vpop.f32.mrb[0].mxu0
        %v2136 = vadd.f32 %v2052, %v2135
        %2137 = vmatprep.mubr.f32.mxu0 0.0
        %2138 = vmatmul.mubr.f32.gmra.mrb[0].mxu0 %v2008
        %v2139 = vpop.f32.mrb[0].mxu0
        %v2140 = vadd.f32 %v2048, %v2139
        %v2141 = vpop.f32.mrb[0].mxu0
        %v2142 = vadd.f32 %v2052, %v2141
        %2143 = vdwg.mxu0
        %v2144 = vadd.f32 %v2122, %v1687
        %v2145 = vadd.f32 %v2128, %v1688
        %v2146 = vadd.f32 %v2134, %v1689
        %v2147 = vadd.f32 %v2140, %v1690
        %v2148 = vadd.f32 %v1691, %v2124
        %v2149 = vadd.f32 %v1692, %v2130
        %v2150 = vadd.f32 %v1693, %v2136
        %v2151 = vadd.f32 %v1694, %v2142
        %2152 = vst [vmem:[#allocation2] sm:$0xff] %v2144
        %2153 = vst [vmem:[#allocation2 + $0x8] sm:$0xff] %v2145
        %2154 = vst [vmem:[#allocation2 + $0x10] sm:$0xff] %v2146
        %2155 = vst [vmem:[#allocation2 + $0x18] sm:$0xff] %v2147
        %2156 = vst [vmem:[#allocation3] sm:$0xff] %v2148
        %2157 = vst [vmem:[#allocation3 + $0x8] sm:$0xff] %v2149
        %2158 = vst [vmem:[#allocation3 + $0x10] sm:$0xff] %v2150
        %2159 = vst [vmem:[#allocation3 + $0x18] sm:$0xff] %v2151
        %p2160 = scmp.eq.s32.totalorder %s36, 1
        // Predicated region
        $region93: #{tpu_custom_call.1} parent=67 // pred_check
          %p2161 = pneg %p2160
        $region94: #{tpu_custom_call.1} parent=67 // pred_check_branch
          %2163 = sbr.rel (%p2161) target = $region96
        $region95: #{tpu_custom_call.1} parent=67 // pred_region
          %v2164 = vmax.f32 %v2148, 0.0
          %v2165 = vmax.f32 %v2149, 0.0
          %v2166 = vmax.f32 %v2150, 0.0
          %v2167 = vmax.f32 %v2151, 0.0
          %v2168 = vld [vmem:[#allocation10] sm:$0xff]
          %v2169 = vld [vmem:[#allocation10 + $0x8] sm:$0xff]
          %v2170 = vld [vmem:[#allocation10 + $0x10] sm:$0xff]
          %v2171 = vld [vmem:[#allocation10 + $0x18] sm:$0xff]
          %v2172 = vld [vmem:[#allocation10 + $0x20] sm:$0xff]
          %v2173 = vld [vmem:[#allocation10 + $0x28] sm:$0xff]
          %v2174 = vld [vmem:[#allocation10 + $0x30] sm:$0xff]
          %v2175 = vld [vmem:[#allocation10 + $0x38] sm:$0xff]
          %v2176 = vld [vmem:[#allocation10 + $0x40] sm:$0xff]
          %v2177 = vld [vmem:[#allocation10 + $0x48] sm:$0xff]
          %v2178 = vld [vmem:[#allocation10 + $0x50] sm:$0xff]
          %v2179 = vld [vmem:[#allocation10 + $0x58] sm:$0xff]
          %v2180 = vld [vmem:[#allocation10 + $0x60] sm:$0xff]
          %v2181 = vld [vmem:[#allocation10 + $0x68] sm:$0xff]
          %v2182 = vld [vmem:[#allocation10 + $0x70] sm:$0xff]
          %v2183 = vld [vmem:[#allocation10 + $0x78] sm:$0xff]
          %v2184 = vld [vmem:[%s9] sm:$0x1]
          %v2186 = vlaneseq
          %v2187 = vshrl.u32 %v2186, 7
          %v2188 = vsub.s32 0, %v2187
          %v2189 = vrot.slane %v2184, %v2188
          %2191 = vmatprep.subr.mxu0 0.0
          %2192 = vmatpush1.msra.mxu0 %v2168
          %2193 = vmatprep.subr.mxu0 0.0
          %2194 = vmatpush1.msra.mxu0 %v2169
          %2195 = vmatprep.subr.mxu0 0.0
          %2196 = vmatpush1.msra.mxu0 %v2170
          %2197 = vmatprep.subr.mxu0 0.0
          %2198 = vmatpush1.msra.mxu0 %v2171
          %2199 = vmatprep.subr.mxu0 0.0
          %2200 = vmatpush1.msra.mxu0 %v2172
          %2201 = vmatprep.subr.mxu0 0.0
          %2202 = vmatpush1.msra.mxu0 %v2173
          %2203 = vmatprep.subr.mxu0 0.0
          %2204 = vmatpush1.msra.mxu0 %v2174
          %2205 = vmatprep.subr.mxu0 0.0
          %2206 = vmatpush1.msra.mxu0 %v2175
          %2207 = vmatprep.subr.mxu0 0.0
          %2208 = vmatpush1.msra.mxu0 %v2176
          %2209 = vmatprep.subr.mxu0 0.0
          %2210 = vmatpush1.msra.mxu0 %v2177
          %2211 = vmatprep.subr.mxu0 0.0
          %2212 = vmatpush1.msra.mxu0 %v2178
          %2213 = vmatprep.subr.mxu0 0.0
          %2214 = vmatpush1.msra.mxu0 %v2179
          %2215 = vmatprep.subr.mxu0 0.0
          %2216 = vmatpush1.msra.mxu0 %v2180
          %2217 = vmatprep.subr.mxu0 0.0
          %2218 = vmatpush1.msra.mxu0 %v2181
          %2219 = vmatprep.subr.mxu0 0.0
          %2220 = vmatpush1.msra.mxu0 %v2182
          %2221 = vmatprep.subr.mxu0 0.0
          %2222 = vmatpush1.msra.mxu0 %v2183
          %2223 = vmatprep.subr.mxu0 0.0
          %2224 = vmatpush1.msra.mxu0 0.0
          %2225 = vmatprep.subr.mxu0 0.0
          %2226 = vmatpush1.msra.mxu0 0.0
          %2227 = vmatprep.subr.mxu0 0.0
          %2228 = vmatpush1.msra.mxu0 0.0
          %2229 = vmatprep.subr.mxu0 0.0
          %2230 = vmatpush1.msra.mxu0 0.0
          %2231 = vmatprep.subr.mxu0 0.0
          %2232 = vmatpush1.msra.mxu0 0.0
          %2233 = vmatprep.subr.mxu0 0.0
          %2234 = vmatpush1.msra.mxu0 0.0
          %2235 = vmatprep.subr.mxu0 0.0
          %2236 = vmatpush1.msra.mxu0 0.0
          %2237 = vmatprep.subr.mxu0 0.0
          %2238 = vmatpush1.msra.mxu0 0.0
          %2239 = vmatprep.subr.mxu0 0.0
          %2240 = vmatpush1.msra.mxu0 0.0
          %2241 = vmatprep.subr.mxu0 0.0
          %2242 = vmatpush1.msra.mxu0 0.0
          %2243 = vmatprep.subr.mxu0 0.0
          %2244 = vmatpush1.msra.mxu0 0.0
          %2245 = vmatprep.subr.mxu0 0.0
          %2246 = vmatpush1.msra.mxu0 0.0
          %2247 = vmatprep.subr.mxu0 0.0
          %2248 = vmatpush1.msra.mxu0 0.0
          %2249 = vmatprep.subr.mxu0 0.0
          %2250 = vmatpush1.msra.mxu0 0.0
          %2251 = vmatprep.subr.mxu0 0.0
          %2252 = vmatpush1.msra.mxu0 0.0
          %2253 = vmatprep.subr.mxu0 0.0
          %2254 = vmatpush1.msra.mxu0 0.0
          %2255 = vmatprep.mubr.f32.mxu0 0.0
          %2256 = vmatmul.mubr.f32.gmra.mrb[0].mxu0 %v2164
          %v2257 = vpop.f32.mrb[0].mxu0
          %v2258 = vadd.f32 %v2189, %v2257
          %v2259 = vpop.f32.mrb[0].mxu0
          %2260 = vmatprep.mubr.f32.mxu0 0.0
          %2261 = vmatmul.mubr.f32.gmra.mrb[0].mxu0 %v2165
          %v2262 = vpop.f32.mrb[0].mxu0
          %v2263 = vadd.f32 %v2189, %v2262
          %v2264 = vpop.f32.mrb[0].mxu0
          %2265 = vmatprep.mubr.f32.mxu0 0.0
          %2266 = vmatmul.mubr.f32.gmra.mrb[0].mxu0 %v2166
          %v2267 = vpop.f32.mrb[0].mxu0
          %v2268 = vadd.f32 %v2189, %v2267
          %v2269 = vpop.f32.mrb[0].mxu0
          %2270 = vmatprep.mubr.f32.mxu0 0.0
          %2271 = vmatmul.mubr.f32.gmra.mrb[0].mxu0 %v2167
          %v2272 = vpop.f32.mrb[0].mxu0
          %v2273 = vadd.f32 %v2189, %v2272
          %v2274 = vpop.f32.mrb[0].mxu0
          %2275 = vdwg.mxu0
          %v2276 = vmax.f32 %v2258, 0.0
          %v2277 = vmax.f32 %v2263, 0.0
          %v2278 = vmax.f32 %v2268, 0.0
          %v2279 = vmax.f32 %v2273, 0.0
          %v2280 = vld [vmem:[#allocation12] sm:$0xff]
          %v2281 = vld [vmem:[#allocation12 + $0x8] sm:$0xff]
          %v2282 = vld [vmem:[#allocation12 + $0x10] sm:$0xff]
          %v2283 = vld [vmem:[#allocation12 + $0x18] sm:$0xff]
          %v2284 = vld [vmem:[#allocation12 + $0x20] sm:$0xff]
          %v2285 = vld [vmem:[#allocation12 + $0x28] sm:$0xff]
          %v2286 = vld [vmem:[#allocation12 + $0x30] sm:$0xff]
          %v2287 = vld [vmem:[#allocation12 + $0x38] sm:$0xff]
          %v2288 = vld [vmem:[#allocation12 + $0x40] sm:$0xff]
          %v2289 = vld [vmem:[#allocation12 + $0x48] sm:$0xff]
          %v2290 = vld [vmem:[#allocation12 + $0x50] sm:$0xff]
          %v2291 = vld [vmem:[#allocation12 + $0x58] sm:$0xff]
          %v2292 = vld [vmem:[#allocation12 + $0x60] sm:$0xff]
          %v2293 = vld [vmem:[#allocation12 + $0x68] sm:$0xff]
          %v2294 = vld [vmem:[#allocation12 + $0x70] sm:$0xff]
          %v2295 = vld [vmem:[#allocation12 + $0x78] sm:$0xff]
          %v2296 = vld [vmem:[%s11] sm:$0x1]
          %v2298 = vlaneseq
          %v2299 = vshrl.u32 %v2298, 7
          %v2300 = vsub.s32 0, %v2299
          %v2301 = vrot.slane %v2296, %v2300
          %2303 = vmatprep.subr.mxu0 0.0
          %2304 = vmatpush1.msra.mxu0 %v2280
          %2305 = vmatprep.subr.mxu0 0.0
          %2306 = vmatpush1.msra.mxu0 %v2281
          %2307 = vmatprep.subr.mxu0 0.0
          %2308 = vmatpush1.msra.mxu0 %v2282
          %2309 = vmatprep.subr.mxu0 0.0
          %2310 = vmatpush1.msra.mxu0 %v2283
          %2311 = vmatprep.subr.mxu0 0.0
          %2312 = vmatpush1.msra.mxu0 %v2284
          %2313 = vmatprep.subr.mxu0 0.0
          %2314 = vmatpush1.msra.mxu0 %v2285
          %2315 = vmatprep.subr.mxu0 0.0
          %2316 = vmatpush1.msra.mxu0 %v2286
          %2317 = vmatprep.subr.mxu0 0.0
          %2318 = vmatpush1.msra.mxu0 %v2287
          %2319 = vmatprep.subr.mxu0 0.0
          %2320 = vmatpush1.msra.mxu0 %v2288
          %2321 = vmatprep.subr.mxu0 0.0
          %2322 = vmatpush1.msra.mxu0 %v2289
          %2323 = vmatprep.subr.mxu0 0.0
          %2324 = vmatpush1.msra.mxu0 %v2290
          %2325 = vmatprep.subr.mxu0 0.0
          %2326 = vmatpush1.msra.mxu0 %v2291
          %2327 = vmatprep.subr.mxu0 0.0
          %2328 = vmatpush1.msra.mxu0 %v2292
          %2329 = vmatprep.subr.mxu0 0.0
          %2330 = vmatpush1.msra.mxu0 %v2293
          %2331 = vmatprep.subr.mxu0 0.0
          %2332 = vmatpush1.msra.mxu0 %v2294
          %2333 = vmatprep.subr.mxu0 0.0
          %2334 = vmatpush1.msra.mxu0 %v2295
          %2335 = vmatprep.subr.mxu0 0.0
          %2336 = vmatpush1.msra.mxu0 0.0
          %2337 = vmatprep.subr.mxu0 0.0
          %2338 = vmatpush1.msra.mxu0 0.0
          %2339 = vmatprep.subr.mxu0 0.0
          %2340 = vmatpush1.msra.mxu0 0.0
          %2341 = vmatprep.subr.mxu0 0.0
          %2342 = vmatpush1.msra.mxu0 0.0
          %2343 = vmatprep.subr.mxu0 0.0
          %2344 = vmatpush1.msra.mxu0 0.0
          %2345 = vmatprep.subr.mxu0 0.0
          %2346 = vmatpush1.msra.mxu0 0.0
          %2347 = vmatprep.subr.mxu0 0.0
          %2348 = vmatpush1.msra.mxu0 0.0
          %2349 = vmatprep.subr.mxu0 0.0
          %2350 = vmatpush1.msra.mxu0 0.0
          %2351 = vmatprep.subr.mxu0 0.0
          %2352 = vmatpush1.msra.mxu0 0.0
          %2353 = vmatprep.subr.mxu0 0.0
          %2354 = vmatpush1.msra.mxu0 0.0
          %2355 = vmatprep.subr.mxu0 0.0
          %2356 = vmatpush1.msra.mxu0 0.0
          %2357 = vmatprep.subr.mxu0 0.0
          %2358 = vmatpush1.msra.mxu0 0.0
          %2359 = vmatprep.subr.mxu0 0.0
          %2360 = vmatpush1.msra.mxu0 0.0
          %2361 = vmatprep.subr.mxu0 0.0
          %2362 = vmatpush1.msra.mxu0 0.0
          %2363 = vmatprep.subr.mxu0 0.0
          %2364 = vmatpush1.msra.mxu0 0.0
          %2365 = vmatprep.subr.mxu0 0.0
          %2366 = vmatpush1.msra.mxu0 0.0
          %2367 = vmatprep.mubr.f32.mxu0 0.0
          %2368 = vmatmul.mubr.f32.gmra.mrb[0].mxu0 %v2276
          %v2369 = vpop.f32.mrb[0].mxu0
          %v2370 = vadd.f32 %v2301, %v2369
          %v2371 = vpop.f32.mrb[0].mxu0
          %2372 = vmatprep.mubr.f32.mxu0 0.0
          %2373 = vmatmul.mubr.f32.gmra.mrb[0].mxu0 %v2277
          %v2374 = vpop.f32.mrb[0].mxu0
          %v2375 = vadd.f32 %v2301, %v2374
          %v2376 = vpop.f32.mrb[0].mxu0
          %2377 = vmatprep.mubr.f32.mxu0 0.0
          %2378 = vmatmul.mubr.f32.gmra.mrb[0].mxu0 %v2278
          %v2379 = vpop.f32.mrb[0].mxu0
          %v2380 = vadd.f32 %v2301, %v2379
          %v2381 = vpop.f32.mrb[0].mxu0
          %2382 = vmatprep.mubr.f32.mxu0 0.0
          %2383 = vmatmul.mubr.f32.gmra.mrb[0].mxu0 %v2279
          %v2384 = vpop.f32.mrb[0].mxu0
          %v2385 = vadd.f32 %v2301, %v2384
          %v2386 = vpop.f32.mrb[0].mxu0
          %2387 = vdwg.mxu0
          %2388 = vst [vmem:[#allocation13] sm:$0xff] %v2370
          %2389 = vst [vmem:[#allocation13 + $0x8] sm:$0xff] %v2375
          %2390 = vst [vmem:[#allocation13 + $0x10] sm:$0xff] %v2380
          %2391 = vst [vmem:[#allocation13 + $0x18] sm:$0xff] %v2385
        $region96: #{tpu_custom_call.1} parent=67 // pred_fallthru
          _
        // Predicated region
        $region97: #{tpu_custom_call.1} parent=67 // pred_check
          %p2392 = pneg %p343
        $region98: #{tpu_custom_call.1} parent=67 // pred_check_branch
          %2394 = sbr.rel (%p2392) target = $region100
        $region99: #{tpu_custom_call.1} parent=67 // pred_region
          %s2395 = smul.u32 2, %s35
          %s2397 = ssub.s32 512, 512
          %2398 = vsyncadd [#allocation6], %s2397
          %s2399 = smul.addr %s2395, 2
          %s2400 = smul.addr %s2399, 128
          %s2401 = scalar_lea.hbm %s12, %s2400
          %s2402 = sshll.u32 [#allocation13], 4
          %s2403 = int_to_ptr.vmem [resolvable:$true] %s2402
          %2408 = dma.vmem_to_hbm [thread:$0]  %s2403, 512, %s2401, [#allocation6], 128, 128, 8
        $region100: #{tpu_custom_call.1} parent=67 // pred_fallthru
          _
        // Predicated region
        $region101: #{tpu_custom_call.1} parent=67 // pred_check
          %p2409 = pneg %p343
        $region102: #{tpu_custom_call.1} parent=67 // pred_check_branch
          %2411 = sbr.rel (%p2409) target = $region104
        $region103: #{tpu_custom_call.1} parent=67 // pred_region
          %2412 = dma.done [#allocation6], 512
        $region104: #{tpu_custom_call.1} parent=67 // pred_fallthru
          _
      $region68: #{tpu_custom_call.1} parent=5 // pred_fallthru
        _
      %p2413 = scmp.le.s32.totalorder 2, %s26
      // Predicated region
      $region105: #{tpu_custom_call.1} parent=5 // pred_check
        %p2414 = pneg %p2413
      $region106: #{tpu_custom_call.1} parent=5 // pred_check_branch
        %2416 = sbr.rel (%p2414) target = $region108
      $region107: #{tpu_custom_call.1} parent=5 // pred_region
        %s2417 = ssub.s32 %s26, 2
      $region108: #{tpu_custom_call.1} parent=5 // pred_fallthru
        _
    $region6: #{tpu_custom_call.1} parent=1 // loop_footer
      %s30 = sadd.s32 1, %s26
    $region7: #{tpu_custom_call.1} parent=1 // loop_footer_branch
      %25 = sbr.rel target = $region3
    $region8: #{tpu_custom_call.1} parent=1 // loop_exit
      _
    %2418 = vsyncpa [#allocation5], 1
    %s2419 = scalar_lea.sflag [#allocation5], 1
    %2420 = vsyncpa %s2419, 1
    %2421 = vsyncpa [#allocation8], 1
    %s2422 = scalar_lea.sflag [#allocation8], 1
    %2423 = vsyncpa %s2422, 1
    %2424 = vsyncpa [#allocation11], 1
    %2425 = vsyncpa [#allocation6], 1
    %s2426 = scalar_lea.sflag [#allocation6], 1
    %2427 = vsyncpa %s2426, 1

</llo_original>
